<compile_context>
chip_gen: v7x
topology: tpu7x:2x2x1
jax: 0.10.0
libtpu: 0.0.40
codegen_flags: <defaults>
</compile_context>

<pallas_src>
import functools
import math

import jax
import jax.numpy as jnp
from jax import lax
from jax.experimental import pallas as pl
from jax.experimental.pallas import tpu as pltpu

EPS = 1e-6
NEG_INF = -1e9

# Packed per-layer vector-param rows (all length d_model):
#   0..3  self-attn biases  q,k,v,o
#   4..7  cross-attn biases q,k,v,o
#   8     ffn b1 (first d_ff lanes valid, rest zero padding)
#   9     ffn b2
#   10,11 ln0 a,b   12,13 ln1 a,b   14,15 ln2 a,b
_N_VEC_ROWS = 16


def fused_decoder_kernel(n_heads, n_layers, d_ff, batch, s_tgt, s_src,
                         x_ref, mem_ref, tgt_mz_ref, src_mz_ref,
                         attn_w_ref, ff_w1_ref, ff_w2_ref, vec_ref, fn_ref,
                         out_ref, x_carry, ctx_scr):
    l = pl.program_id(0)
    d_model = x_carry.shape[-1]
    d_k = d_model // n_heads
    scale = 1.0 / math.sqrt(d_k)

    # Load input once (constant-index block, DMA'd a single time for the call).
    @pl.when(l == 0)
    def _():
        x_carry[...] = x_ref[...]

    x = x_carry[...]              # (B*S_tgt, D) f32, carried across layers
    mem = mem_ref[...]            # (B*S_src, D) f32
    tgt_mz = tgt_mz_ref[...]      # (B, S_tgt, S_tgt) bf16, 1.0 where mask == 0
    src_mz = src_mz_ref[...]      # (B, S_tgt, S_src) bf16
    vp = vec_ref[0]               # (16, D) f32 packed biases / LN params

    def layer_norm(v, a_row, b_row):
        # Annotated-Transformer LayerNorm: a*(v-mean)/(std+eps)+b, unbiased std.
        mean = jnp.mean(v, axis=-1, keepdims=True)
        var = jnp.sum((v - mean) ** 2, axis=-1, keepdims=True) * (1.0 / (d_model - 1))
        std = jnp.sqrt(var)
        return a_row * (v - mean) / (std + EPS) + b_row

    def mha(q_rows, kv_rows, mz, s_k, w_base, b_base):
        # q_rows: (B*S_tgt, D) f32, kv_rows: (B*s_k, D) f32,
        # mz: (B, S_tgt, s_k) bf16 "mask==0" indicator.
        wq = attn_w_ref[0, w_base + 0]
        wk = attn_w_ref[0, w_base + 1]
        wv = attn_w_ref[0, w_base + 2]
        wo = attn_w_ref[0, w_base + 3]
        bq = vp[b_base + 0:b_base + 1]
        bk = vp[b_base + 1:b_base + 2]
        bv = vp[b_base + 2:b_base + 3]
        bo = vp[b_base + 3:b_base + 4]

        # Full-width DxD projections on flattened rows: bf16 MXU, f32 accumulate.
        q_bf = q_rows.astype(jnp.bfloat16)
        kv_bf = kv_rows.astype(jnp.bfloat16)
        q = (jnp.dot(q_bf, wq, preferred_element_type=jnp.float32) + bq
             ).astype(jnp.bfloat16)
        k = (jnp.dot(kv_bf, wk, preferred_element_type=jnp.float32) + bk
             ).astype(jnp.bfloat16)
        v = (jnp.dot(kv_bf, wv, preferred_element_type=jnp.float32) + bv
             ).astype(jnp.bfloat16)

        for b in range(batch):                      # static loops: tiny B, H
            q_b = q[b * s_tgt:(b + 1) * s_tgt]
            k_b = k[b * s_k:(b + 1) * s_k]
            v_b = v[b * s_k:(b + 1) * s_k]
            masked_b = mz[b] != 0                   # compare hoisted out of head loop
            for h in range(n_heads):
                qh = q_b[:, h * d_k:(h + 1) * d_k]
                kh = k_b[:, h * d_k:(h + 1) * d_k]
                vh = v_b[:, h * d_k:(h + 1) * d_k]
                s = lax.dot_general(qh, kh, (((1,), (1,)), ((), ())),
                                    preferred_element_type=jnp.float32) * scale
                s = jnp.where(masked_b, NEG_INF, s)  # masked_fill(mask==0, -1e9)
                s = s - jnp.max(s, axis=-1, keepdims=True)
                p = jnp.exp(s)
                p = p / jnp.sum(p, axis=-1, keepdims=True)   # exact softmax
                # TODO(synk): attention-prob dropout (p=0.2) omitted (eval mode).
                ctx = jnp.dot(p.astype(jnp.bfloat16), vh,
                              preferred_element_type=jnp.float32)
                # write head context in place (no stack/concat relayouts)
                ctx_scr[b * s_tgt:(b + 1) * s_tgt, h * d_k:(h + 1) * d_k] = ctx
        # single concat-heads @ Wo matmul over all B*S_tgt rows
        return (jnp.dot(ctx_scr[...].astype(jnp.bfloat16), wo,
                        preferred_element_type=jnp.float32) + bo)

    # sublayer 0: self-attention (pre-norm residual; dropout = identity in eval)
    xn = layer_norm(x, vp[10:11], vp[11:12])
    x = x + mha(xn, xn, tgt_mz, s_tgt, 0, 0)

    # sublayer 1: source (cross) attention against encoder memory
    xn = layer_norm(x, vp[12:13], vp[13:14])
    x = x + mha(xn, mem, src_mz, s_src, 4, 4)

    # sublayer 2: position-wise feed-forward  w2(relu(w1(x)))
    xn = layer_norm(x, vp[14:15], vp[15:16])
    h = jnp.dot(xn.astype(jnp.bfloat16), ff_w1_ref[0],
                preferred_element_type=jnp.float32) + vp[8:9, :d_ff]
    h = jnp.maximum(h, 0.0)
    ff = jnp.dot(h.astype(jnp.bfloat16), ff_w2_ref[0],
                 preferred_element_type=jnp.float32) + vp[9:10]
    x = x + ff

    x_carry[...] = x

    # Final Decoder LayerNorm fused into the last layer; output block is
    # resident (constant index) and written back once after the grid ends.
    @pl.when(l == n_layers - 1)
    def _():
        out_ref[...] = layer_norm(x, fn_ref[0:1], fn_ref[1:2])


def decoder_forward(x, memory, src_mask, tgt_mask, params, n_heads):
    B, S_tgt, D = x.shape
    S_src = memory.shape[1]
    attn_w = params['attn_w']      # (L, 8, D, D)  bf16
    ff_w1 = params['ff_w1']        # (L, D, d_ff)  bf16
    ff_w2 = params['ff_w2']        # (L, d_ff, D)  bf16
    vec = params['vec']            # (L, 16, D)    f32
    fn = params['final_norm']      # (2, D)        f32
    L = attn_w.shape[0]
    d_ff = ff_w1.shape[-1]

    # Flatten (B, S, D) -> (B*S, D) for projections / FFN (attention keeps the
    # per-batch mask inside the kernel via static row slices).
    x2 = x.reshape(B * S_tgt, D)
    mem2 = memory.reshape(B * S_src, D)
    # Pre-reduce masks: bf16 indicator of "mask == 0" (exact masked_fill semantics).
    tgt_mz = (tgt_mask == 0).astype(jnp.bfloat16)
    src_mz = (src_mask == 0).astype(jnp.bfloat16)

    def const_spec(shape):
        # Whole-array block, constant index -> DMA'd once, resident across layers.
        nd = len(shape)
        return pl.BlockSpec(tuple(shape), lambda l, nd=nd: (0,) * nd)

    def layer_spec(shape):
        # Per-layer block indexed by the grid axis -> next layer's weights are
        # prefetched (double-buffered) under the current layer's compute.
        nd = len(shape)
        return pl.BlockSpec((1,) + tuple(shape[1:]),
                            lambda l, nd=nd: (l,) + (0,) * (nd - 1))

    kernel = functools.partial(fused_decoder_kernel, n_heads, L, d_ff,
                               B, S_tgt, S_src)

    out2 = pl.pallas_call(
        kernel,
        out_shape=jax.ShapeDtypeStruct((B * S_tgt, D), jnp.float32),
        grid=(L,),
        in_specs=[const_spec(x2.shape), const_spec(mem2.shape),
                  const_spec(tgt_mz.shape), const_spec(src_mz.shape),
                  layer_spec(attn_w.shape), layer_spec(ff_w1.shape),
                  layer_spec(ff_w2.shape), layer_spec(vec.shape),
                  const_spec(fn.shape)],
        out_specs=const_spec((B * S_tgt, D)),
        scratch_shapes=[pltpu.VMEM((B * S_tgt, D), jnp.float32),   # x carry
                        pltpu.VMEM((B * S_tgt, D), jnp.float32)],  # head ctx
        compiler_params=pltpu.CompilerParams(
            dimension_semantics=("arbitrary",),       # layers are sequential
            vmem_limit_bytes=48 * 1024 * 1024),        # fits v7x 64 MiB budget
    )(x2, mem2, tgt_mz, src_mz, attn_w, ff_w1, ff_w2, vec, fn)

    return out2.reshape(B, S_tgt, D)


def init_decoder_params(key, d_model, d_ff, n_layers, scale=0.05):
    k_attn, k_ff1, k_ff2 = jax.random.split(key, 3)
    # Stacked per-layer weights, bf16 (MXU operands).
    attn_w = (scale * jax.random.normal(
        k_attn, (n_layers, 8, d_model, d_model), jnp.float32)).astype(jnp.bfloat16)
    ff_w1 = (scale * jax.random.normal(
        k_ff1, (n_layers, d_model, d_ff), jnp.float32)).astype(jnp.bfloat16)
    ff_w2 = (scale * jax.random.normal(
        k_ff2, (n_layers, d_ff, d_model), jnp.float32)).astype(jnp.bfloat16)
    # Packed biases / LayerNorm params, fp32. Biases zero; LN scale rows = 1.
    vec = jnp.zeros((n_layers, _N_VEC_ROWS, d_model), jnp.float32)
    vec = vec.at[:, (10, 12, 14), :].set(1.0)
    final_norm = jnp.stack([jnp.ones((d_model,), jnp.float32),
                            jnp.zeros((d_model,), jnp.float32)], axis=0)
    return {'attn_w': attn_w, 'ff_w1': ff_w1, 'ff_w2': ff_w2,
            'vec': vec, 'final_norm': final_norm}


if __name__ == "__main__":
    # Small shapes consistent with the module (scaled down from 512/8/64/8).
    B, S_TGT, S_SRC = 2, 8, 8
    D_MODEL, N_HEADS, D_FF, N_LAYERS = 32, 4, 16, 2

    key = jax.random.PRNGKey(0)
    kx, kmem, kp = jax.random.split(key, 3)
    x = jax.random.normal(kx, (B, S_TGT, D_MODEL), jnp.float32)          # pe_result
    memory = jax.random.normal(kmem, (B, S_SRC, D_MODEL), jnp.float32)   # en_result
    # Reference driver uses all-zero masks (mask==0 everywhere -> uniform attn).
    src_mask = jnp.zeros((B, S_TGT, S_SRC), jnp.float32)
    tgt_mask = jnp.zeros((B, S_TGT, S_TGT), jnp.float32)

    params = init_decoder_params(kp, D_MODEL, D_FF, N_LAYERS)

    out = decoder_forward(x, memory, src_mask, tgt_mask, params, N_HEADS)
    out = jax.block_until_ready(out)
    assert out.shape == (B, S_TGT, D_MODEL)
    assert bool(jnp.all(jnp.isfinite(out)))
    print("KERNEL_OK")
</pallas_src>

<mosaic_0001>
module attributes {stable_mosaic.version = 11 : i64} {
  func.func @fused_decoder_kernel(%arg0: i32, %arg1: memref<16x32xf32, #tpu.memory_space<vmem>>, %arg2: memref<16x32xf32, #tpu.memory_space<vmem>>, %arg3: memref<2x8x8xbf16, #tpu.memory_space<vmem>>, %arg4: memref<2x8x8xbf16, #tpu.memory_space<vmem>>, %arg5: memref<1x8x32x32xbf16, #tpu.memory_space<vmem>>, %arg6: memref<1x32x16xbf16, #tpu.memory_space<vmem>>, %arg7: memref<1x16x32xbf16, #tpu.memory_space<vmem>>, %arg8: memref<1x16x32xf32, #tpu.memory_space<vmem>>, %arg9: memref<2x32xf32, #tpu.memory_space<vmem>>, %arg10: memref<16x32xf32, #tpu.memory_space<vmem>>, %arg11: memref<16x32xf32, #tpu.memory_space<vmem>>, %arg12: memref<16x32xf32, #tpu.memory_space<vmem>>) attributes {dimension_semantics = [#tpu.dimension_semantics<arbitrary>], iteration_bounds = array<i64: 2>, scalar_prefetch = 0 : i64, scratch_operands = 2 : i64, tpu.core_type = #tpu.core_type<tc>, window_params = [{pipeline_mode = #tpu.pipeline_mode<synchronous>, transform_indices = @transform_0, window_bounds = array<i64: 16, 32>}, {pipeline_mode = #tpu.pipeline_mode<synchronous>, transform_indices = @transform_1, window_bounds = array<i64: 16, 32>}, {pipeline_mode = #tpu.pipeline_mode<synchronous>, transform_indices = @transform_2, window_bounds = array<i64: 2, 8, 8>}, {pipeline_mode = #tpu.pipeline_mode<synchronous>, transform_indices = @transform_3, window_bounds = array<i64: 2, 8, 8>}, {transform_indices = @transform_4, window_bounds = array<i64: 1, 8, 32, 32>}, {transform_indices = @transform_5, window_bounds = array<i64: 1, 32, 16>}, {transform_indices = @transform_6, window_bounds = array<i64: 1, 16, 32>}, {transform_indices = @transform_7, window_bounds = array<i64: 1, 16, 32>}, {pipeline_mode = #tpu.pipeline_mode<synchronous>, transform_indices = @transform_8, window_bounds = array<i64: 2, 32>}, {pipeline_mode = #tpu.pipeline_mode<synchronous>, transform_indices = @transform_9, window_bounds = array<i64: 16, 32>}]} {
    %c0_i32 = arith.constant 0 : i32
    %0 = arith.cmpi eq, %arg0, %c0_i32 : i32
    %1 = arith.extui %0 : i1 to i32
    %c0_i32_0 = arith.constant 0 : i32
    %2 = arith.cmpi ne, %1, %c0_i32_0 : i32
    scf.if %2 {
      %c0_205 = arith.constant 0 : index
      %c0_206 = arith.constant 0 : index
      %514 = vector.load %arg1[%c0_205, %c0_206] : memref<16x32xf32, #tpu.memory_space<vmem>>, vector<16x32xf32>
      %c0_207 = arith.constant 0 : index
      %c0_208 = arith.constant 0 : index
      %515 = vector.load %arg11[%c0_207, %c0_208] : memref<16x32xf32, #tpu.memory_space<vmem>>, vector<16x32xf32>
      tpu.vector_store %arg11[%c0_207, %c0_208], %514 {strides = array<i32>} : memref<16x32xf32, #tpu.memory_space<vmem>>, vector<16x32xf32>,
    } else {
    }
    %c0 = arith.constant 0 : index
    %c0_1 = arith.constant 0 : index
    %3 = vector.load %arg11[%c0, %c0_1] : memref<16x32xf32, #tpu.memory_space<vmem>>, vector<16x32xf32>
    %c0_2 = arith.constant 0 : index
    %c0_3 = arith.constant 0 : index
    %4 = vector.load %arg2[%c0_2, %c0_3] : memref<16x32xf32, #tpu.memory_space<vmem>>, vector<16x32xf32>
    %c0_4 = arith.constant 0 : index
    %c0_5 = arith.constant 0 : index
    %c0_6 = arith.constant 0 : index
    %5 = vector.load %arg3[%c0_4, %c0_5, %c0_6] : memref<2x8x8xbf16, #tpu.memory_space<vmem>>, vector<2x8x8xbf16>
    %c0_7 = arith.constant 0 : index
    %c0_8 = arith.constant 0 : index
    %c0_9 = arith.constant 0 : index
    %6 = vector.load %arg4[%c0_7, %c0_8, %c0_9] : memref<2x8x8xbf16, #tpu.memory_space<vmem>>, vector<2x8x8xbf16>
    %c0_10 = arith.constant 0 : index
    %c0_11 = arith.constant 0 : index
    %c0_12 = arith.constant 0 : index
    %7 = vector.load %arg8[%c0_10, %c0_11, %c0_12] : memref<1x16x32xf32, #tpu.memory_space<vmem>>, vector<1x16x32xf32>
    %8 = vector.shape_cast %7 : vector<1x16x32xf32> to vector<16x32xf32>
    %9 = vector.extract_strided_slice %8 {offsets = [10, 0], sizes = [1, 32], strides = [1, 1]} : vector<16x32xf32> to vector<1x32xf32>
    %10 = vector.extract_strided_slice %8 {offsets = [11, 0], sizes = [1, 32], strides = [1, 1]} : vector<16x32xf32> to vector<1x32xf32>
    %cst = arith.constant dense<0.000000e+00> : vector<16xf32>
    %11 = vector.multi_reduction <add>, %3, %cst [1] : vector<16x32xf32> to vector<16xf32>
    %12 = vector.shape_cast %11 : vector<16xf32> to vector<16x1xf32>
    %cst_13 = arith.constant 3.200000e+01 : f32
    %13 = vector.broadcast %cst_13 : f32 to vector<16x1xf32>
    %14 = arith.divf %12, %13 : vector<16x1xf32>
    %15 = vector.broadcast %14 : vector<16x1xf32> to vector<16x32xf32>
    %16 = arith.subf %3, %15 : vector<16x32xf32>
    %17 = arith.mulf %16, %16 : vector<16x32xf32>
    %cst_14 = arith.constant dense<0.000000e+00> : vector<16xf32>
    %18 = vector.multi_reduction <add>, %17, %cst_14 [1] : vector<16x32xf32> to vector<16xf32>
    %19 = vector.shape_cast %18 : vector<16xf32> to vector<16x1xf32>
    %cst_15 = arith.constant 0.0322580636 : f32
    %20 = vector.broadcast %cst_15 : f32 to vector<16x1xf32>
    %21 = arith.mulf %19, %20 : vector<16x1xf32>
    %22 = math.sqrt %21 : vector<16x1xf32>
    %23 = vector.broadcast %14 : vector<16x1xf32> to vector<16x32xf32>
    %24 = arith.subf %3, %23 : vector<16x32xf32>
    %25 = vector.broadcast %9 : vector<1x32xf32> to vector<16x32xf32>
    %26 = arith.mulf %25, %24 : vector<16x32xf32>
    %cst_16 = arith.constant 9.99999997E-7 : f32
    %27 = vector.broadcast %cst_16 : f32 to vector<16x1xf32>
    %28 = arith.addf %22, %27 : vector<16x1xf32>
    %29 = vector.broadcast %28 : vector<16x1xf32> to vector<16x32xf32>
    %30 = arith.divf %26, %29 : vector<16x32xf32>
    %31 = vector.broadcast %10 : vector<1x32xf32> to vector<16x32xf32>
    %32 = arith.addf %30, %31 : vector<16x32xf32>
    %c0_17 = arith.constant 0 : index
    %c0_18 = arith.constant 0 : index
    %c0_19 = arith.constant 0 : index
    %c0_20 = arith.constant 0 : index
    %33 = vector.load %arg5[%c0_17, %c0_18, %c0_19, %c0_20] : memref<1x8x32x32xbf16, #tpu.memory_space<vmem>>, vector<1x1x32x32xbf16>
    %34 = vector.shape_cast %33 : vector<1x1x32x32xbf16> to vector<32x32xbf16>
    %c0_21 = arith.constant 0 : index
    %c1 = arith.constant 1 : index
    %c0_22 = arith.constant 0 : index
    %c0_23 = arith.constant 0 : index
    %35 = vector.load %arg5[%c0_21, %c1, %c0_22, %c0_23] : memref<1x8x32x32xbf16, #tpu.memory_space<vmem>>, vector<1x1x32x32xbf16>
    %36 = vector.shape_cast %35 : vector<1x1x32x32xbf16> to vector<32x32xbf16>
    %c0_24 = arith.constant 0 : index
    %c2 = arith.constant 2 : index
    %c0_25 = arith.constant 0 : index
    %c0_26 = arith.constant 0 : index
    %37 = vector.load %arg5[%c0_24, %c2, %c0_25, %c0_26] : memref<1x8x32x32xbf16, #tpu.memory_space<vmem>>, vector<1x1x32x32xbf16>
    %38 = vector.shape_cast %37 : vector<1x1x32x32xbf16> to vector<32x32xbf16>
    %c0_27 = arith.constant 0 : index
    %c3 = arith.constant 3 : index
    %c0_28 = arith.constant 0 : index
    %c0_29 = arith.constant 0 : index
    %39 = vector.load %arg5[%c0_27, %c3, %c0_28, %c0_29] : memref<1x8x32x32xbf16, #tpu.memory_space<vmem>>, vector<1x1x32x32xbf16>
    %40 = vector.shape_cast %39 : vector<1x1x32x32xbf16> to vector<32x32xbf16>
    %41 = vector.extract_strided_slice %8 {offsets = [0, 0], sizes = [1, 32], strides = [1, 1]} : vector<16x32xf32> to vector<1x32xf32>
    %42 = vector.extract_strided_slice %8 {offsets = [1, 0], sizes = [1, 32], strides = [1, 1]} : vector<16x32xf32> to vector<1x32xf32>
    %43 = vector.extract_strided_slice %8 {offsets = [2, 0], sizes = [1, 32], strides = [1, 1]} : vector<16x32xf32> to vector<1x32xf32>
    %44 = vector.extract_strided_slice %8 {offsets = [3, 0], sizes = [1, 32], strides = [1, 1]} : vector<16x32xf32> to vector<1x32xf32>
    %45 = arith.truncf %32 : vector<16x32xf32> to vector<16x32xbf16>
    %46 = arith.truncf %32 : vector<16x32xf32> to vector<16x32xbf16>
    %cst_30 = arith.constant dense<0.000000e+00> : vector<16x32xf32>
    %47 = tpu.matmul %45, %34, %cst_30 {dimension_numbers = #tpu.dot_dimension_numbers<[1], [0], [0], [1], [0, 0, 1, 1], [], []>} : vector<16x32xbf16>, vector<32x32xbf16>, vector<16x32xf32> -> vector<16x32xf32>
    %48 = vector.broadcast %41 : vector<1x32xf32> to vector<16x32xf32>
    %49 = arith.addf %47, %48 : vector<16x32xf32>
    %50 = arith.truncf %49 : vector<16x32xf32> to vector<16x32xbf16>
    %cst_31 = arith.constant dense<0.000000e+00> : vector<16x32xf32>
    %51 = tpu.matmul %46, %36, %cst_31 {dimension_numbers = #tpu.dot_dimension_numbers<[1], [0], [0], [1], [0, 0, 1, 1], [], []>} : vector<16x32xbf16>, vector<32x32xbf16>, vector<16x32xf32> -> vector<16x32xf32>
    %52 = vector.broadcast %42 : vector<1x32xf32> to vector<16x32xf32>
    %53 = arith.addf %51, %52 : vector<16x32xf32>
    %54 = arith.truncf %53 : vector<16x32xf32> to vector<16x32xbf16>
    %cst_32 = arith.constant dense<0.000000e+00> : vector<16x32xf32>
    %55 = tpu.matmul %46, %38, %cst_32 {dimension_numbers = #tpu.dot_dimension_numbers<[1], [0], [0], [1], [0, 0, 1, 1], [], []>} : vector<16x32xbf16>, vector<32x32xbf16>, vector<16x32xf32> -> vector<16x32xf32>
    %56 = vector.broadcast %43 : vector<1x32xf32> to vector<16x32xf32>
    %57 = arith.addf %55, %56 : vector<16x32xf32>
    %58 = arith.truncf %57 : vector<16x32xf32> to vector<16x32xbf16>
    %59 = vector.extract_strided_slice %50 {offsets = [0, 0], sizes = [8, 32], strides = [1, 1]} : vector<16x32xbf16> to vector<8x32xbf16>
    %60 = vector.extract_strided_slice %54 {offsets = [0, 0], sizes = [8, 32], strides = [1, 1]} : vector<16x32xbf16> to vector<8x32xbf16>
    %61 = vector.extract_strided_slice %58 {offsets = [0, 0], sizes = [8, 32], strides = [1, 1]} : vector<16x32xbf16> to vector<8x32xbf16>
    %62 = vector.extract_strided_slice %5 {offsets = [0, 0, 0], sizes = [1, 8, 8], strides = [1, 1, 1]} : vector<2x8x8xbf16> to vector<1x8x8xbf16>
    %63 = vector.shape_cast %62 : vector<1x8x8xbf16> to vector<8x8xbf16>
    %cst_33 = arith.constant 0.000000e+00 : bf16
    %64 = vector.broadcast %cst_33 : bf16 to vector<8x8xbf16>
    %65 = arith.cmpf one, %63, %64 : vector<8x8xbf16>
    %66 = vector.extract_strided_slice %59 {offsets = [0, 0], sizes = [8, 8], strides = [1, 1]} : vector<8x32xbf16> to vector<8x8xbf16>
    %67 = vector.extract_strided_slice %60 {offsets = [0, 0], sizes = [8, 8], strides = [1, 1]} : vector<8x32xbf16> to vector<8x8xbf16>
    %68 = vector.extract_strided_slice %61 {offsets = [0, 0], sizes = [8, 8], strides = [1, 1]} : vector<8x32xbf16> to vector<8x8xbf16>
    %cst_34 = arith.constant dense<0.000000e+00> : vector<8x8xf32>
    %69 = tpu.matmul %66, %67, %cst_34 {dimension_numbers = #tpu.dot_dimension_numbers<[1], [1], [0], [0], [0, 0, 1, 0], [], []>} : vector<8x8xbf16>, vector<8x8xbf16>, vector<8x8xf32> -> vector<8x8xf32>
    %cst_35 = arith.constant 0.353553385 : f32
    %70 = vector.broadcast %cst_35 : f32 to vector<8x8xf32>
    %71 = arith.mulf %69, %70 : vector<8x8xf32>
    %cst_36 = arith.constant -1.000000e+09 : f32
    %72 = vector.broadcast %cst_36 : f32 to vector<8x8xf32>
    %73 = arith.select %65, %72, %71 : vector<8x8xi1>, vector<8x8xf32>
    %cst_37 = arith.constant dense<0xFF800000> : vector<8xf32>
    %74 = vector.multi_reduction <maximumf>, %73, %cst_37 [1] : vector<8x8xf32> to vector<8xf32>
    %75 = vector.shape_cast %74 : vector<8xf32> to vector<8x1xf32>
    %76 = vector.broadcast %75 : vector<8x1xf32> to vector<8x8xf32>
    %77 = arith.subf %73, %76 : vector<8x8xf32>
    %78 = math.exp %77 : vector<8x8xf32>
    %cst_38 = arith.constant dense<0.000000e+00> : vector<8xf32>
    %79 = vector.multi_reduction <add>, %78, %cst_38 [1] : vector<8x8xf32> to vector<8xf32>
    %80 = vector.shape_cast %79 : vector<8xf32> to vector<8x1xf32>
    %81 = vector.broadcast %80 : vector<8x1xf32> to vector<8x8xf32>
    %82 = arith.divf %78, %81 : vector<8x8xf32>
    %83 = arith.truncf %82 : vector<8x8xf32> to vector<8x8xbf16>
    %cst_39 = arith.constant dense<0.000000e+00> : vector<8x8xf32>
    %84 = tpu.matmul %83, %68, %cst_39 {dimension_numbers = #tpu.dot_dimension_numbers<[1], [0], [0], [1], [0, 0, 1, 1], [], []>} : vector<8x8xbf16>, vector<8x8xbf16>, vector<8x8xf32> -> vector<8x8xf32>
    %c0_40 = arith.constant 0 : index
    %c0_41 = arith.constant 0 : index
    %85 = vector.load %arg12[%c0_40, %c0_41] : memref<16x32xf32, #tpu.memory_space<vmem>>, vector<8x8xf32>
    tpu.vector_store %arg12[%c0_40, %c0_41], %84 {strides = array<i32>} : memref<16x32xf32, #tpu.memory_space<vmem>>, vector<8x8xf32>,
    %86 = vector.extract_strided_slice %59 {offsets = [0, 8], sizes = [8, 8], strides = [1, 1]} : vector<8x32xbf16> to vector<8x8xbf16>
    %87 = vector.extract_strided_slice %60 {offsets = [0, 8], sizes = [8, 8], strides = [1, 1]} : vector<8x32xbf16> to vector<8x8xbf16>
    %88 = vector.extract_strided_slice %61 {offsets = [0, 8], sizes = [8, 8], strides = [1, 1]} : vector<8x32xbf16> to vector<8x8xbf16>
    %cst_42 = arith.constant dense<0.000000e+00> : vector<8x8xf32>
    %89 = tpu.matmul %86, %87, %cst_42 {dimension_numbers = #tpu.dot_dimension_numbers<[1], [1], [0], [0], [0, 0, 1, 0], [], []>} : vector<8x8xbf16>, vector<8x8xbf16>, vector<8x8xf32> -> vector<8x8xf32>
    %cst_43 = arith.constant 0.353553385 : f32
    %90 = vector.broadcast %cst_43 : f32 to vector<8x8xf32>
    %91 = arith.mulf %89, %90 : vector<8x8xf32>
    %cst_44 = arith.constant -1.000000e+09 : f32
    %92 = vector.broadcast %cst_44 : f32 to vector<8x8xf32>
    %93 = arith.select %65, %92, %91 : vector<8x8xi1>, vector<8x8xf32>
    %cst_45 = arith.constant dense<0xFF800000> : vector<8xf32>
    %94 = vector.multi_reduction <maximumf>, %93, %cst_45 [1] : vector<8x8xf32> to vector<8xf32>
    %95 = vector.shape_cast %94 : vector<8xf32> to vector<8x1xf32>
    %96 = vector.broadcast %95 : vector<8x1xf32> to vector<8x8xf32>
    %97 = arith.subf %93, %96 : vector<8x8xf32>
    %98 = math.exp %97 : vector<8x8xf32>
    %cst_46 = arith.constant dense<0.000000e+00> : vector<8xf32>
    %99 = vector.multi_reduction <add>, %98, %cst_46 [1] : vector<8x8xf32> to vector<8xf32>
    %100 = vector.shape_cast %99 : vector<8xf32> to vector<8x1xf32>
    %101 = vector.broadcast %100 : vector<8x1xf32> to vector<8x8xf32>
    %102 = arith.divf %98, %101 : vector<8x8xf32>
    %103 = arith.truncf %102 : vector<8x8xf32> to vector<8x8xbf16>
    %cst_47 = arith.constant dense<0.000000e+00> : vector<8x8xf32>
    %104 = tpu.matmul %103, %88, %cst_47 {dimension_numbers = #tpu.dot_dimension_numbers<[1], [0], [0], [1], [0, 0, 1, 1], [], []>} : vector<8x8xbf16>, vector<8x8xbf16>, vector<8x8xf32> -> vector<8x8xf32>
    %c0_48 = arith.constant 0 : index
    %c8 = arith.constant 8 : index
    %105 = vector.load %arg12[%c0_48, %c8] : memref<16x32xf32, #tpu.memory_space<vmem>>, vector<8x8xf32>
    tpu.vector_store %arg12[%c0_48, %c8], %104 {strides = array<i32>} : memref<16x32xf32, #tpu.memory_space<vmem>>, vector<8x8xf32>,
    %106 = vector.extract_strided_slice %59 {offsets = [0, 16], sizes = [8, 8], strides = [1, 1]} : vector<8x32xbf16> to vector<8x8xbf16>
    %107 = vector.extract_strided_slice %60 {offsets = [0, 16], sizes = [8, 8], strides = [1, 1]} : vector<8x32xbf16> to vector<8x8xbf16>
    %108 = vector.extract_strided_slice %61 {offsets = [0, 16], sizes = [8, 8], strides = [1, 1]} : vector<8x32xbf16> to vector<8x8xbf16>
    %cst_49 = arith.constant dense<0.000000e+00> : vector<8x8xf32>
    %109 = tpu.matmul %106, %107, %cst_49 {dimension_numbers = #tpu.dot_dimension_numbers<[1], [1], [0], [0], [0, 0, 1, 0], [], []>} : vector<8x8xbf16>, vector<8x8xbf16>, vector<8x8xf32> -> vector<8x8xf32>
    %cst_50 = arith.constant 0.353553385 : f32
    %110 = vector.broadcast %cst_50 : f32 to vector<8x8xf32>
    %111 = arith.mulf %109, %110 : vector<8x8xf32>
    %cst_51 = arith.constant -1.000000e+09 : f32
    %112 = vector.broadcast %cst_51 : f32 to vector<8x8xf32>
    %113 = arith.select %65, %112, %111 : vector<8x8xi1>, vector<8x8xf32>
    %cst_52 = arith.constant dense<0xFF800000> : vector<8xf32>
    %114 = vector.multi_reduction <maximumf>, %113, %cst_52 [1] : vector<8x8xf32> to vector<8xf32>
    %115 = vector.shape_cast %114 : vector<8xf32> to vector<8x1xf32>
    %116 = vector.broadcast %115 : vector<8x1xf32> to vector<8x8xf32>
    %117 = arith.subf %113, %116 : vector<8x8xf32>
    %118 = math.exp %117 : vector<8x8xf32>
    %cst_53 = arith.constant dense<0.000000e+00> : vector<8xf32>
    %119 = vector.multi_reduction <add>, %118, %cst_53 [1] : vector<8x8xf32> to vector<8xf32>
    %120 = vector.shape_cast %119 : vector<8xf32> to vector<8x1xf32>
    %121 = vector.broadcast %120 : vector<8x1xf32> to vector<8x8xf32>
    %122 = arith.divf %118, %121 : vector<8x8xf32>
    %123 = arith.truncf %122 : vector<8x8xf32> to vector<8x8xbf16>
    %cst_54 = arith.constant dense<0.000000e+00> : vector<8x8xf32>
    %124 = tpu.matmul %123, %108, %cst_54 {dimension_numbers = #tpu.dot_dimension_numbers<[1], [0], [0], [1], [0, 0, 1, 1], [], []>} : vector<8x8xbf16>, vector<8x8xbf16>, vector<8x8xf32> -> vector<8x8xf32>
    %c0_55 = arith.constant 0 : index
    %c16 = arith.constant 16 : index
    %125 = vector.load %arg12[%c0_55, %c16] : memref<16x32xf32, #tpu.memory_space<vmem>>, vector<8x8xf32>
    tpu.vector_store %arg12[%c0_55, %c16], %124 {strides = array<i32>} : memref<16x32xf32, #tpu.memory_space<vmem>>, vector<8x8xf32>,
    %126 = vector.extract_strided_slice %59 {offsets = [0, 24], sizes = [8, 8], strides = [1, 1]} : vector<8x32xbf16> to vector<8x8xbf16>
    %127 = vector.extract_strided_slice %60 {offsets = [0, 24], sizes = [8, 8], strides = [1, 1]} : vector<8x32xbf16> to vector<8x8xbf16>
    %128 = vector.extract_strided_slice %61 {offsets = [0, 24], sizes = [8, 8], strides = [1, 1]} : vector<8x32xbf16> to vector<8x8xbf16>
    %cst_56 = arith.constant dense<0.000000e+00> : vector<8x8xf32>
    %129 = tpu.matmul %126, %127, %cst_56 {dimension_numbers = #tpu.dot_dimension_numbers<[1], [1], [0], [0], [0, 0, 1, 0], [], []>} : vector<8x8xbf16>, vector<8x8xbf16>, vector<8x8xf32> -> vector<8x8xf32>
    %cst_57 = arith.constant 0.353553385 : f32
    %130 = vector.broadcast %cst_57 : f32 to vector<8x8xf32>
    %131 = arith.mulf %129, %130 : vector<8x8xf32>
    %cst_58 = arith.constant -1.000000e+09 : f32
    %132 = vector.broadcast %cst_58 : f32 to vector<8x8xf32>
    %133 = arith.select %65, %132, %131 : vector<8x8xi1>, vector<8x8xf32>
    %cst_59 = arith.constant dense<0xFF800000> : vector<8xf32>
    %134 = vector.multi_reduction <maximumf>, %133, %cst_59 [1] : vector<8x8xf32> to vector<8xf32>
    %135 = vector.shape_cast %134 : vector<8xf32> to vector<8x1xf32>
    %136 = vector.broadcast %135 : vector<8x1xf32> to vector<8x8xf32>
    %137 = arith.subf %133, %136 : vector<8x8xf32>
    %138 = math.exp %137 : vector<8x8xf32>
    %cst_60 = arith.constant dense<0.000000e+00> : vector<8xf32>
    %139 = vector.multi_reduction <add>, %138, %cst_60 [1] : vector<8x8xf32> to vector<8xf32>
    %140 = vector.shape_cast %139 : vector<8xf32> to vector<8x1xf32>
    %141 = vector.broadcast %140 : vector<8x1xf32> to vector<8x8xf32>
    %142 = arith.divf %138, %141 : vector<8x8xf32>
    %143 = arith.truncf %142 : vector<8x8xf32> to vector<8x8xbf16>
    %cst_61 = arith.constant dense<0.000000e+00> : vector<8x8xf32>
    %144 = tpu.matmul %143, %128, %cst_61 {dimension_numbers = #tpu.dot_dimension_numbers<[1], [0], [0], [1], [0, 0, 1, 1], [], []>} : vector<8x8xbf16>, vector<8x8xbf16>, vector<8x8xf32> -> vector<8x8xf32>
    %c0_62 = arith.constant 0 : index
    %c24 = arith.constant 24 : index
    %145 = vector.load %arg12[%c0_62, %c24] : memref<16x32xf32, #tpu.memory_space<vmem>>, vector<8x8xf32>
    tpu.vector_store %arg12[%c0_62, %c24], %144 {strides = array<i32>} : memref<16x32xf32, #tpu.memory_space<vmem>>, vector<8x8xf32>,
    %146 = vector.extract_strided_slice %50 {offsets = [8, 0], sizes = [8, 32], strides = [1, 1]} : vector<16x32xbf16> to vector<8x32xbf16>
    %147 = vector.extract_strided_slice %54 {offsets = [8, 0], sizes = [8, 32], strides = [1, 1]} : vector<16x32xbf16> to vector<8x32xbf16>
    %148 = vector.extract_strided_slice %58 {offsets = [8, 0], sizes = [8, 32], strides = [1, 1]} : vector<16x32xbf16> to vector<8x32xbf16>
    %149 = vector.extract_strided_slice %5 {offsets = [1, 0, 0], sizes = [1, 8, 8], strides = [1, 1, 1]} : vector<2x8x8xbf16> to vector<1x8x8xbf16>
    %150 = vector.shape_cast %149 : vector<1x8x8xbf16> to vector<8x8xbf16>
    %cst_63 = arith.constant 0.000000e+00 : bf16
    %151 = vector.broadcast %cst_63 : bf16 to vector<8x8xbf16>
    %152 = arith.cmpf one, %150, %151 : vector<8x8xbf16>
    %153 = vector.extract_strided_slice %146 {offsets = [0, 0], sizes = [8, 8], strides = [1, 1]} : vector<8x32xbf16> to vector<8x8xbf16>
    %154 = vector.extract_strided_slice %147 {offsets = [0, 0], sizes = [8, 8], strides = [1, 1]} : vector<8x32xbf16> to vector<8x8xbf16>
    %155 = vector.extract_strided_slice %148 {offsets = [0, 0], sizes = [8, 8], strides = [1, 1]} : vector<8x32xbf16> to vector<8x8xbf16>
    %cst_64 = arith.constant dense<0.000000e+00> : vector<8x8xf32>
    %156 = tpu.matmul %153, %154, %cst_64 {dimension_numbers = #tpu.dot_dimension_numbers<[1], [1], [0], [0], [0, 0, 1, 0], [], []>} : vector<8x8xbf16>, vector<8x8xbf16>, vector<8x8xf32> -> vector<8x8xf32>
    %cst_65 = arith.constant 0.353553385 : f32
    %157 = vector.broadcast %cst_65 : f32 to vector<8x8xf32>
    %158 = arith.mulf %156, %157 : vector<8x8xf32>
    %cst_66 = arith.constant -1.000000e+09 : f32
    %159 = vector.broadcast %cst_66 : f32 to vector<8x8xf32>
    %160 = arith.select %152, %159, %158 : vector<8x8xi1>, vector<8x8xf32>
    %cst_67 = arith.constant dense<0xFF800000> : vector<8xf32>
    %161 = vector.multi_reduction <maximumf>, %160, %cst_67 [1] : vector<8x8xf32> to vector<8xf32>
    %162 = vector.shape_cast %161 : vector<8xf32> to vector<8x1xf32>
    %163 = vector.broadcast %162 : vector<8x1xf32> to vector<8x8xf32>
    %164 = arith.subf %160, %163 : vector<8x8xf32>
    %165 = math.exp %164 : vector<8x8xf32>
    %cst_68 = arith.constant dense<0.000000e+00> : vector<8xf32>
    %166 = vector.multi_reduction <add>, %165, %cst_68 [1] : vector<8x8xf32> to vector<8xf32>
    %167 = vector.shape_cast %166 : vector<8xf32> to vector<8x1xf32>
    %168 = vector.broadcast %167 : vector<8x1xf32> to vector<8x8xf32>
    %169 = arith.divf %165, %168 : vector<8x8xf32>
    %170 = arith.truncf %169 : vector<8x8xf32> to vector<8x8xbf16>
    %cst_69 = arith.constant dense<0.000000e+00> : vector<8x8xf32>
    %171 = tpu.matmul %170, %155, %cst_69 {dimension_numbers = #tpu.dot_dimension_numbers<[1], [0], [0], [1], [0, 0, 1, 1], [], []>} : vector<8x8xbf16>, vector<8x8xbf16>, vector<8x8xf32> -> vector<8x8xf32>
    %c8_70 = arith.constant 8 : index
    %c0_71 = arith.constant 0 : index
    %172 = vector.load %arg12[%c8_70, %c0_71] : memref<16x32xf32, #tpu.memory_space<vmem>>, vector<8x8xf32>
    tpu.vector_store %arg12[%c8_70, %c0_71], %171 {strides = array<i32>} : memref<16x32xf32, #tpu.memory_space<vmem>>, vector<8x8xf32>,
    %173 = vector.extract_strided_slice %146 {offsets = [0, 8], sizes = [8, 8], strides = [1, 1]} : vector<8x32xbf16> to vector<8x8xbf16>
    %174 = vector.extract_strided_slice %147 {offsets = [0, 8], sizes = [8, 8], strides = [1, 1]} : vector<8x32xbf16> to vector<8x8xbf16>
    %175 = vector.extract_strided_slice %148 {offsets = [0, 8], sizes = [8, 8], strides = [1, 1]} : vector<8x32xbf16> to vector<8x8xbf16>
    %cst_72 = arith.constant dense<0.000000e+00> : vector<8x8xf32>
    %176 = tpu.matmul %173, %174, %cst_72 {dimension_numbers = #tpu.dot_dimension_numbers<[1], [1], [0], [0], [0, 0, 1, 0], [], []>} : vector<8x8xbf16>, vector<8x8xbf16>, vector<8x8xf32> -> vector<8x8xf32>
    %cst_73 = arith.constant 0.353553385 : f32
    %177 = vector.broadcast %cst_73 : f32 to vector<8x8xf32>
    %178 = arith.mulf %176, %177 : vector<8x8xf32>
    %cst_74 = arith.constant -1.000000e+09 : f32
    %179 = vector.broadcast %cst_74 : f32 to vector<8x8xf32>
    %180 = arith.select %152, %179, %178 : vector<8x8xi1>, vector<8x8xf32>
    %cst_75 = arith.constant dense<0xFF800000> : vector<8xf32>
    %181 = vector.multi_reduction <maximumf>, %180, %cst_75 [1] : vector<8x8xf32> to vector<8xf32>
    %182 = vector.shape_cast %181 : vector<8xf32> to vector<8x1xf32>
    %183 = vector.broadcast %182 : vector<8x1xf32> to vector<8x8xf32>
    %184 = arith.subf %180, %183 : vector<8x8xf32>
    %185 = math.exp %184 : vector<8x8xf32>
    %cst_76 = arith.constant dense<0.000000e+00> : vector<8xf32>
    %186 = vector.multi_reduction <add>, %185, %cst_76 [1] : vector<8x8xf32> to vector<8xf32>
    %187 = vector.shape_cast %186 : vector<8xf32> to vector<8x1xf32>
    %188 = vector.broadcast %187 : vector<8x1xf32> to vector<8x8xf32>
    %189 = arith.divf %185, %188 : vector<8x8xf32>
    %190 = arith.truncf %189 : vector<8x8xf32> to vector<8x8xbf16>
    %cst_77 = arith.constant dense<0.000000e+00> : vector<8x8xf32>
    %191 = tpu.matmul %190, %175, %cst_77 {dimension_numbers = #tpu.dot_dimension_numbers<[1], [0], [0], [1], [0, 0, 1, 1], [], []>} : vector<8x8xbf16>, vector<8x8xbf16>, vector<8x8xf32> -> vector<8x8xf32>
    %c8_78 = arith.constant 8 : index
    %c8_79 = arith.constant 8 : index
    %192 = vector.load %arg12[%c8_78, %c8_79] : memref<16x32xf32, #tpu.memory_space<vmem>>, vector<8x8xf32>
    tpu.vector_store %arg12[%c8_78, %c8_79], %191 {strides = array<i32>} : memref<16x32xf32, #tpu.memory_space<vmem>>, vector<8x8xf32>,
    %193 = vector.extract_strided_slice %146 {offsets = [0, 16], sizes = [8, 8], strides = [1, 1]} : vector<8x32xbf16> to vector<8x8xbf16>
    %194 = vector.extract_strided_slice %147 {offsets = [0, 16], sizes = [8, 8], strides = [1, 1]} : vector<8x32xbf16> to vector<8x8xbf16>
    %195 = vector.extract_strided_slice %148 {offsets = [0, 16], sizes = [8, 8], strides = [1, 1]} : vector<8x32xbf16> to vector<8x8xbf16>
    %cst_80 = arith.constant dense<0.000000e+00> : vector<8x8xf32>
    %196 = tpu.matmul %193, %194, %cst_80 {dimension_numbers = #tpu.dot_dimension_numbers<[1], [1], [0], [0], [0, 0, 1, 0], [], []>} : vector<8x8xbf16>, vector<8x8xbf16>, vector<8x8xf32> -> vector<8x8xf32>
    %cst_81 = arith.constant 0.353553385 : f32
    %197 = vector.broadcast %cst_81 : f32 to vector<8x8xf32>
    %198 = arith.mulf %196, %197 : vector<8x8xf32>
    %cst_82 = arith.constant -1.000000e+09 : f32
    %199 = vector.broadcast %cst_82 : f32 to vector<8x8xf32>
    %200 = arith.select %152, %199, %198 : vector<8x8xi1>, vector<8x8xf32>
    %cst_83 = arith.constant dense<0xFF800000> : vector<8xf32>
    %201 = vector.multi_reduction <maximumf>, %200, %cst_83 [1] : vector<8x8xf32> to vector<8xf32>
    %202 = vector.shape_cast %201 : vector<8xf32> to vector<8x1xf32>
    %203 = vector.broadcast %202 : vector<8x1xf32> to vector<8x8xf32>
    %204 = arith.subf %200, %203 : vector<8x8xf32>
    %205 = math.exp %204 : vector<8x8xf32>
    %cst_84 = arith.constant dense<0.000000e+00> : vector<8xf32>
    %206 = vector.multi_reduction <add>, %205, %cst_84 [1] : vector<8x8xf32> to vector<8xf32>
    %207 = vector.shape_cast %206 : vector<8xf32> to vector<8x1xf32>
    %208 = vector.broadcast %207 : vector<8x1xf32> to vector<8x8xf32>
    %209 = arith.divf %205, %208 : vector<8x8xf32>
    %210 = arith.truncf %209 : vector<8x8xf32> to vector<8x8xbf16>
    %cst_85 = arith.constant dense<0.000000e+00> : vector<8x8xf32>
    %211 = tpu.matmul %210, %195, %cst_85 {dimension_numbers = #tpu.dot_dimension_numbers<[1], [0], [0], [1], [0, 0, 1, 1], [], []>} : vector<8x8xbf16>, vector<8x8xbf16>, vector<8x8xf32> -> vector<8x8xf32>
    %c8_86 = arith.constant 8 : index
    %c16_87 = arith.constant 16 : index
    %212 = vector.load %arg12[%c8_86, %c16_87] : memref<16x32xf32, #tpu.memory_space<vmem>>, vector<8x8xf32>
    tpu.vector_store %arg12[%c8_86, %c16_87], %211 {strides = array<i32>} : memref<16x32xf32, #tpu.memory_space<vmem>>, vector<8x8xf32>,
    %213 = vector.extract_strided_slice %146 {offsets = [0, 24], sizes = [8, 8], strides = [1, 1]} : vector<8x32xbf16> to vector<8x8xbf16>
    %214 = vector.extract_strided_slice %147 {offsets = [0, 24], sizes = [8, 8], strides = [1, 1]} : vector<8x32xbf16> to vector<8x8xbf16>
    %215 = vector.extract_strided_slice %148 {offsets = [0, 24], sizes = [8, 8], strides = [1, 1]} : vector<8x32xbf16> to vector<8x8xbf16>
    %cst_88 = arith.constant dense<0.000000e+00> : vector<8x8xf32>
    %216 = tpu.matmul %213, %214, %cst_88 {dimension_numbers = #tpu.dot_dimension_numbers<[1], [1], [0], [0], [0, 0, 1, 0], [], []>} : vector<8x8xbf16>, vector<8x8xbf16>, vector<8x8xf32> -> vector<8x8xf32>
    %cst_89 = arith.constant 0.353553385 : f32
    %217 = vector.broadcast %cst_89 : f32 to vector<8x8xf32>
    %218 = arith.mulf %216, %217 : vector<8x8xf32>
    %cst_90 = arith.constant -1.000000e+09 : f32
    %219 = vector.broadcast %cst_90 : f32 to vector<8x8xf32>
    %220 = arith.select %152, %219, %218 : vector<8x8xi1>, vector<8x8xf32>
    %cst_91 = arith.constant dense<0xFF800000> : vector<8xf32>
    %221 = vector.multi_reduction <maximumf>, %220, %cst_91 [1] : vector<8x8xf32> to vector<8xf32>
    %222 = vector.shape_cast %221 : vector<8xf32> to vector<8x1xf32>
    %223 = vector.broadcast %222 : vector<8x1xf32> to vector<8x8xf32>
    %224 = arith.subf %220, %223 : vector<8x8xf32>
    %225 = math.exp %224 : vector<8x8xf32>
    %cst_92 = arith.constant dense<0.000000e+00> : vector<8xf32>
    %226 = vector.multi_reduction <add>, %225, %cst_92 [1] : vector<8x8xf32> to vector<8xf32>
    %227 = vector.shape_cast %226 : vector<8xf32> to vector<8x1xf32>
    %228 = vector.broadcast %227 : vector<8x1xf32> to vector<8x8xf32>
    %229 = arith.divf %225, %228 : vector<8x8xf32>
    %230 = arith.truncf %229 : vector<8x8xf32> to vector<8x8xbf16>
    %cst_93 = arith.constant dense<0.000000e+00> : vector<8x8xf32>
    %231 = tpu.matmul %230, %215, %cst_93 {dimension_numbers = #tpu.dot_dimension_numbers<[1], [0], [0], [1], [0, 0, 1, 1], [], []>} : vector<8x8xbf16>, vector<8x8xbf16>, vector<8x8xf32> -> vector<8x8xf32>
    %c8_94 = arith.constant 8 : index
    %c24_95 = arith.constant 24 : index
    %232 = vector.load %arg12[%c8_94, %c24_95] : memref<16x32xf32, #tpu.memory_space<vmem>>, vector<8x8xf32>
    tpu.vector_store %arg12[%c8_94, %c24_95], %231 {strides = array<i32>} : memref<16x32xf32, #tpu.memory_space<vmem>>, vector<8x8xf32>,
    %c0_96 = arith.constant 0 : index
    %c0_97 = arith.constant 0 : index
    %233 = vector.load %arg12[%c0_96, %c0_97] : memref<16x32xf32, #tpu.memory_space<vmem>>, vector<16x32xf32>
    %234 = arith.truncf %233 : vector<16x32xf32> to vector<16x32xbf16>
    %cst_98 = arith.constant dense<0.000000e+00> : vector<16x32xf32>
    %235 = tpu.matmul %234, %40, %cst_98 {dimension_numbers = #tpu.dot_dimension_numbers<[1], [0], [0], [1], [0, 0, 1, 1], [], []>} : vector<16x32xbf16>, vector<32x32xbf16>, vector<16x32xf32> -> vector<16x32xf32>
    %236 = vector.broadcast %44 : vector<1x32xf32> to vector<16x32xf32>
    %237 = arith.addf %235, %236 : vector<16x32xf32>
    %238 = arith.addf %3, %237 : vector<16x32xf32>
    %239 = vector.extract_strided_slice %8 {offsets = [12, 0], sizes = [1, 32], strides = [1, 1]} : vector<16x32xf32> to vector<1x32xf32>
    %240 = vector.extract_strided_slice %8 {offsets = [13, 0], sizes = [1, 32], strides = [1, 1]} : vector<16x32xf32> to vector<1x32xf32>
    %cst_99 = arith.constant dense<0.000000e+00> : vector<16xf32>
    %241 = vector.multi_reduction <add>, %238, %cst_99 [1] : vector<16x32xf32> to vector<16xf32>
    %242 = vector.shape_cast %241 : vector<16xf32> to vector<16x1xf32>
    %cst_100 = arith.constant 3.200000e+01 : f32
    %243 = vector.broadcast %cst_100 : f32 to vector<16x1xf32>
    %244 = arith.divf %242, %243 : vector<16x1xf32>
    %245 = vector.broadcast %244 : vector<16x1xf32> to vector<16x32xf32>
    %246 = arith.subf %238, %245 : vector<16x32xf32>
    %247 = arith.mulf %246, %246 : vector<16x32xf32>
    %cst_101 = arith.constant dense<0.000000e+00> : vector<16xf32>
    %248 = vector.multi_reduction <add>, %247, %cst_101 [1] : vector<16x32xf32> to vector<16xf32>
    %249 = vector.shape_cast %248 : vector<16xf32> to vector<16x1xf32>
    %cst_102 = arith.constant 0.0322580636 : f32
    %250 = vector.broadcast %cst_102 : f32 to vector<16x1xf32>
    %251 = arith.mulf %249, %250 : vector<16x1xf32>
    %252 = math.sqrt %251 : vector<16x1xf32>
    %253 = vector.broadcast %244 : vector<16x1xf32> to vector<16x32xf32>
    %254 = arith.subf %238, %253 : vector<16x32xf32>
    %255 = vector.broadcast %239 : vector<1x32xf32> to vector<16x32xf32>
    %256 = arith.mulf %255, %254 : vector<16x32xf32>
    %cst_103 = arith.constant 9.99999997E-7 : f32
    %257 = vector.broadcast %cst_103 : f32 to vector<16x1xf32>
    %258 = arith.addf %252, %257 : vector<16x1xf32>
    %259 = vector.broadcast %258 : vector<16x1xf32> to vector<16x32xf32>
    %260 = arith.divf %256, %259 : vector<16x32xf32>
    %261 = vector.broadcast %240 : vector<1x32xf32> to vector<16x32xf32>
    %262 = arith.addf %260, %261 : vector<16x32xf32>
    %c0_104 = arith.constant 0 : index
    %c4 = arith.constant 4 : index
    %c0_105 = arith.constant 0 : index
    %c0_106 = arith.constant 0 : index
    %263 = vector.load %arg5[%c0_104, %c4, %c0_105, %c0_106] : memref<1x8x32x32xbf16, #tpu.memory_space<vmem>>, vector<1x1x32x32xbf16>
    %264 = vector.shape_cast %263 : vector<1x1x32x32xbf16> to vector<32x32xbf16>
    %c0_107 = arith.constant 0 : index
    %c5 = arith.constant 5 : index
    %c0_108 = arith.constant 0 : index
    %c0_109 = arith.constant 0 : index
    %265 = vector.load %arg5[%c0_107, %c5, %c0_108, %c0_109] : memref<1x8x32x32xbf16, #tpu.memory_space<vmem>>, vector<1x1x32x32xbf16>
    %266 = vector.shape_cast %265 : vector<1x1x32x32xbf16> to vector<32x32xbf16>
    %c0_110 = arith.constant 0 : index
    %c6 = arith.constant 6 : index
    %c0_111 = arith.constant 0 : index
    %c0_112 = arith.constant 0 : index
    %267 = vector.load %arg5[%c0_110, %c6, %c0_111, %c0_112] : memref<1x8x32x32xbf16, #tpu.memory_space<vmem>>, vector<1x1x32x32xbf16>
    %268 = vector.shape_cast %267 : vector<1x1x32x32xbf16> to vector<32x32xbf16>
    %c0_113 = arith.constant 0 : index
    %c7 = arith.constant 7 : index
    %c0_114 = arith.constant 0 : index
    %c0_115 = arith.constant 0 : index
    %269 = vector.load %arg5[%c0_113, %c7, %c0_114, %c0_115] : memref<1x8x32x32xbf16, #tpu.memory_space<vmem>>, vector<1x1x32x32xbf16>
    %270 = vector.shape_cast %269 : vector<1x1x32x32xbf16> to vector<32x32xbf16>
    %271 = vector.extract_strided_slice %8 {offsets = [4, 0], sizes = [1, 32], strides = [1, 1]} : vector<16x32xf32> to vector<1x32xf32>
    %272 = vector.extract_strided_slice %8 {offsets = [5, 0], sizes = [1, 32], strides = [1, 1]} : vector<16x32xf32> to vector<1x32xf32>
    %273 = vector.extract_strided_slice %8 {offsets = [6, 0], sizes = [1, 32], strides = [1, 1]} : vector<16x32xf32> to vector<1x32xf32>
    %274 = vector.extract_strided_slice %8 {offsets = [7, 0], sizes = [1, 32], strides = [1, 1]} : vector<16x32xf32> to vector<1x32xf32>
    %275 = arith.truncf %262 : vector<16x32xf32> to vector<16x32xbf16>
    %276 = arith.truncf %4 : vector<16x32xf32> to vector<16x32xbf16>
    %cst_116 = arith.constant dense<0.000000e+00> : vector<16x32xf32>
    %277 = tpu.matmul %275, %264, %cst_116 {dimension_numbers = #tpu.dot_dimension_numbers<[1], [0], [0], [1], [0, 0, 1, 1], [], []>} : vector<16x32xbf16>, vector<32x32xbf16>, vector<16x32xf32> -> vector<16x32xf32>
    %278 = vector.broadcast %271 : vector<1x32xf32> to vector<16x32xf32>
    %279 = arith.addf %277, %278 : vector<16x32xf32>
    %280 = arith.truncf %279 : vector<16x32xf32> to vector<16x32xbf16>
    %cst_117 = arith.constant dense<0.000000e+00> : vector<16x32xf32>
    %281 = tpu.matmul %276, %266, %cst_117 {dimension_numbers = #tpu.dot_dimension_numbers<[1], [0], [0], [1], [0, 0, 1, 1], [], []>} : vector<16x32xbf16>, vector<32x32xbf16>, vector<16x32xf32> -> vector<16x32xf32>
    %282 = vector.broadcast %272 : vector<1x32xf32> to vector<16x32xf32>
    %283 = arith.addf %281, %282 : vector<16x32xf32>
    %284 = arith.truncf %283 : vector<16x32xf32> to vector<16x32xbf16>
    %cst_118 = arith.constant dense<0.000000e+00> : vector<16x32xf32>
    %285 = tpu.matmul %276, %268, %cst_118 {dimension_numbers = #tpu.dot_dimension_numbers<[1], [0], [0], [1], [0, 0, 1, 1], [], []>} : vector<16x32xbf16>, vector<32x32xbf16>, vector<16x32xf32> -> vector<16x32xf32>
    %286 = vector.broadcast %273 : vector<1x32xf32> to vector<16x32xf32>
    %287 = arith.addf %285, %286 : vector<16x32xf32>
    %288 = arith.truncf %287 : vector<16x32xf32> to vector<16x32xbf16>
    %289 = vector.extract_strided_slice %280 {offsets = [0, 0], sizes = [8, 32], strides = [1, 1]} : vector<16x32xbf16> to vector<8x32xbf16>
    %290 = vector.extract_strided_slice %284 {offsets = [0, 0], sizes = [8, 32], strides = [1, 1]} : vector<16x32xbf16> to vector<8x32xbf16>
    %291 = vector.extract_strided_slice %288 {offsets = [0, 0], sizes = [8, 32], strides = [1, 1]} : vector<16x32xbf16> to vector<8x32xbf16>
    %292 = vector.extract_strided_slice %6 {offsets = [0, 0, 0], sizes = [1, 8, 8], strides = [1, 1, 1]} : vector<2x8x8xbf16> to vector<1x8x8xbf16>
    %293 = vector.shape_cast %292 : vector<1x8x8xbf16> to vector<8x8xbf16>
    %cst_119 = arith.constant 0.000000e+00 : bf16
    %294 = vector.broadcast %cst_119 : bf16 to vector<8x8xbf16>
    %295 = arith.cmpf one, %293, %294 : vector<8x8xbf16>
    %296 = vector.extract_strided_slice %289 {offsets = [0, 0], sizes = [8, 8], strides = [1, 1]} : vector<8x32xbf16> to vector<8x8xbf16>
    %297 = vector.extract_strided_slice %290 {offsets = [0, 0], sizes = [8, 8], strides = [1, 1]} : vector<8x32xbf16> to vector<8x8xbf16>
    %298 = vector.extract_strided_slice %291 {offsets = [0, 0], sizes = [8, 8], strides = [1, 1]} : vector<8x32xbf16> to vector<8x8xbf16>
    %cst_120 = arith.constant dense<0.000000e+00> : vector<8x8xf32>
    %299 = tpu.matmul %296, %297, %cst_120 {dimension_numbers = #tpu.dot_dimension_numbers<[1], [1], [0], [0], [0, 0, 1, 0], [], []>} : vector<8x8xbf16>, vector<8x8xbf16>, vector<8x8xf32> -> vector<8x8xf32>
    %cst_121 = arith.constant 0.353553385 : f32
    %300 = vector.broadcast %cst_121 : f32 to vector<8x8xf32>
    %301 = arith.mulf %299, %300 : vector<8x8xf32>
    %cst_122 = arith.constant -1.000000e+09 : f32
    %302 = vector.broadcast %cst_122 : f32 to vector<8x8xf32>
    %303 = arith.select %295, %302, %301 : vector<8x8xi1>, vector<8x8xf32>
    %cst_123 = arith.constant dense<0xFF800000> : vector<8xf32>
    %304 = vector.multi_reduction <maximumf>, %303, %cst_123 [1] : vector<8x8xf32> to vector<8xf32>
    %305 = vector.shape_cast %304 : vector<8xf32> to vector<8x1xf32>
    %306 = vector.broadcast %305 : vector<8x1xf32> to vector<8x8xf32>
    %307 = arith.subf %303, %306 : vector<8x8xf32>
    %308 = math.exp %307 : vector<8x8xf32>
    %cst_124 = arith.constant dense<0.000000e+00> : vector<8xf32>
    %309 = vector.multi_reduction <add>, %308, %cst_124 [1] : vector<8x8xf32> to vector<8xf32>
    %310 = vector.shape_cast %309 : vector<8xf32> to vector<8x1xf32>
    %311 = vector.broadcast %310 : vector<8x1xf32> to vector<8x8xf32>
    %312 = arith.divf %308, %311 : vector<8x8xf32>
    %313 = arith.truncf %312 : vector<8x8xf32> to vector<8x8xbf16>
    %cst_125 = arith.constant dense<0.000000e+00> : vector<8x8xf32>
    %314 = tpu.matmul %313, %298, %cst_125 {dimension_numbers = #tpu.dot_dimension_numbers<[1], [0], [0], [1], [0, 0, 1, 1], [], []>} : vector<8x8xbf16>, vector<8x8xbf16>, vector<8x8xf32> -> vector<8x8xf32>
    %c0_126 = arith.constant 0 : index
    %c0_127 = arith.constant 0 : index
    %315 = vector.load %arg12[%c0_126, %c0_127] : memref<16x32xf32, #tpu.memory_space<vmem>>, vector<8x8xf32>
    tpu.vector_store %arg12[%c0_126, %c0_127], %314 {strides = array<i32>} : memref<16x32xf32, #tpu.memory_space<vmem>>, vector<8x8xf32>,
    %316 = vector.extract_strided_slice %289 {offsets = [0, 8], sizes = [8, 8], strides = [1, 1]} : vector<8x32xbf16> to vector<8x8xbf16>
    %317 = vector.extract_strided_slice %290 {offsets = [0, 8], sizes = [8, 8], strides = [1, 1]} : vector<8x32xbf16> to vector<8x8xbf16>
    %318 = vector.extract_strided_slice %291 {offsets = [0, 8], sizes = [8, 8], strides = [1, 1]} : vector<8x32xbf16> to vector<8x8xbf16>
    %cst_128 = arith.constant dense<0.000000e+00> : vector<8x8xf32>
    %319 = tpu.matmul %316, %317, %cst_128 {dimension_numbers = #tpu.dot_dimension_numbers<[1], [1], [0], [0], [0, 0, 1, 0], [], []>} : vector<8x8xbf16>, vector<8x8xbf16>, vector<8x8xf32> -> vector<8x8xf32>
    %cst_129 = arith.constant 0.353553385 : f32
    %320 = vector.broadcast %cst_129 : f32 to vector<8x8xf32>
    %321 = arith.mulf %319, %320 : vector<8x8xf32>
    %cst_130 = arith.constant -1.000000e+09 : f32
    %322 = vector.broadcast %cst_130 : f32 to vector<8x8xf32>
    %323 = arith.select %295, %322, %321 : vector<8x8xi1>, vector<8x8xf32>
    %cst_131 = arith.constant dense<0xFF800000> : vector<8xf32>
    %324 = vector.multi_reduction <maximumf>, %323, %cst_131 [1] : vector<8x8xf32> to vector<8xf32>
    %325 = vector.shape_cast %324 : vector<8xf32> to vector<8x1xf32>
    %326 = vector.broadcast %325 : vector<8x1xf32> to vector<8x8xf32>
    %327 = arith.subf %323, %326 : vector<8x8xf32>
    %328 = math.exp %327 : vector<8x8xf32>
    %cst_132 = arith.constant dense<0.000000e+00> : vector<8xf32>
    %329 = vector.multi_reduction <add>, %328, %cst_132 [1] : vector<8x8xf32> to vector<8xf32>
    %330 = vector.shape_cast %329 : vector<8xf32> to vector<8x1xf32>
    %331 = vector.broadcast %330 : vector<8x1xf32> to vector<8x8xf32>
    %332 = arith.divf %328, %331 : vector<8x8xf32>
    %333 = arith.truncf %332 : vector<8x8xf32> to vector<8x8xbf16>
    %cst_133 = arith.constant dense<0.000000e+00> : vector<8x8xf32>
    %334 = tpu.matmul %333, %318, %cst_133 {dimension_numbers = #tpu.dot_dimension_numbers<[1], [0], [0], [1], [0, 0, 1, 1], [], []>} : vector<8x8xbf16>, vector<8x8xbf16>, vector<8x8xf32> -> vector<8x8xf32>
    %c0_134 = arith.constant 0 : index
    %c8_135 = arith.constant 8 : index
    %335 = vector.load %arg12[%c0_134, %c8_135] : memref<16x32xf32, #tpu.memory_space<vmem>>, vector<8x8xf32>
    tpu.vector_store %arg12[%c0_134, %c8_135], %334 {strides = array<i32>} : memref<16x32xf32, #tpu.memory_space<vmem>>, vector<8x8xf32>,
    %336 = vector.extract_strided_slice %289 {offsets = [0, 16], sizes = [8, 8], strides = [1, 1]} : vector<8x32xbf16> to vector<8x8xbf16>
    %337 = vector.extract_strided_slice %290 {offsets = [0, 16], sizes = [8, 8], strides = [1, 1]} : vector<8x32xbf16> to vector<8x8xbf16>
    %338 = vector.extract_strided_slice %291 {offsets = [0, 16], sizes = [8, 8], strides = [1, 1]} : vector<8x32xbf16> to vector<8x8xbf16>
    %cst_136 = arith.constant dense<0.000000e+00> : vector<8x8xf32>
    %339 = tpu.matmul %336, %337, %cst_136 {dimension_numbers = #tpu.dot_dimension_numbers<[1], [1], [0], [0], [0, 0, 1, 0], [], []>} : vector<8x8xbf16>, vector<8x8xbf16>, vector<8x8xf32> -> vector<8x8xf32>
    %cst_137 = arith.constant 0.353553385 : f32
    %340 = vector.broadcast %cst_137 : f32 to vector<8x8xf32>
    %341 = arith.mulf %339, %340 : vector<8x8xf32>
    %cst_138 = arith.constant -1.000000e+09 : f32
    %342 = vector.broadcast %cst_138 : f32 to vector<8x8xf32>
    %343 = arith.select %295, %342, %341 : vector<8x8xi1>, vector<8x8xf32>
    %cst_139 = arith.constant dense<0xFF800000> : vector<8xf32>
    %344 = vector.multi_reduction <maximumf>, %343, %cst_139 [1] : vector<8x8xf32> to vector<8xf32>
    %345 = vector.shape_cast %344 : vector<8xf32> to vector<8x1xf32>
    %346 = vector.broadcast %345 : vector<8x1xf32> to vector<8x8xf32>
    %347 = arith.subf %343, %346 : vector<8x8xf32>
    %348 = math.exp %347 : vector<8x8xf32>
    %cst_140 = arith.constant dense<0.000000e+00> : vector<8xf32>
    %349 = vector.multi_reduction <add>, %348, %cst_140 [1] : vector<8x8xf32> to vector<8xf32>
    %350 = vector.shape_cast %349 : vector<8xf32> to vector<8x1xf32>
    %351 = vector.broadcast %350 : vector<8x1xf32> to vector<8x8xf32>
    %352 = arith.divf %348, %351 : vector<8x8xf32>
    %353 = arith.truncf %352 : vector<8x8xf32> to vector<8x8xbf16>
    %cst_141 = arith.constant dense<0.000000e+00> : vector<8x8xf32>
    %354 = tpu.matmul %353, %338, %cst_141 {dimension_numbers = #tpu.dot_dimension_numbers<[1], [0], [0], [1], [0, 0, 1, 1], [], []>} : vector<8x8xbf16>, vector<8x8xbf16>, vector<8x8xf32> -> vector<8x8xf32>
    %c0_142 = arith.constant 0 : index
    %c16_143 = arith.constant 16 : index
    %355 = vector.load %arg12[%c0_142, %c16_143] : memref<16x32xf32, #tpu.memory_space<vmem>>, vector<8x8xf32>
    tpu.vector_store %arg12[%c0_142, %c16_143], %354 {strides = array<i32>} : memref<16x32xf32, #tpu.memory_space<vmem>>, vector<8x8xf32>,
    %356 = vector.extract_strided_slice %289 {offsets = [0, 24], sizes = [8, 8], strides = [1, 1]} : vector<8x32xbf16> to vector<8x8xbf16>
    %357 = vector.extract_strided_slice %290 {offsets = [0, 24], sizes = [8, 8], strides = [1, 1]} : vector<8x32xbf16> to vector<8x8xbf16>
    %358 = vector.extract_strided_slice %291 {offsets = [0, 24], sizes = [8, 8], strides = [1, 1]} : vector<8x32xbf16> to vector<8x8xbf16>
    %cst_144 = arith.constant dense<0.000000e+00> : vector<8x8xf32>
    %359 = tpu.matmul %356, %357, %cst_144 {dimension_numbers = #tpu.dot_dimension_numbers<[1], [1], [0], [0], [0, 0, 1, 0], [], []>} : vector<8x8xbf16>, vector<8x8xbf16>, vector<8x8xf32> -> vector<8x8xf32>
    %cst_145 = arith.constant 0.353553385 : f32
    %360 = vector.broadcast %cst_145 : f32 to vector<8x8xf32>
    %361 = arith.mulf %359, %360 : vector<8x8xf32>
    %cst_146 = arith.constant -1.000000e+09 : f32
    %362 = vector.broadcast %cst_146 : f32 to vector<8x8xf32>
    %363 = arith.select %295, %362, %361 : vector<8x8xi1>, vector<8x8xf32>
    %cst_147 = arith.constant dense<0xFF800000> : vector<8xf32>
    %364 = vector.multi_reduction <maximumf>, %363, %cst_147 [1] : vector<8x8xf32> to vector<8xf32>
    %365 = vector.shape_cast %364 : vector<8xf32> to vector<8x1xf32>
    %366 = vector.broadcast %365 : vector<8x1xf32> to vector<8x8xf32>
    %367 = arith.subf %363, %366 : vector<8x8xf32>
    %368 = math.exp %367 : vector<8x8xf32>
    %cst_148 = arith.constant dense<0.000000e+00> : vector<8xf32>
    %369 = vector.multi_reduction <add>, %368, %cst_148 [1] : vector<8x8xf32> to vector<8xf32>
    %370 = vector.shape_cast %369 : vector<8xf32> to vector<8x1xf32>
    %371 = vector.broadcast %370 : vector<8x1xf32> to vector<8x8xf32>
    %372 = arith.divf %368, %371 : vector<8x8xf32>
    %373 = arith.truncf %372 : vector<8x8xf32> to vector<8x8xbf16>
    %cst_149 = arith.constant dense<0.000000e+00> : vector<8x8xf32>
    %374 = tpu.matmul %373, %358, %cst_149 {dimension_numbers = #tpu.dot_dimension_numbers<[1], [0], [0], [1], [0, 0, 1, 1], [], []>} : vector<8x8xbf16>, vector<8x8xbf16>, vector<8x8xf32> -> vector<8x8xf32>
    %c0_150 = arith.constant 0 : index
    %c24_151 = arith.constant 24 : index
    %375 = vector.load %arg12[%c0_150, %c24_151] : memref<16x32xf32, #tpu.memory_space<vmem>>, vector<8x8xf32>
    tpu.vector_store %arg12[%c0_150, %c24_151], %374 {strides = array<i32>} : memref<16x32xf32, #tpu.memory_space<vmem>>, vector<8x8xf32>,
    %376 = vector.extract_strided_slice %280 {offsets = [8, 0], sizes = [8, 32], strides = [1, 1]} : vector<16x32xbf16> to vector<8x32xbf16>
    %377 = vector.extract_strided_slice %284 {offsets = [8, 0], sizes = [8, 32], strides = [1, 1]} : vector<16x32xbf16> to vector<8x32xbf16>
    %378 = vector.extract_strided_slice %288 {offsets = [8, 0], sizes = [8, 32], strides = [1, 1]} : vector<16x32xbf16> to vector<8x32xbf16>
    %379 = vector.extract_strided_slice %6 {offsets = [1, 0, 0], sizes = [1, 8, 8], strides = [1, 1, 1]} : vector<2x8x8xbf16> to vector<1x8x8xbf16>
    %380 = vector.shape_cast %379 : vector<1x8x8xbf16> to vector<8x8xbf16>
    %cst_152 = arith.constant 0.000000e+00 : bf16
    %381 = vector.broadcast %cst_152 : bf16 to vector<8x8xbf16>
    %382 = arith.cmpf one, %380, %381 : vector<8x8xbf16>
    %383 = vector.extract_strided_slice %376 {offsets = [0, 0], sizes = [8, 8], strides = [1, 1]} : vector<8x32xbf16> to vector<8x8xbf16>
    %384 = vector.extract_strided_slice %377 {offsets = [0, 0], sizes = [8, 8], strides = [1, 1]} : vector<8x32xbf16> to vector<8x8xbf16>
    %385 = vector.extract_strided_slice %378 {offsets = [0, 0], sizes = [8, 8], strides = [1, 1]} : vector<8x32xbf16> to vector<8x8xbf16>
    %cst_153 = arith.constant dense<0.000000e+00> : vector<8x8xf32>
    %386 = tpu.matmul %383, %384, %cst_153 {dimension_numbers = #tpu.dot_dimension_numbers<[1], [1], [0], [0], [0, 0, 1, 0], [], []>} : vector<8x8xbf16>, vector<8x8xbf16>, vector<8x8xf32> -> vector<8x8xf32>
    %cst_154 = arith.constant 0.353553385 : f32
    %387 = vector.broadcast %cst_154 : f32 to vector<8x8xf32>
    %388 = arith.mulf %386, %387 : vector<8x8xf32>
    %cst_155 = arith.constant -1.000000e+09 : f32
    %389 = vector.broadcast %cst_155 : f32 to vector<8x8xf32>
    %390 = arith.select %382, %389, %388 : vector<8x8xi1>, vector<8x8xf32>
    %cst_156 = arith.constant dense<0xFF800000> : vector<8xf32>
    %391 = vector.multi_reduction <maximumf>, %390, %cst_156 [1] : vector<8x8xf32> to vector<8xf32>
    %392 = vector.shape_cast %391 : vector<8xf32> to vector<8x1xf32>
    %393 = vector.broadcast %392 : vector<8x1xf32> to vector<8x8xf32>
    %394 = arith.subf %390, %393 : vector<8x8xf32>
    %395 = math.exp %394 : vector<8x8xf32>
    %cst_157 = arith.constant dense<0.000000e+00> : vector<8xf32>
    %396 = vector.multi_reduction <add>, %395, %cst_157 [1] : vector<8x8xf32> to vector<8xf32>
    %397 = vector.shape_cast %396 : vector<8xf32> to vector<8x1xf32>
    %398 = vector.broadcast %397 : vector<8x1xf32> to vector<8x8xf32>
    %399 = arith.divf %395, %398 : vector<8x8xf32>
    %400 = arith.truncf %399 : vector<8x8xf32> to vector<8x8xbf16>
    %cst_158 = arith.constant dense<0.000000e+00> : vector<8x8xf32>
    %401 = tpu.matmul %400, %385, %cst_158 {dimension_numbers = #tpu.dot_dimension_numbers<[1], [0], [0], [1], [0, 0, 1, 1], [], []>} : vector<8x8xbf16>, vector<8x8xbf16>, vector<8x8xf32> -> vector<8x8xf32>
    %c8_159 = arith.constant 8 : index
    %c0_160 = arith.constant 0 : index
    %402 = vector.load %arg12[%c8_159, %c0_160] : memref<16x32xf32, #tpu.memory_space<vmem>>, vector<8x8xf32>
    tpu.vector_store %arg12[%c8_159, %c0_160], %401 {strides = array<i32>} : memref<16x32xf32, #tpu.memory_space<vmem>>, vector<8x8xf32>,
    %403 = vector.extract_strided_slice %376 {offsets = [0, 8], sizes = [8, 8], strides = [1, 1]} : vector<8x32xbf16> to vector<8x8xbf16>
    %404 = vector.extract_strided_slice %377 {offsets = [0, 8], sizes = [8, 8], strides = [1, 1]} : vector<8x32xbf16> to vector<8x8xbf16>
    %405 = vector.extract_strided_slice %378 {offsets = [0, 8], sizes = [8, 8], strides = [1, 1]} : vector<8x32xbf16> to vector<8x8xbf16>
    %cst_161 = arith.constant dense<0.000000e+00> : vector<8x8xf32>
    %406 = tpu.matmul %403, %404, %cst_161 {dimension_numbers = #tpu.dot_dimension_numbers<[1], [1], [0], [0], [0, 0, 1, 0], [], []>} : vector<8x8xbf16>, vector<8x8xbf16>, vector<8x8xf32> -> vector<8x8xf32>
    %cst_162 = arith.constant 0.353553385 : f32
    %407 = vector.broadcast %cst_162 : f32 to vector<8x8xf32>
    %408 = arith.mulf %406, %407 : vector<8x8xf32>
    %cst_163 = arith.constant -1.000000e+09 : f32
    %409 = vector.broadcast %cst_163 : f32 to vector<8x8xf32>
    %410 = arith.select %382, %409, %408 : vector<8x8xi1>, vector<8x8xf32>
    %cst_164 = arith.constant dense<0xFF800000> : vector<8xf32>
    %411 = vector.multi_reduction <maximumf>, %410, %cst_164 [1] : vector<8x8xf32> to vector<8xf32>
    %412 = vector.shape_cast %411 : vector<8xf32> to vector<8x1xf32>
    %413 = vector.broadcast %412 : vector<8x1xf32> to vector<8x8xf32>
    %414 = arith.subf %410, %413 : vector<8x8xf32>
    %415 = math.exp %414 : vector<8x8xf32>
    %cst_165 = arith.constant dense<0.000000e+00> : vector<8xf32>
    %416 = vector.multi_reduction <add>, %415, %cst_165 [1] : vector<8x8xf32> to vector<8xf32>
    %417 = vector.shape_cast %416 : vector<8xf32> to vector<8x1xf32>
    %418 = vector.broadcast %417 : vector<8x1xf32> to vector<8x8xf32>
    %419 = arith.divf %415, %418 : vector<8x8xf32>
    %420 = arith.truncf %419 : vector<8x8xf32> to vector<8x8xbf16>
    %cst_166 = arith.constant dense<0.000000e+00> : vector<8x8xf32>
    %421 = tpu.matmul %420, %405, %cst_166 {dimension_numbers = #tpu.dot_dimension_numbers<[1], [0], [0], [1], [0, 0, 1, 1], [], []>} : vector<8x8xbf16>, vector<8x8xbf16>, vector<8x8xf32> -> vector<8x8xf32>
    %c8_167 = arith.constant 8 : index
    %c8_168 = arith.constant 8 : index
    %422 = vector.load %arg12[%c8_167, %c8_168] : memref<16x32xf32, #tpu.memory_space<vmem>>, vector<8x8xf32>
    tpu.vector_store %arg12[%c8_167, %c8_168], %421 {strides = array<i32>} : memref<16x32xf32, #tpu.memory_space<vmem>>, vector<8x8xf32>,
    %423 = vector.extract_strided_slice %376 {offsets = [0, 16], sizes = [8, 8], strides = [1, 1]} : vector<8x32xbf16> to vector<8x8xbf16>
    %424 = vector.extract_strided_slice %377 {offsets = [0, 16], sizes = [8, 8], strides = [1, 1]} : vector<8x32xbf16> to vector<8x8xbf16>
    %425 = vector.extract_strided_slice %378 {offsets = [0, 16], sizes = [8, 8], strides = [1, 1]} : vector<8x32xbf16> to vector<8x8xbf16>
    %cst_169 = arith.constant dense<0.000000e+00> : vector<8x8xf32>
    %426 = tpu.matmul %423, %424, %cst_169 {dimension_numbers = #tpu.dot_dimension_numbers<[1], [1], [0], [0], [0, 0, 1, 0], [], []>} : vector<8x8xbf16>, vector<8x8xbf16>, vector<8x8xf32> -> vector<8x8xf32>
    %cst_170 = arith.constant 0.353553385 : f32
    %427 = vector.broadcast %cst_170 : f32 to vector<8x8xf32>
    %428 = arith.mulf %426, %427 : vector<8x8xf32>
    %cst_171 = arith.constant -1.000000e+09 : f32
    %429 = vector.broadcast %cst_171 : f32 to vector<8x8xf32>
    %430 = arith.select %382, %429, %428 : vector<8x8xi1>, vector<8x8xf32>
    %cst_172 = arith.constant dense<0xFF800000> : vector<8xf32>
    %431 = vector.multi_reduction <maximumf>, %430, %cst_172 [1] : vector<8x8xf32> to vector<8xf32>
    %432 = vector.shape_cast %431 : vector<8xf32> to vector<8x1xf32>
    %433 = vector.broadcast %432 : vector<8x1xf32> to vector<8x8xf32>
    %434 = arith.subf %430, %433 : vector<8x8xf32>
    %435 = math.exp %434 : vector<8x8xf32>
    %cst_173 = arith.constant dense<0.000000e+00> : vector<8xf32>
    %436 = vector.multi_reduction <add>, %435, %cst_173 [1] : vector<8x8xf32> to vector<8xf32>
    %437 = vector.shape_cast %436 : vector<8xf32> to vector<8x1xf32>
    %438 = vector.broadcast %437 : vector<8x1xf32> to vector<8x8xf32>
    %439 = arith.divf %435, %438 : vector<8x8xf32>
    %440 = arith.truncf %439 : vector<8x8xf32> to vector<8x8xbf16>
    %cst_174 = arith.constant dense<0.000000e+00> : vector<8x8xf32>
    %441 = tpu.matmul %440, %425, %cst_174 {dimension_numbers = #tpu.dot_dimension_numbers<[1], [0], [0], [1], [0, 0, 1, 1], [], []>} : vector<8x8xbf16>, vector<8x8xbf16>, vector<8x8xf32> -> vector<8x8xf32>
    %c8_175 = arith.constant 8 : index
    %c16_176 = arith.constant 16 : index
    %442 = vector.load %arg12[%c8_175, %c16_176] : memref<16x32xf32, #tpu.memory_space<vmem>>, vector<8x8xf32>
    tpu.vector_store %arg12[%c8_175, %c16_176], %441 {strides = array<i32>} : memref<16x32xf32, #tpu.memory_space<vmem>>, vector<8x8xf32>,
    %443 = vector.extract_strided_slice %376 {offsets = [0, 24], sizes = [8, 8], strides = [1, 1]} : vector<8x32xbf16> to vector<8x8xbf16>
    %444 = vector.extract_strided_slice %377 {offsets = [0, 24], sizes = [8, 8], strides = [1, 1]} : vector<8x32xbf16> to vector<8x8xbf16>
    %445 = vector.extract_strided_slice %378 {offsets = [0, 24], sizes = [8, 8], strides = [1, 1]} : vector<8x32xbf16> to vector<8x8xbf16>
    %cst_177 = arith.constant dense<0.000000e+00> : vector<8x8xf32>
    %446 = tpu.matmul %443, %444, %cst_177 {dimension_numbers = #tpu.dot_dimension_numbers<[1], [1], [0], [0], [0, 0, 1, 0], [], []>} : vector<8x8xbf16>, vector<8x8xbf16>, vector<8x8xf32> -> vector<8x8xf32>
    %cst_178 = arith.constant 0.353553385 : f32
    %447 = vector.broadcast %cst_178 : f32 to vector<8x8xf32>
    %448 = arith.mulf %446, %447 : vector<8x8xf32>
    %cst_179 = arith.constant -1.000000e+09 : f32
    %449 = vector.broadcast %cst_179 : f32 to vector<8x8xf32>
    %450 = arith.select %382, %449, %448 : vector<8x8xi1>, vector<8x8xf32>
    %cst_180 = arith.constant dense<0xFF800000> : vector<8xf32>
    %451 = vector.multi_reduction <maximumf>, %450, %cst_180 [1] : vector<8x8xf32> to vector<8xf32>
    %452 = vector.shape_cast %451 : vector<8xf32> to vector<8x1xf32>
    %453 = vector.broadcast %452 : vector<8x1xf32> to vector<8x8xf32>
    %454 = arith.subf %450, %453 : vector<8x8xf32>
    %455 = math.exp %454 : vector<8x8xf32>
    %cst_181 = arith.constant dense<0.000000e+00> : vector<8xf32>
    %456 = vector.multi_reduction <add>, %455, %cst_181 [1] : vector<8x8xf32> to vector<8xf32>
    %457 = vector.shape_cast %456 : vector<8xf32> to vector<8x1xf32>
    %458 = vector.broadcast %457 : vector<8x1xf32> to vector<8x8xf32>
    %459 = arith.divf %455, %458 : vector<8x8xf32>
    %460 = arith.truncf %459 : vector<8x8xf32> to vector<8x8xbf16>
    %cst_182 = arith.constant dense<0.000000e+00> : vector<8x8xf32>
    %461 = tpu.matmul %460, %445, %cst_182 {dimension_numbers = #tpu.dot_dimension_numbers<[1], [0], [0], [1], [0, 0, 1, 1], [], []>} : vector<8x8xbf16>, vector<8x8xbf16>, vector<8x8xf32> -> vector<8x8xf32>
    %c8_183 = arith.constant 8 : index
    %c24_184 = arith.constant 24 : index
    %462 = vector.load %arg12[%c8_183, %c24_184] : memref<16x32xf32, #tpu.memory_space<vmem>>, vector<8x8xf32>
    tpu.vector_store %arg12[%c8_183, %c24_184], %461 {strides = array<i32>} : memref<16x32xf32, #tpu.memory_space<vmem>>, vector<8x8xf32>,
    %c0_185 = arith.constant 0 : index
    %c0_186 = arith.constant 0 : index
    %463 = vector.load %arg12[%c0_185, %c0_186] : memref<16x32xf32, #tpu.memory_space<vmem>>, vector<16x32xf32>
    %464 = arith.truncf %463 : vector<16x32xf32> to vector<16x32xbf16>
    %cst_187 = arith.constant dense<0.000000e+00> : vector<16x32xf32>
    %465 = tpu.matmul %464, %270, %cst_187 {dimension_numbers = #tpu.dot_dimension_numbers<[1], [0], [0], [1], [0, 0, 1, 1], [], []>} : vector<16x32xbf16>, vector<32x32xbf16>, vector<16x32xf32> -> vector<16x32xf32>
    %466 = vector.broadcast %274 : vector<1x32xf32> to vector<16x32xf32>
    %467 = arith.addf %465, %466 : vector<16x32xf32>
    %468 = arith.addf %238, %467 : vector<16x32xf32>
    %469 = vector.extract_strided_slice %8 {offsets = [14, 0], sizes = [1, 32], strides = [1, 1]} : vector<16x32xf32> to vector<1x32xf32>
    %470 = vector.extract_strided_slice %8 {offsets = [15, 0], sizes = [1, 32], strides = [1, 1]} : vector<16x32xf32> to vector<1x32xf32>
    %cst_188 = arith.constant dense<0.000000e+00> : vector<16xf32>
    %471 = vector.multi_reduction <add>, %468, %cst_188 [1] : vector<16x32xf32> to vector<16xf32>
    %472 = vector.shape_cast %471 : vector<16xf32> to vector<16x1xf32>
    %cst_189 = arith.constant 3.200000e+01 : f32
    %473 = vector.broadcast %cst_189 : f32 to vector<16x1xf32>
    %474 = arith.divf %472, %473 : vector<16x1xf32>
    %475 = vector.broadcast %474 : vector<16x1xf32> to vector<16x32xf32>
    %476 = arith.subf %468, %475 : vector<16x32xf32>
    %477 = arith.mulf %476, %476 : vector<16x32xf32>
    %cst_190 = arith.constant dense<0.000000e+00> : vector<16xf32>
    %478 = vector.multi_reduction <add>, %477, %cst_190 [1] : vector<16x32xf32> to vector<16xf32>
    %479 = vector.shape_cast %478 : vector<16xf32> to vector<16x1xf32>
    %cst_191 = arith.constant 0.0322580636 : f32
    %480 = vector.broadcast %cst_191 : f32 to vector<16x1xf32>
    %481 = arith.mulf %479, %480 : vector<16x1xf32>
    %482 = math.sqrt %481 : vector<16x1xf32>
    %483 = vector.broadcast %474 : vector<16x1xf32> to vector<16x32xf32>
    %484 = arith.subf %468, %483 : vector<16x32xf32>
    %485 = vector.broadcast %469 : vector<1x32xf32> to vector<16x32xf32>
    %486 = arith.mulf %485, %484 : vector<16x32xf32>
    %cst_192 = arith.constant 9.99999997E-7 : f32
    %487 = vector.broadcast %cst_192 : f32 to vector<16x1xf32>
    %488 = arith.addf %482, %487 : vector<16x1xf32>
    %489 = vector.broadcast %488 : vector<16x1xf32> to vector<16x32xf32>
    %490 = arith.divf %486, %489 : vector<16x32xf32>
    %491 = vector.broadcast %470 : vector<1x32xf32> to vector<16x32xf32>
    %492 = arith.addf %490, %491 : vector<16x32xf32>
    %493 = arith.truncf %492 : vector<16x32xf32> to vector<16x32xbf16>
    %c0_193 = arith.constant 0 : index
    %c0_194 = arith.constant 0 : index
    %c0_195 = arith.constant 0 : index
    %494 = vector.load %arg6[%c0_193, %c0_194, %c0_195] : memref<1x32x16xbf16, #tpu.memory_space<vmem>>, vector<1x32x16xbf16>
    %495 = vector.shape_cast %494 : vector<1x32x16xbf16> to vector<32x16xbf16>
    %cst_196 = arith.constant dense<0.000000e+00> : vector<16x16xf32>
    %496 = tpu.matmul %493, %495, %cst_196 {dimension_numbers = #tpu.dot_dimension_numbers<[1], [0], [0], [1], [0, 0, 1, 1], [], []>} : vector<16x32xbf16>, vector<32x16xbf16>, vector<16x16xf32> -> vector<16x16xf32>
    %497 = vector.extract_strided_slice %8 {offsets = [8, 0], sizes = [1, 16], strides = [1, 1]} : vector<16x32xf32> to vector<1x16xf32>
    %498 = vector.broadcast %497 : vector<1x16xf32> to vector<16x16xf32>
    %499 = arith.addf %496, %498 : vector<16x16xf32>
    %cst_197 = arith.constant 0.000000e+00 : f32
    %500 = vector.broadcast %cst_197 : f32 to vector<16x16xf32>
    %501 = arith.maximumf %499, %500 : vector<16x16xf32>
    %502 = arith.truncf %501 : vector<16x16xf32> to vector<16x16xbf16>
    %c0_198 = arith.constant 0 : index
    %c0_199 = arith.constant 0 : index
    %c0_200 = arith.constant 0 : index
    %503 = vector.load %arg7[%c0_198, %c0_199, %c0_200] : memref<1x16x32xbf16, #tpu.memory_space<vmem>>, vector<1x16x32xbf16>
    %504 = vector.shape_cast %503 : vector<1x16x32xbf16> to vector<16x32xbf16>
    %cst_201 = arith.constant dense<0.000000e+00> : vector<16x32xf32>
    %505 = tpu.matmul %502, %504, %cst_201 {dimension_numbers = #tpu.dot_dimension_numbers<[1], [0], [0], [1], [0, 0, 1, 1], [], []>} : vector<16x16xbf16>, vector<16x32xbf16>, vector<16x32xf32> -> vector<16x32xf32>
    %506 = vector.extract_strided_slice %8 {offsets = [9, 0], sizes = [1, 32], strides = [1, 1]} : vector<16x32xf32> to vector<1x32xf32>
    %507 = vector.broadcast %506 : vector<1x32xf32> to vector<16x32xf32>
    %508 = arith.addf %505, %507 : vector<16x32xf32>
    %509 = arith.addf %468, %508 : vector<16x32xf32>
    %c0_202 = arith.constant 0 : index
    %c0_203 = arith.constant 0 : index
    %510 = vector.load %arg11[%c0_202, %c0_203] : memref<16x32xf32, #tpu.memory_space<vmem>>, vector<16x32xf32>
    tpu.vector_store %arg11[%c0_202, %c0_203], %509 {strides = array<i32>} : memref<16x32xf32, #tpu.memory_space<vmem>>, vector<16x32xf32>,
    %c1_i32 = arith.constant 1 : i32
    %511 = arith.cmpi eq, %arg0, %c1_i32 : i32
    %512 = arith.extui %511 : i1 to i32
    %c0_i32_204 = arith.constant 0 : i32
    %513 = arith.cmpi ne, %512, %c0_i32_204 : i32
    scf.if %513 {
      %c0_205 = arith.constant 0 : index
      %c0_206 = arith.constant 0 : index
      %514 = vector.load %arg9[%c0_205, %c0_206] : memref<2x32xf32, #tpu.memory_space<vmem>>, vector<1x32xf32>
      %c1_207 = arith.constant 1 : index
      %c0_208 = arith.constant 0 : index
      %515 = vector.load %arg9[%c1_207, %c0_208] : memref<2x32xf32, #tpu.memory_space<vmem>>, vector<1x32xf32>
      %cst_209 = arith.constant dense<0.000000e+00> : vector<16xf32>
      %516 = vector.multi_reduction <add>, %509, %cst_209 [1] : vector<16x32xf32> to vector<16xf32>
      %517 = vector.shape_cast %516 : vector<16xf32> to vector<16x1xf32>
      %cst_210 = arith.constant 3.200000e+01 : f32
      %518 = vector.broadcast %cst_210 : f32 to vector<16x1xf32>
      %519 = arith.divf %517, %518 : vector<16x1xf32>
      %520 = vector.broadcast %519 : vector<16x1xf32> to vector<16x32xf32>
      %521 = arith.subf %509, %520 : vector<16x32xf32>
      %522 = arith.mulf %521, %521 : vector<16x32xf32>
      %cst_211 = arith.constant dense<0.000000e+00> : vector<16xf32>
      %523 = vector.multi_reduction <add>, %522, %cst_211 [1] : vector<16x32xf32> to vector<16xf32>
      %524 = vector.shape_cast %523 : vector<16xf32> to vector<16x1xf32>
      %cst_212 = arith.constant 0.0322580636 : f32
      %525 = vector.broadcast %cst_212 : f32 to vector<16x1xf32>
      %526 = arith.mulf %524, %525 : vector<16x1xf32>
      %527 = math.sqrt %526 : vector<16x1xf32>
      %528 = vector.broadcast %519 : vector<16x1xf32> to vector<16x32xf32>
      %529 = arith.subf %509, %528 : vector<16x32xf32>
      %530 = vector.broadcast %514 : vector<1x32xf32> to vector<16x32xf32>
      %531 = arith.mulf %530, %529 : vector<16x32xf32>
      %cst_213 = arith.constant 9.99999997E-7 : f32
      %532 = vector.broadcast %cst_213 : f32 to vector<16x1xf32>
      %533 = arith.addf %527, %532 : vector<16x1xf32>
      %534 = vector.broadcast %533 : vector<16x1xf32> to vector<16x32xf32>
      %535 = arith.divf %531, %534 : vector<16x32xf32>
      %536 = vector.broadcast %515 : vector<1x32xf32> to vector<16x32xf32>
      %537 = arith.addf %535, %536 : vector<16x32xf32>
      %c0_214 = arith.constant 0 : index
      %c0_215 = arith.constant 0 : index
      %538 = vector.load %arg10[%c0_214, %c0_215] : memref<16x32xf32, #tpu.memory_space<vmem>>, vector<16x32xf32>
      tpu.vector_store %arg10[%c0_214, %c0_215], %537 {strides = array<i32>} : memref<16x32xf32, #tpu.memory_space<vmem>>, vector<16x32xf32>,
    } else {
    }
    return
  }
  func.func @transform_0(%arg0: i32) -> (i32, i32) {
    %c0_i32 = arith.constant 0 : i32
    %c0_i32_0 = arith.constant 0 : i32
    %c0_i32_1 = arith.constant 0 : i32
    return %c0_i32, %c0_i32_0 : i32, i32
  }
  func.func @transform_1(%arg0: i32) -> (i32, i32) {
    %c0_i32 = arith.constant 0 : i32
    %c0_i32_0 = arith.constant 0 : i32
    %c0_i32_1 = arith.constant 0 : i32
    return %c0_i32, %c0_i32_0 : i32, i32
  }
  func.func @transform_2(%arg0: i32) -> (i32, i32, i32) {
    %c0_i32 = arith.constant 0 : i32
    %c0_i32_0 = arith.constant 0 : i32
    %c0_i32_1 = arith.constant 0 : i32
    %c0_i32_2 = arith.constant 0 : i32
    return %c0_i32, %c0_i32_0, %c0_i32_1 : i32, i32, i32
  }
  func.func @transform_3(%arg0: i32) -> (i32, i32, i32) {
    %c0_i32 = arith.constant 0 : i32
    %c0_i32_0 = arith.constant 0 : i32
    %c0_i32_1 = arith.constant 0 : i32
    %c0_i32_2 = arith.constant 0 : i32
    return %c0_i32, %c0_i32_0, %c0_i32_1 : i32, i32, i32
  }
  func.func @transform_4(%arg0: i32) -> (i32, i32, i32, i32) {
    %c0_i32 = arith.constant 0 : i32
    %c0_i32_0 = arith.constant 0 : i32
    %c0_i32_1 = arith.constant 0 : i32
    %c0_i32_2 = arith.constant 0 : i32
    return %arg0, %c0_i32, %c0_i32_0, %c0_i32_1 : i32, i32, i32, i32
  }
  func.func @transform_5(%arg0: i32) -> (i32, i32, i32) {
    %c0_i32 = arith.constant 0 : i32
    %c0_i32_0 = arith.constant 0 : i32
    %c0_i32_1 = arith.constant 0 : i32
    return %arg0, %c0_i32, %c0_i32_0 : i32, i32, i32
  }
  func.func @transform_6(%arg0: i32) -> (i32, i32, i32) {
    %c0_i32 = arith.constant 0 : i32
    %c0_i32_0 = arith.constant 0 : i32
    %c0_i32_1 = arith.constant 0 : i32
    return %arg0, %c0_i32, %c0_i32_0 : i32, i32, i32
  }
  func.func @transform_7(%arg0: i32) -> (i32, i32, i32) {
    %c0_i32 = arith.constant 0 : i32
    %c0_i32_0 = arith.constant 0 : i32
    %c0_i32_1 = arith.constant 0 : i32
    return %arg0, %c0_i32, %c0_i32_0 : i32, i32, i32
  }
  func.func @transform_8(%arg0: i32) -> (i32, i32) {
    %c0_i32 = arith.constant 0 : i32
    %c0_i32_0 = arith.constant 0 : i32
    %c0_i32_1 = arith.constant 0 : i32
    return %c0_i32, %c0_i32_0 : i32, i32
  }
  func.func @transform_9(%arg0: i32) -> (i32, i32) {
    %c0_i32 = arith.constant 0 : i32
    %c0_i32_0 = arith.constant 0 : i32
    %c0_i32_1 = arith.constant 0 : i32
    return %c0_i32, %c0_i32_0 : i32, i32
  }
}

</mosaic_0001>

<llo_original>
// kernel: tpu_custom_call.1
$region0: #{tpu_custom_call.1}
  #allocation0 [shape = 'u32[]', space=smem, size = 0x4, offset = 0x4, fixed_abs, tag = 'smem constant byte address 0x4 - core index']
  #allocation1 [shape = 'u32[144,128]{1,0:T(1,128)}', space=vmem, size = 0x12000, scoped, tag = 'internal scratch']
  #allocation2 [shape = 'f32[16,32]{1,0:T(8,128)}', space=vmem, size = 0x2000, scoped, tag = 'scratch operand']
  #allocation3 [shape = 'f32[16,32]{1,0:T(8,128)}', space=vmem, size = 0x2000, scoped, tag = 'scratch operand']
  %s0 = inlined_call_operand.vmem [shape: f32[16,32], index: 0, kind: input, shape index: {}]
  %s1 = inlined_call_operand.hbm [shape: f32[16,32], index: 1, kind: input, shape index: {}]
  %s2 = inlined_call_operand.hbm [shape: bf16[2,8,8], index: 2, kind: input, shape index: {}]
  %s3 = inlined_call_operand.hbm [shape: bf16[2,8,8], index: 3, kind: input, shape index: {}]
  %s4 = inlined_call_operand.hbm [shape: bf16[2,8,32,32], index: 4, kind: input, shape index: {}]
  %s5 = inlined_call_operand.vmem [shape: bf16[2,32,16], index: 5, kind: input, shape index: {}]
  %s6 = inlined_call_operand.hbm [shape: bf16[2,16,32], index: 6, kind: input, shape index: {}]
  %s7 = inlined_call_operand.vmem [shape: f32[2,16,32], index: 7, kind: input, shape index: {}]
  %s8 = inlined_call_operand.vmem [shape: f32[2,32], index: 8, kind: input, shape index: {}]
  %s9 = inlined_call_operand.hbm [shape: f32[16,32], index: 9, kind: output, shape index: {}]
  %s10 = sld [smem:[#allocation0]]
  $region97: #{tpu_custom_call.1} parent=0
    _
  %s12 = ssub.s32 1, %s10
  %s13 = scalar_select 0, %s12, %s10
  $region1: #{tpu_custom_call.1} parent=0
    #allocation4 [shape = 'u8[8192]{0}', space=vmem, size = 0x2000, scoped, tag = 'input window, operand 1, single buffered']
    #allocation5 [shape = 's32[2]{0}', space=sflag, size = 0x8, scoped, tag = 'scoped memory for tpu_custom_call.1']
    #allocation6 [shape = 's32[2]{0}', space=sflag, size = 0x8, scoped, tag = 'scoped memory for tpu_custom_call.1']
    #allocation7 [shape = 'u8[4096]{0}', space=vmem, size = 0x1000, scoped, tag = 'input window, operand 2, single buffered']
    #allocation8 [shape = 's32[1]{0}', space=sflag, size = 0x4, scoped, tag = 'scoped memory for tpu_custom_call.1']
    #allocation9 [shape = 'u8[4096]{0}', space=vmem, size = 0x1000, scoped, tag = 'input window, operand 3, single buffered']
    #allocation10 [shape = 'u8[131072]{0}', space=vmem, size = 0x20000, scoped, tag = 'input window, operand 4']
    #allocation11 [shape = 's32[2]{0}', space=sflag, size = 0x8, scoped, tag = 'scoped memory for tpu_custom_call.1']
    #allocation12 [shape = 'u8[8192]{0}', space=vmem, size = 0x2000, scoped, tag = 'input window, operand 6']
    #allocation13 [shape = 'u8[8192]{0}', space=vmem, size = 0x2000, scoped, tag = 'output window, operand 0, single buffered']
    %14 = vsyncpa [#allocation5], 0
    %15 = vsyncpa [#allocation8], 0
    %16 = vsyncpa [#allocation11], 0
    %s17 = scalar_lea.sflag [#allocation11], 1
    %18 = vsyncpa %s17, 0
    %19 = vsyncpa [#allocation6], 0
    loop: start=0, step=1, limit=4
    $region2: #{tpu_custom_call.1} parent=1 // loop_pre_header
      _
    $region3: #{tpu_custom_call.1} parent=1 // loop_header
      %s21 = sphi 0, %s25
      %p22 = scmp.ge.s32.totalorder %s21, 4
      %s29 = sphi 0, %s29
      %s31 = sphi 0, %s29
      %s32 = sphi 0, %s31
      %s46 = sphi 0, %s32
      %s50 = sphi 0, %s50
      %s52 = sphi 0, %s50
      %s53 = sphi 0, %s52
      %s67 = sphi 0, %s53
      %s71 = sphi 0, %s71
      %s73 = sphi 0, %s71
      %s74 = sphi 0, %s73
      %s88 = sphi 0, %s74
      %s92 = sphi 0, %s92
      %s94 = sphi 0, %s92
      %s95 = sphi 0, %s94
      %s109 = sphi 0, %s95
      %s115 = sphi 0, %s117
      %s118 = sphi 0, %s115
      %s119 = sphi 0, %s118
      %s135 = sphi 0, %s119
      %s141 = sphi 0, %s143
      %s144 = sphi 0, %s141
      %s145 = sphi 0, %s144
      %s161 = sphi 0, %s145
      %s167 = sphi 0, %s169
      %s170 = sphi 0, %s167
      %s171 = sphi 0, %s170
      %s187 = sphi 0, %s171
      %s193 = sphi 0, %s195
      %s196 = sphi 0, %s193
      %s197 = sphi 0, %s196
      %s213 = sphi 0, %s197
      %s217 = sphi 0, %s217
      %s219 = sphi 0, %s217
      %s220 = sphi 0, %s219
      %s234 = sphi 0, %s220
      %s238 = sphi 0, %s238
      %s240 = sphi 0, %s238
      %s241 = sphi 0, %s240
      %s255 = sphi 0, %s241
    $region4: #{tpu_custom_call.1} parent=1 // loop_header_branch
      %24 = sbr.rel (%p22) target = $region8
    $region5: #{tpu_custom_call.1} parent=1 // loop_body
      %s26 = ssub.s32 %s21, 1
      %s27 = ssub.s32 %s21, 2
      %s28 = sadd.s32 %s21, 1
      %s30 = sadd.s32 %s29, 1
      %p33 = scmp.eq.s32.totalorder %s21, 1
      %p34 = scmp.ne.s32.totalorder %s29, %s31
      %p35 = scmp.eq.s32.totalorder %s21, 0
      %p36 = por %p34, %p35
      %p37 = scmp.ne.s32.totalorder %s29, %s31
      %p38 = scmp.eq.s32.totalorder %s26, 1
      %p39 = por %p37, %p38
      %p40 = scmp.ne.s32.totalorder %s31, %s32
      %p41 = scmp.eq.s32.totalorder %s26, 0
      %p42 = por %p40, %p41
      %p43 = scmp.ne.s32.totalorder %s31, %s32
      %p44 = scmp.eq.s32.totalorder %s27, 1
      %p45 = por %p43, %p44
      %p47 = scmp.ne.s32.totalorder %s32, %s46
      %p48 = scmp.eq.s32.totalorder %s27, 0
      %p49 = por %p47, %p48
      %s51 = sadd.s32 %s50, 1
      %p54 = scmp.eq.s32.totalorder %s21, 1
      %p55 = scmp.ne.s32.totalorder %s50, %s52
      %p56 = scmp.eq.s32.totalorder %s21, 0
      %p57 = por %p55, %p56
      %p58 = scmp.ne.s32.totalorder %s50, %s52
      %p59 = scmp.eq.s32.totalorder %s26, 1
      %p60 = por %p58, %p59
      %p61 = scmp.ne.s32.totalorder %s52, %s53
      %p62 = scmp.eq.s32.totalorder %s26, 0
      %p63 = por %p61, %p62
      %p64 = scmp.ne.s32.totalorder %s52, %s53
      %p65 = scmp.eq.s32.totalorder %s27, 1
      %p66 = por %p64, %p65
      %p68 = scmp.ne.s32.totalorder %s53, %s67
      %p69 = scmp.eq.s32.totalorder %s27, 0
      %p70 = por %p68, %p69
      %s72 = sadd.s32 %s71, 1
      %p75 = scmp.eq.s32.totalorder %s21, 1
      %p76 = scmp.ne.s32.totalorder %s71, %s73
      %p77 = scmp.eq.s32.totalorder %s21, 0
      %p78 = por %p76, %p77
      %p79 = scmp.ne.s32.totalorder %s71, %s73
      %p80 = scmp.eq.s32.totalorder %s26, 1
      %p81 = por %p79, %p80
      %p82 = scmp.ne.s32.totalorder %s73, %s74
      %p83 = scmp.eq.s32.totalorder %s26, 0
      %p84 = por %p82, %p83
      %p85 = scmp.ne.s32.totalorder %s73, %s74
      %p86 = scmp.eq.s32.totalorder %s27, 1
      %p87 = por %p85, %p86
      %p89 = scmp.ne.s32.totalorder %s74, %s88
      %p90 = scmp.eq.s32.totalorder %s27, 0
      %p91 = por %p89, %p90
      %s93 = sadd.s32 %s92, 1
      %p96 = scmp.eq.s32.totalorder %s21, 1
      %p97 = scmp.ne.s32.totalorder %s92, %s94
      %p98 = scmp.eq.s32.totalorder %s21, 0
      %p99 = por %p97, %p98
      %p100 = scmp.ne.s32.totalorder %s92, %s94
      %p101 = scmp.eq.s32.totalorder %s26, 1
      %p102 = por %p100, %p101
      %p103 = scmp.ne.s32.totalorder %s94, %s95
      %p104 = scmp.eq.s32.totalorder %s26, 0
      %p105 = por %p103, %p104
      %p106 = scmp.ne.s32.totalorder %s94, %s95
      %p107 = scmp.eq.s32.totalorder %s27, 1
      %p108 = por %p106, %p107
      %p110 = scmp.ne.s32.totalorder %s95, %s109
      %p111 = scmp.eq.s32.totalorder %s27, 0
      %p112 = por %p110, %p111
      %s113 = ssub.s32 %s21, %s28
      %p114 = scmp.eq.s32.totalorder %s113, 0
      %s116 = sadd.s32 %s115, 1
      %s117 = scalar_select %p114, %s115, %s116
      %p120 = pneg %p114
      %p121 = scmp.eq.s32.totalorder %s21, 1
      %p122 = por %p120, %p121
      %p123 = scmp.ne.s32.totalorder %s115, %s118
      %p124 = scmp.eq.s32.totalorder %s21, 0
      %p125 = por %p123, %p124
      %p126 = scmp.ne.s32.totalorder %s115, %s118
      %p127 = scmp.eq.s32.totalorder %s26, 1
      %p128 = por %p126, %p127
      %p129 = scmp.ne.s32.totalorder %s118, %s119
      %p130 = scmp.eq.s32.totalorder %s26, 0
      %p131 = por %p129, %p130
      %p132 = scmp.ne.s32.totalorder %s118, %s119
      %p133 = scmp.eq.s32.totalorder %s27, 1
      %p134 = por %p132, %p133
      %p136 = scmp.ne.s32.totalorder %s119, %s135
      %p137 = scmp.eq.s32.totalorder %s27, 0
      %p138 = por %p136, %p137
      %s139 = ssub.s32 %s21, %s28
      %p140 = scmp.eq.s32.totalorder %s139, 0
      %s142 = sadd.s32 %s141, 1
      %s143 = scalar_select %p140, %s141, %s142
      %p146 = pneg %p140
      %p147 = scmp.eq.s32.totalorder %s21, 1
      %p148 = por %p146, %p147
      %p149 = scmp.ne.s32.totalorder %s141, %s144
      %p150 = scmp.eq.s32.totalorder %s21, 0
      %p151 = por %p149, %p150
      %p152 = scmp.ne.s32.totalorder %s141, %s144
      %p153 = scmp.eq.s32.totalorder %s26, 1
      %p154 = por %p152, %p153
      %p155 = scmp.ne.s32.totalorder %s144, %s145
      %p156 = scmp.eq.s32.totalorder %s26, 0
      %p157 = por %p155, %p156
      %p158 = scmp.ne.s32.totalorder %s144, %s145
      %p159 = scmp.eq.s32.totalorder %s27, 1
      %p160 = por %p158, %p159
      %p162 = scmp.ne.s32.totalorder %s145, %s161
      %p163 = scmp.eq.s32.totalorder %s27, 0
      %p164 = por %p162, %p163
      %s165 = ssub.s32 %s21, %s28
      %p166 = scmp.eq.s32.totalorder %s165, 0
      %s168 = sadd.s32 %s167, 1
      %s169 = scalar_select %p166, %s167, %s168
      %p172 = pneg %p166
      %p173 = scmp.eq.s32.totalorder %s21, 1
      %p174 = por %p172, %p173
      %p175 = scmp.ne.s32.totalorder %s167, %s170
      %p176 = scmp.eq.s32.totalorder %s21, 0
      %p177 = por %p175, %p176
      %p178 = scmp.ne.s32.totalorder %s167, %s170
      %p179 = scmp.eq.s32.totalorder %s26, 1
      %p180 = por %p178, %p179
      %p181 = scmp.ne.s32.totalorder %s170, %s171
      %p182 = scmp.eq.s32.totalorder %s26, 0
      %p183 = por %p181, %p182
      %p184 = scmp.ne.s32.totalorder %s170, %s171
      %p185 = scmp.eq.s32.totalorder %s27, 1
      %p186 = por %p184, %p185
      %p188 = scmp.ne.s32.totalorder %s171, %s187
      %p189 = scmp.eq.s32.totalorder %s27, 0
      %p190 = por %p188, %p189
      %s191 = ssub.s32 %s21, %s28
      %p192 = scmp.eq.s32.totalorder %s191, 0
      %s194 = sadd.s32 %s193, 1
      %s195 = scalar_select %p192, %s193, %s194
      %p198 = pneg %p192
      %p199 = scmp.eq.s32.totalorder %s21, 1
      %p200 = por %p198, %p199
      %p201 = scmp.ne.s32.totalorder %s193, %s196
      %p202 = scmp.eq.s32.totalorder %s21, 0
      %p203 = por %p201, %p202
      %p204 = scmp.ne.s32.totalorder %s193, %s196
      %p205 = scmp.eq.s32.totalorder %s26, 1
      %p206 = por %p204, %p205
      %p207 = scmp.ne.s32.totalorder %s196, %s197
      %p208 = scmp.eq.s32.totalorder %s26, 0
      %p209 = por %p207, %p208
      %p210 = scmp.ne.s32.totalorder %s196, %s197
      %p211 = scmp.eq.s32.totalorder %s27, 1
      %p212 = por %p210, %p211
      %p214 = scmp.ne.s32.totalorder %s197, %s213
      %p215 = scmp.eq.s32.totalorder %s27, 0
      %p216 = por %p214, %p215
      %s218 = sadd.s32 %s217, 1
      %p221 = scmp.eq.s32.totalorder %s21, 1
      %p222 = scmp.ne.s32.totalorder %s217, %s219
      %p223 = scmp.eq.s32.totalorder %s21, 0
      %p224 = por %p222, %p223
      %p225 = scmp.ne.s32.totalorder %s217, %s219
      %p226 = scmp.eq.s32.totalorder %s26, 1
      %p227 = por %p225, %p226
      %p228 = scmp.ne.s32.totalorder %s219, %s220
      %p229 = scmp.eq.s32.totalorder %s26, 0
      %p230 = por %p228, %p229
      %p231 = scmp.ne.s32.totalorder %s219, %s220
      %p232 = scmp.eq.s32.totalorder %s27, 1
      %p233 = por %p231, %p232
      %p235 = scmp.ne.s32.totalorder %s220, %s234
      %p236 = scmp.eq.s32.totalorder %s27, 0
      %p237 = por %p235, %p236
      %s239 = sadd.s32 %s238, 1
      %p242 = scmp.eq.s32.totalorder %s21, 1
      %p243 = scmp.ne.s32.totalorder %s238, %s240
      %p244 = scmp.eq.s32.totalorder %s21, 0
      %p245 = por %p243, %p244
      %p246 = scmp.ne.s32.totalorder %s238, %s240
      %p247 = scmp.eq.s32.totalorder %s26, 1
      %p248 = por %p246, %p247
      %p249 = scmp.ne.s32.totalorder %s240, %s241
      %p250 = scmp.eq.s32.totalorder %s26, 0
      %p251 = por %p249, %p250
      %p252 = scmp.ne.s32.totalorder %s240, %s241
      %p253 = scmp.eq.s32.totalorder %s27, 1
      %p254 = por %p252, %p253
      %p256 = scmp.ne.s32.totalorder %s241, %s255
      %p257 = scmp.eq.s32.totalorder %s27, 0
      %p258 = por %p256, %p257
      %p259 = scmp.le.s32.totalorder 1, %s21
      %p260 = scmp.lt.s32.totalorder %s21, 3
      %p261 = pnand %p259, %p260
      %p262 = pneg %p261
      // Predicated region
      $region9: #{tpu_custom_call.1} parent=5 // pred_check
        _
      $region10: #{tpu_custom_call.1} parent=5 // pred_check_branch
        %264 = sbr.rel (%p261) target = $region12
      $region11: #{tpu_custom_call.1} parent=5 // pred_region
        %s265 = ssub.s32 %s21, 1
        // Predicated region
        $region13: #{tpu_custom_call.1} parent=11 // pred_check
          %p266 = pneg %p42
        $region14: #{tpu_custom_call.1} parent=11 // pred_check_branch
          %268 = sbr.rel (%p266) target = $region16
        $region15: #{tpu_custom_call.1} parent=11 // pred_region
          _
        $region16: #{tpu_custom_call.1} parent=11 // pred_fallthru
          _
        // Predicated region
        $region17: #{tpu_custom_call.1} parent=11 // pred_check
          %p269 = pneg %p63
        $region18: #{tpu_custom_call.1} parent=11 // pred_check_branch
          %271 = sbr.rel (%p269) target = $region20
        $region19: #{tpu_custom_call.1} parent=11 // pred_region
          %s273 = ssub.s32 256, 256
          %274 = vsyncadd [#allocation5], %s273
          %s275 = sshll.u32 [#allocation4], 4
          %s276 = int_to_ptr.vmem [resolvable:$true] %s275
          %281 = dma.hbm_to_vmem [thread:$0]  %s1, 256, %s276, [#allocation5], 128, 128, 8
        $region20: #{tpu_custom_call.1} parent=11 // pred_fallthru
          _
        // Predicated region
        $region21: #{tpu_custom_call.1} parent=11 // pred_check
          %p282 = pneg %p84
        $region22: #{tpu_custom_call.1} parent=11 // pred_check_branch
          %284 = sbr.rel (%p282) target = $region24
        $region23: #{tpu_custom_call.1} parent=11 // pred_region
          %s286 = ssub.s32 128, 128
          %287 = vsyncadd [#allocation8], %s286
          %s288 = sshll.u32 [#allocation7], 4
          %s289 = int_to_ptr.vmem [resolvable:$true] %s288
          %294 = dma.hbm_to_vmem [thread:$0]  %s2, 128, %s289, [#allocation8], 64, 64, 4
        $region24: #{tpu_custom_call.1} parent=11 // pred_fallthru
          _
        // Predicated region
        $region25: #{tpu_custom_call.1} parent=11 // pred_check
          %p295 = pneg %p105
        $region26: #{tpu_custom_call.1} parent=11 // pred_check_branch
          %297 = sbr.rel (%p295) target = $region28
        $region27: #{tpu_custom_call.1} parent=11 // pred_region
          %s299 = ssub.s32 128, 128
          %300 = vsyncadd [#allocation8], %s299
          %s301 = sshll.u32 [#allocation9], 4
          %s302 = int_to_ptr.vmem [resolvable:$true] %s301
          %307 = dma.hbm_to_vmem [thread:$0]  %s3, 128, %s302, [#allocation8], 64, 64, 4
        $region28: #{tpu_custom_call.1} parent=11 // pred_fallthru
          _
        // Predicated region
        $region29: #{tpu_custom_call.1} parent=11 // pred_check
          %p308 = pneg %p230
        $region30: #{tpu_custom_call.1} parent=11 // pred_check_branch
          %310 = sbr.rel (%p308) target = $region32
        $region31: #{tpu_custom_call.1} parent=11 // pred_region
          _
        $region32: #{tpu_custom_call.1} parent=11 // pred_fallthru
          _
      $region12: #{tpu_custom_call.1} parent=5 // pred_fallthru
        _
      %p311 = scmp.lt.s32.totalorder %s21, 2
      // Predicated region
      $region33: #{tpu_custom_call.1} parent=5 // pred_check
        %p312 = pneg %p311
      $region34: #{tpu_custom_call.1} parent=5 // pred_check_branch
        %314 = sbr.rel (%p312) target = $region36
      $region35: #{tpu_custom_call.1} parent=5 // pred_region
        // Predicated region
        $region37: #{tpu_custom_call.1} parent=35 // pred_check
          %p315 = pneg %p125
        $region38: #{tpu_custom_call.1} parent=35 // pred_check_branch
          %317 = sbr.rel (%p315) target = $region40
        $region39: #{tpu_custom_call.1} parent=35 // pred_region
          %s318 = sand.u32 %s21, 1
          %s319 = scalar_lea.sflag [#allocation11], %s318
          %s320 = sand.u32 %s115, 1
          %s321 = smul.addr %s320, 128
          %s322 = scalar_lea.vmem [#allocation10], %s321
          %s324 = ssub.s32 2048, 2048
          %325 = vsyncadd %s319, %s324
          %s326 = smul.addr %s21, 32
          %s327 = smul.addr %s326, 64
          %s328 = scalar_lea.hbm %s4, %s327
          %s329 = sshll.u32 %s322, 4
          %s330 = int_to_ptr.vmem [resolvable:$true] %s329
          %335 = dma.hbm_to_vmem [thread:$0]  %s328, 2048, %s330, %s319, 64, 64, 4
        $region40: #{tpu_custom_call.1} parent=35 // pred_fallthru
          _
        // Predicated region
        $region41: #{tpu_custom_call.1} parent=35 // pred_check
          %p336 = pneg %p151
        $region42: #{tpu_custom_call.1} parent=35 // pred_check_branch
          %338 = sbr.rel (%p336) target = $region44
        $region43: #{tpu_custom_call.1} parent=35 // pred_region
          %p339 = scmp.lt.s32.totalorder %s21, 1
          %s340 = scalar_select %p339, %s21, 1
          %s341 = smul.addr %s340, 4
          %s342 = smul.addr %s341, 4
          %s343 = scalar_lea.vmem %s5, %s342
        $region44: #{tpu_custom_call.1} parent=35 // pred_fallthru
          _
        // Predicated region
        $region45: #{tpu_custom_call.1} parent=35 // pred_check
          %p344 = pneg %p177
        $region46: #{tpu_custom_call.1} parent=35 // pred_check_branch
          %346 = sbr.rel (%p344) target = $region48
        $region47: #{tpu_custom_call.1} parent=35 // pred_region
          %s347 = sand.u32 %s21, 1
          %s348 = scalar_lea.sflag [#allocation11], %s347
          %s349 = sand.u32 %s167, 1
          %s350 = smul.addr %s349, 8
          %s351 = scalar_lea.vmem [#allocation12], %s350
          %s353 = ssub.s32 128, 128
          %354 = vsyncadd %s348, %s353
          %s355 = smul.addr %s21, 2
          %s356 = smul.addr %s355, 64
          %s357 = scalar_lea.hbm %s6, %s356
          %s358 = sshll.u32 %s351, 4
          %s359 = int_to_ptr.vmem [resolvable:$true] %s358
          %364 = dma.hbm_to_vmem [thread:$0]  %s357, 128, %s359, %s348, 64, 64, 4
        $region48: #{tpu_custom_call.1} parent=35 // pred_fallthru
          _
        // Predicated region
        $region49: #{tpu_custom_call.1} parent=35 // pred_check
          %p365 = pneg %p203
        $region50: #{tpu_custom_call.1} parent=35 // pred_check_branch
          %367 = sbr.rel (%p365) target = $region52
        $region51: #{tpu_custom_call.1} parent=35 // pred_region
          %p368 = scmp.lt.s32.totalorder %s21, 1
          %s369 = scalar_select %p368, %s21, 1
          %s370 = smul.addr %s369, 2
          %s371 = smul.addr %s370, 8
          %s372 = scalar_lea.vmem %s7, %s371
        $region52: #{tpu_custom_call.1} parent=35 // pred_fallthru
          _
      $region36: #{tpu_custom_call.1} parent=5 // pred_fallthru
        _
      %p373 = scmp.le.s32.totalorder 1, %s21
      %p374 = scmp.lt.s32.totalorder %s21, 3
      %p375 = pnand %p373, %p374
      %p376 = pneg %p375
      // Predicated region
      $region53: #{tpu_custom_call.1} parent=5 // pred_check
        _
      $region54: #{tpu_custom_call.1} parent=5 // pred_check_branch
        %378 = sbr.rel (%p375) target = $region56
      $region55: #{tpu_custom_call.1} parent=5 // pred_region
        %s379 = ssub.s32 %s21, 1
        // Predicated region
        $region57: #{tpu_custom_call.1} parent=55 // pred_check
          %p380 = pneg %p63
        $region58: #{tpu_custom_call.1} parent=55 // pred_check_branch
          %382 = sbr.rel (%p380) target = $region60
        $region59: #{tpu_custom_call.1} parent=55 // pred_region
          %383 = dma.done [#allocation5], 256
        $region60: #{tpu_custom_call.1} parent=55 // pred_fallthru
          _
        // Predicated region
        $region61: #{tpu_custom_call.1} parent=55 // pred_check
          %p384 = pneg %p84
        $region62: #{tpu_custom_call.1} parent=55 // pred_check_branch
          %386 = sbr.rel (%p384) target = $region64
        $region63: #{tpu_custom_call.1} parent=55 // pred_region
          %387 = dma.done [#allocation8], 128
        $region64: #{tpu_custom_call.1} parent=55 // pred_fallthru
          _
        // Predicated region
        $region65: #{tpu_custom_call.1} parent=55 // pred_check
          %p388 = pneg %p105
        $region66: #{tpu_custom_call.1} parent=55 // pred_check_branch
          %390 = sbr.rel (%p388) target = $region68
        $region67: #{tpu_custom_call.1} parent=55 // pred_region
          %391 = dma.done [#allocation8], 128
        $region68: #{tpu_custom_call.1} parent=55 // pred_fallthru
          _
        %s392 = sand.u32 %s26, 1
        %s393 = scalar_lea.sflag [#allocation11], %s392
        %s394 = sand.u32 %s118, 1
        %s395 = smul.addr %s394, 128
        %s396 = scalar_lea.vmem [#allocation10], %s395
        // Predicated region
        $region69: #{tpu_custom_call.1} parent=55 // pred_check
          %p397 = pneg %p131
        $region70: #{tpu_custom_call.1} parent=55 // pred_check_branch
          %399 = sbr.rel (%p397) target = $region72
        $region71: #{tpu_custom_call.1} parent=55 // pred_region
          %400 = dma.done %s393, 2048
        $region72: #{tpu_custom_call.1} parent=55 // pred_fallthru
          _
        %s401 = sand.u32 %s26, 1
        %s402 = scalar_lea.sflag [#allocation11], %s401
        %s403 = sand.u32 %s170, 1
        %s404 = smul.addr %s403, 8
        %s405 = scalar_lea.vmem [#allocation12], %s404
        // Predicated region
        $region73: #{tpu_custom_call.1} parent=55 // pred_check
          %p406 = pneg %p183
        $region74: #{tpu_custom_call.1} parent=55 // pred_check_branch
          %408 = sbr.rel (%p406) target = $region76
        $region75: #{tpu_custom_call.1} parent=55 // pred_region
          %409 = dma.done %s402, 128
        $region76: #{tpu_custom_call.1} parent=55 // pred_fallthru
          _
        %p410 = pneg %p42
        %p411 = pneg %p39
        %p412 = pneg %p63
        %p413 = pneg %p60
        %p414 = pneg %p84
        %p415 = pneg %p81
        %p416 = pneg %p105
        %p417 = pneg %p102
        %s418 = sand.u32 %s26, 1
        %s419 = scalar_lea.sflag [#allocation11], %s418
        %s420 = sand.u32 %s118, 1
        %s421 = smul.addr %s420, 128
        %s422 = scalar_lea.vmem [#allocation10], %s421
        %p423 = pneg %p131
        %p424 = pneg %p128
        %p425 = scmp.lt.s32.totalorder %s26, 1
        %s426 = scalar_select %p425, %s26, 1
        %s427 = smul.addr %s426, 4
        %s428 = smul.addr %s427, 4
        %s429 = scalar_lea.vmem %s5, %s428
        %p430 = pneg %p157
        %p431 = pneg %p154
        %s432 = sand.u32 %s26, 1
        %s433 = scalar_lea.sflag [#allocation11], %s432
        %s434 = sand.u32 %s170, 1
        %s435 = smul.addr %s434, 8
        %s436 = scalar_lea.vmem [#allocation12], %s435
        %p437 = pneg %p183
        %p438 = pneg %p180
        %p439 = scmp.lt.s32.totalorder %s26, 1
        %s440 = scalar_select %p439, %s26, 1
        %s441 = smul.addr %s440, 2
        %s442 = smul.addr %s441, 8
        %s443 = scalar_lea.vmem %s7, %s442
        %p444 = pneg %p209
        %p445 = pneg %p206
        %p446 = pneg %p230
        %p447 = pneg %p227
        %p448 = pneg %p251
        %p449 = pneg %p248
        %p450 = scmp.lt.s32.totalorder %s26, 1
        %s451 = scalar_select %p450, %s26, 1
        %s452 = smul.addr %s451, 4
        %s453 = smul.addr %s452, 4
        %s454 = scalar_lea.vmem %s5, %s453
        %p455 = scmp.lt.s32.totalorder %s26, 1
        %s456 = scalar_select %p455, %s26, 1
        %s457 = smul.addr %s456, 2
        %s458 = smul.addr %s457, 8
        %s459 = scalar_lea.vmem %s7, %s458
        %p463 = scmp.eq.s32.totalorder %s26, 0
        // Predicated region
        $region77: #{tpu_custom_call.1} parent=55 // pred_check
          %p464 = pneg %p463
        $region78: #{tpu_custom_call.1} parent=55 // pred_check_branch
          %466 = sbr.rel (%p464) target = $region80
        $region79: #{tpu_custom_call.1} parent=55 // pred_region
          %v467 = vld [vmem:[%s0] sm:$0xff]
          %v468 = vld [vmem:[%s0 + $0x8] sm:$0xff]
          %vm469 = vcmask 261120
          %470 = vst.msk [vmem:[#allocation2] sm:$0xff] %vm469, %v467
          %471 = vst.msk [vmem:[#allocation2 + $0x8] sm:$0xff] %vm469, %v468
        $region80: #{tpu_custom_call.1} parent=55 // pred_fallthru
          _
        %v472 = vld [vmem:[#allocation2] sm:$0xff]
        %v473 = vld [vmem:[#allocation2 + $0x8] sm:$0xff]
        %v474 = vld [vmem:[#allocation4] sm:$0xff]
        %v475 = vld [vmem:[#allocation4 + $0x8] sm:$0xff]
        %v476 = vld [vmem:[#allocation7] sm:$0xf]
        %v477 = vld [vmem:[#allocation7 + $0x4] sm:$0xf]
        %v478 = vld [vmem:[#allocation9] sm:$0xf]
        %v479 = vld [vmem:[#allocation9 + $0x4] sm:$0xf]
        %v480 = vld [vmem:[%s459] sm:$0xff]
        %v481 = vld [vmem:[%s459 + $0x8] sm:$0xff]
        %vm482 = vcmask 261120
        %v483 = vsel %vm482, %v472, 0.0
        %484 = vadd.xlane.f32.xlu0 %v483
        %v485 = vpop.xlane.xlu0 %484
        %v486 = vsel %vm482, %v473, 0.0
        %487 = vadd.xlane.f32.xlu0 %v486
        %v488 = vpop.xlane.xlu0 %487
        %v489 = vrcp.pop 32.0
        %v490 = vmul.f32 %v485, %v489
        %v491 = vmul.f32 %v488, %v489
        %v492 = vsub.f32 %v472, %v490
        %v493 = vsub.f32 %v473, %v491
        %v494 = vmul.f32 %v492, %v492
        %v495 = vmul.f32 %v493, %v493
        %v496 = vsel %vm482, %v494, 0.0
        %497 = vadd.xlane.f32.xlu0 %v496
        %v498 = vpop.xlane.xlu0 %497
        %v499 = vsel %vm482, %v495, 0.0
        %500 = vadd.xlane.f32.xlu0 %v499
        %v501 = vpop.xlane.xlu0 %500
        %v502 = vmul.f32 %v498, 0.032258064
        %v503 = vmul.f32 %v501, 0.032258064
        %v504 = vrsqrt.pop %v502
        %v505 = vmul.f32 %v502, %v504
        %vm506 = vcmp.eq.f32.partialorder %v502, inf
        %v507 = vsel %vm506, %v502, %v505
        %vm508 = vcmp.eq.f32.partialorder %v502, 0.0
        %v509 = vand.u32 %v502, 2147483648
        %v510 = vsel %vm508, %v509, %v507
        %v511 = vrsqrt.pop %v503
        %v512 = vmul.f32 %v503, %v511
        %vm513 = vcmp.eq.f32.partialorder %v503, inf
        %v514 = vsel %vm513, %v503, %v512
        %vm515 = vcmp.eq.f32.partialorder %v503, 0.0
        %v516 = vand.u32 %v503, 2147483648
        %v517 = vsel %vm515, %v516, %v514
        %v518 = vlaneseq
        %v519 = vshrl.u32 %v518, 7
        %v520 = vsub.s32 2, %v519
        %v521 = vrot.slane %v481, %v520
        %v522 = vmul.f32 %v521, %v492
        %v523 = vmul.f32 %v521, %v493
        %v524 = vadd.f32 %v510, 1e-06
        %v525 = vadd.f32 %v517, 1e-06
        %v526 = vrcp.pop %v524
        %v527 = vmul.f32 %v522, %v526
        %v528 = vrcp.pop %v525
        %v529 = vmul.f32 %v523, %v528
        %v530 = vlaneseq
        %v531 = vshrl.u32 %v530, 7
        %v532 = vsub.s32 3, %v531
        %v533 = vrot.slane %v481, %v532
        %v534 = vadd.f32 %v527, %v533
        %v535 = vadd.f32 %v529, %v533
        %v536 = vld [vmem:[%s396] sm:$0xf]
        %v537 = vld [vmem:[%s396 + $0x4] sm:$0xf]
        %v538 = vld [vmem:[%s396 + $0x8] sm:$0xf]
        %v539 = vld [vmem:[%s396 + $0xc] sm:$0xf]
        %s540 = scalar_lea.vmem %s396, 16 [#allocation10]
        %v541 = vld [vmem:[%s540] sm:$0xf]
        %v542 = vld [vmem:[%s540 + $0x4] sm:$0xf]
        %v543 = vld [vmem:[%s540 + $0x8] sm:$0xf]
        %v544 = vld [vmem:[%s540 + $0xc] sm:$0xf]
        %s545 = scalar_lea.vmem %s396, 32 [#allocation10]
        %v546 = vld [vmem:[%s545] sm:$0xf]
        %v547 = vld [vmem:[%s545 + $0x4] sm:$0xf]
        %v548 = vld [vmem:[%s545 + $0x8] sm:$0xf]
        %v549 = vld [vmem:[%s545 + $0xc] sm:$0xf]
        %s550 = scalar_lea.vmem %s396, 48 [#allocation10]
        %v551 = vld [vmem:[%s550] sm:$0xf]
        %v552 = vld [vmem:[%s550 + $0x4] sm:$0xf]
        %v553 = vld [vmem:[%s550 + $0x8] sm:$0xf]
        %v554 = vld [vmem:[%s550 + $0xc] sm:$0xf]
        %v555 = vpack.c.bf16 %v535, %v534
        %v556 = vlaneseq
        %v557 = vshrl.u32 %v556, 7
        %v558 = vsub.s32 0, %v557
        %v559 = vrot.slane %v480, %v558
        %v564 = vunpack.c.l.b16 %v536
        %v565 = vunpack.c.l.b16 %v537
        %v566 = vunpack.c.l.b16 %v538
        %v567 = vunpack.c.l.b16 %v539
        %v568 = vpack.c.b16 %v565, %v564
        %v569 = vpack.c.b16 %v567, %v566
        %v573 = vsel %vm482, %v555, 0
        %575 = vmatprep.subr.bf16.mxu0 0
        %576 = vmatpush1.bf16.msra.mxu0 %v568
        %577 = vmatprep.subr.bf16.mxu0 0
        %578 = vmatpush1.bf16.msra.mxu0 %v569
        %579 = vmatprep.subr.bf16.mxu0 0
        %580 = vmatpush1.bf16.msra.mxu0 0
        %581 = vmatprep.subr.bf16.mxu0 0
        %582 = vmatpush1.bf16.msra.mxu0 0
        %583 = vmatprep.subr.bf16.mxu0 0
        %584 = vmatpush1.bf16.msra.mxu0 0
        %585 = vmatprep.subr.bf16.mxu0 0
        %586 = vmatpush1.bf16.msra.mxu0 0
        %587 = vmatprep.subr.bf16.mxu0 0
        %588 = vmatpush1.bf16.msra.mxu0 0
        %589 = vmatprep.subr.bf16.mxu0 0
        %590 = vmatpush1.bf16.msra.mxu0 0
        %591 = vmatprep.subr.bf16.mxu0 0
        %592 = vmatpush1.bf16.msra.mxu0 0
        %593 = vmatprep.subr.bf16.mxu0 0
        %594 = vmatpush1.bf16.msra.mxu0 0
        %595 = vmatprep.subr.bf16.mxu0 0
        %596 = vmatpush1.bf16.msra.mxu0 0
        %597 = vmatprep.subr.bf16.mxu0 0
        %598 = vmatpush1.bf16.msra.mxu0 0
        %599 = vmatprep.subr.bf16.mxu0 0
        %600 = vmatpush1.bf16.msra.mxu0 0
        %601 = vmatprep.subr.bf16.mxu0 0
        %602 = vmatpush1.bf16.msra.mxu0 0
        %603 = vmatprep.subr.bf16.mxu0 0
        %604 = vmatpush1.bf16.msra.mxu0 0
        %605 = vmatprep.subr.bf16.mxu0 0
        %606 = vmatpush1.bf16.msra.mxu0 0
        %607 = vmatprep.mubr.bf16.mxu0 0
        %608 = vmatmul.mubr.bf16.gmra.mrb[0].mxu0 %v573
        %v609 = vpop.f32.mrb[0].mxu0
        %v610 = vadd.f32 %v559, %v609
        %v611 = vpop.f32.mrb[0].mxu0
        %v612 = vpop.f32.mrb[0].mxu0
        %v613 = vadd.f32 %v559, %v612
        %v614 = vpop.f32.mrb[0].mxu0
        %615 = vdwg.mxu0
        %v616 = vpack.c.bf16 %v613, %v610
        %v617 = vlaneseq
        %v618 = vshrl.u32 %v617, 7
        %v619 = vsub.s32 1, %v618
        %v620 = vrot.slane %v480, %v619
        %v625 = vunpack.c.l.b16 %v541
        %v626 = vunpack.c.l.b16 %v542
        %v627 = vunpack.c.l.b16 %v543
        %v628 = vunpack.c.l.b16 %v544
        %v629 = vpack.c.b16 %v626, %v625
        %v630 = vpack.c.b16 %v628, %v627
        %633 = vmatprep.subr.bf16.mxu0 0
        %634 = vmatpush1.bf16.msra.mxu0 %v629
        %635 = vmatprep.subr.bf16.mxu0 0
        %636 = vmatpush1.bf16.msra.mxu0 %v630
        %637 = vmatprep.subr.bf16.mxu0 0
        %638 = vmatpush1.bf16.msra.mxu0 0
        %639 = vmatprep.subr.bf16.mxu0 0
        %640 = vmatpush1.bf16.msra.mxu0 0
        %641 = vmatprep.subr.bf16.mxu0 0
        %642 = vmatpush1.bf16.msra.mxu0 0
        %643 = vmatprep.subr.bf16.mxu0 0
        %644 = vmatpush1.bf16.msra.mxu0 0
        %645 = vmatprep.subr.bf16.mxu0 0
        %646 = vmatpush1.bf16.msra.mxu0 0
        %647 = vmatprep.subr.bf16.mxu0 0
        %648 = vmatpush1.bf16.msra.mxu0 0
        %649 = vmatprep.subr.bf16.mxu0 0
        %650 = vmatpush1.bf16.msra.mxu0 0
        %651 = vmatprep.subr.bf16.mxu0 0
        %652 = vmatpush1.bf16.msra.mxu0 0
        %653 = vmatprep.subr.bf16.mxu0 0
        %654 = vmatpush1.bf16.msra.mxu0 0
        %655 = vmatprep.subr.bf16.mxu0 0
        %656 = vmatpush1.bf16.msra.mxu0 0
        %657 = vmatprep.subr.bf16.mxu0 0
        %658 = vmatpush1.bf16.msra.mxu0 0
        %659 = vmatprep.subr.bf16.mxu0 0
        %660 = vmatpush1.bf16.msra.mxu0 0
        %661 = vmatprep.subr.bf16.mxu0 0
        %662 = vmatpush1.bf16.msra.mxu0 0
        %663 = vmatprep.subr.bf16.mxu0 0
        %664 = vmatpush1.bf16.msra.mxu0 0
        %665 = vmatprep.mubr.bf16.mxu0 0
        %666 = vmatmul.mubr.bf16.gmra.mrb[0].mxu0 %v573
        %v667 = vpop.f32.mrb[0].mxu0
        %v668 = vadd.f32 %v620, %v667
        %v669 = vpop.f32.mrb[0].mxu0
        %v670 = vpop.f32.mrb[0].mxu0
        %v671 = vadd.f32 %v620, %v670
        %v672 = vpop.f32.mrb[0].mxu0
        %673 = vdwg.mxu0
        %v674 = vpack.c.bf16 %v671, %v668
        %v675 = vlaneseq
        %v676 = vshrl.u32 %v675, 7
        %v677 = vsub.s32 2, %v676
        %v678 = vrot.slane %v480, %v677
        %v683 = vunpack.c.l.b16 %v546
        %v684 = vunpack.c.l.b16 %v547
        %v685 = vunpack.c.l.b16 %v548
        %v686 = vunpack.c.l.b16 %v549
        %v687 = vpack.c.b16 %v684, %v683
        %v688 = vpack.c.b16 %v686, %v685
        %691 = vmatprep.subr.bf16.mxu0 0
        %692 = vmatpush1.bf16.msra.mxu0 %v687
        %693 = vmatprep.subr.bf16.mxu0 0
        %694 = vmatpush1.bf16.msra.mxu0 %v688
        %695 = vmatprep.subr.bf16.mxu0 0
        %696 = vmatpush1.bf16.msra.mxu0 0
        %697 = vmatprep.subr.bf16.mxu0 0
        %698 = vmatpush1.bf16.msra.mxu0 0
        %699 = vmatprep.subr.bf16.mxu0 0
        %700 = vmatpush1.bf16.msra.mxu0 0
        %701 = vmatprep.subr.bf16.mxu0 0
        %702 = vmatpush1.bf16.msra.mxu0 0
        %703 = vmatprep.subr.bf16.mxu0 0
        %704 = vmatpush1.bf16.msra.mxu0 0
        %705 = vmatprep.subr.bf16.mxu0 0
        %706 = vmatpush1.bf16.msra.mxu0 0
        %707 = vmatprep.subr.bf16.mxu0 0
        %708 = vmatpush1.bf16.msra.mxu0 0
        %709 = vmatprep.subr.bf16.mxu0 0
        %710 = vmatpush1.bf16.msra.mxu0 0
        %711 = vmatprep.subr.bf16.mxu0 0
        %712 = vmatpush1.bf16.msra.mxu0 0
        %713 = vmatprep.subr.bf16.mxu0 0
        %714 = vmatpush1.bf16.msra.mxu0 0
        %715 = vmatprep.subr.bf16.mxu0 0
        %716 = vmatpush1.bf16.msra.mxu0 0
        %717 = vmatprep.subr.bf16.mxu0 0
        %718 = vmatpush1.bf16.msra.mxu0 0
        %719 = vmatprep.subr.bf16.mxu0 0
        %720 = vmatpush1.bf16.msra.mxu0 0
        %721 = vmatprep.subr.bf16.mxu0 0
        %722 = vmatpush1.bf16.msra.mxu0 0
        %723 = vmatprep.mubr.bf16.mxu0 0
        %724 = vmatmul.mubr.bf16.gmra.mrb[0].mxu0 %v573
        %v725 = vpop.f32.mrb[0].mxu0
        %v726 = vadd.f32 %v678, %v725
        %v727 = vpop.f32.mrb[0].mxu0
        %v728 = vpop.f32.mrb[0].mxu0
        %v729 = vadd.f32 %v678, %v728
        %v730 = vpop.f32.mrb[0].mxu0
        %731 = vdwg.mxu0
        %v732 = vpack.c.bf16 %v729, %v726
        %vm733 = vcmp.ne.bf16.partialorder %v476, 0
        %vm734 = vcmask 64512
        %v736 = vsel %vm734, %v616, 0
        %v739 = vsel %vm734, %v674, 0
        %741 = vmatprep.subr.bf16.mxu0 0
        %742 = vmatpush1.bf16.xpose.msra.mxu0 %v739
        %743 = vmatprep.subr.bf16.mxu0 0
        %744 = vmatpush1.bf16.xpose.msra.mxu0 0
        %745 = vmatprep.subr.bf16.mxu0 0
        %746 = vmatpush1.bf16.xpose.msra.mxu0 0
        %747 = vmatprep.subr.bf16.mxu0 0
        %748 = vmatpush1.bf16.xpose.msra.mxu0 0
        %749 = vmatprep.subr.bf16.mxu0 0
        %750 = vmatpush1.bf16.xpose.msra.mxu0 0
        %751 = vmatprep.subr.bf16.mxu0 0
        %752 = vmatpush1.bf16.xpose.msra.mxu0 0
        %753 = vmatprep.subr.bf16.mxu0 0
        %754 = vmatpush1.bf16.xpose.msra.mxu0 0
        %755 = vmatprep.subr.bf16.mxu0 0
        %756 = vmatpush1.bf16.xpose.msra.mxu0 0
        %757 = vmatprep.subr.bf16.mxu0 0
        %758 = vmatpush1.bf16.xpose.msra.mxu0 0
        %759 = vmatprep.subr.bf16.mxu0 0
        %760 = vmatpush1.bf16.xpose.msra.mxu0 0
        %761 = vmatprep.subr.bf16.mxu0 0
        %762 = vmatpush1.bf16.xpose.msra.mxu0 0
        %763 = vmatprep.subr.bf16.mxu0 0
        %764 = vmatpush1.bf16.xpose.msra.mxu0 0
        %765 = vmatprep.subr.bf16.mxu0 0
        %766 = vmatpush1.bf16.xpose.msra.mxu0 0
        %767 = vmatprep.subr.bf16.mxu0 0
        %768 = vmatpush1.bf16.xpose.msra.mxu0 0
        %769 = vmatprep.subr.bf16.mxu0 0
        %770 = vmatpush1.bf16.xpose.msra.mxu0 0
        %771 = vmatprep.subr.bf16.mxu0 0
        %772 = vmatpush1.bf16.xpose.msra.mxu0 0
        %773 = vmatprep.mubr.bf16.mxu0 0
        %774 = vmatmul.mubr.bf16.gmra.mrb[0].mxu0 %v736
        %v775 = vpop.f32.mrb[0].mxu0
        %v776 = vadd.f32 0.0, %v775
        %v777 = vpop.f32.mrb[0].mxu0
        %v778 = vpop.f32.mrb[0].mxu0
        %v779 = vpop.f32.mrb[0].mxu0
        %780 = vdwg.mxu0
        %v781 = vmul.f32 %v776, 0.35355338
        %v782 = vsel %vm733, 65537, 0
        %v783 = vunpack.c.l.b16 %v782
        %vm784 = vcmp.ne.s32.totalorder %v783, 0
        %v785 = vsel %vm784, -1e+09, %v781
        %v786 = vsel %vm734, %v785, -inf
        %787 = vmax.xlane.f32.xlu0 %v786
        %v788 = vpop.xlane.xlu0 %787
        %v789 = vsub.f32 %v785, %v788
        %v790 = vmul.f32 %v789, 1.442695
        %v791 = vpow.pop %v790
        %v792 = vsel %vm734, %v791, 0.0
        %793 = vadd.xlane.f32.xlu0 %v792
        %v794 = vpop.xlane.xlu0 %793
        %v795 = vrcp.pop %v794
        %v796 = vmul.f32 %v791, %v795
        %v797 = vpack.c.bf16 %v796, %v796
        %v799 = vsel %vm734, %v797, 0
        %vm801 = vcmask 1043456
        %v803 = vsel %vm801, %v732, 0
        %805 = vmatprep.subr.bf16.mxu0 0
        %806 = vmatpush1.bf16.msra.mxu0 %v803
        %807 = vmatprep.subr.bf16.mxu0 0
        %808 = vmatpush1.bf16.msra.mxu0 0
        %809 = vmatprep.subr.bf16.mxu0 0
        %810 = vmatpush1.bf16.msra.mxu0 0
        %811 = vmatprep.subr.bf16.mxu0 0
        %812 = vmatpush1.bf16.msra.mxu0 0
        %813 = vmatprep.subr.bf16.mxu0 0
        %814 = vmatpush1.bf16.msra.mxu0 0
        %815 = vmatprep.subr.bf16.mxu0 0
        %816 = vmatpush1.bf16.msra.mxu0 0
        %817 = vmatprep.subr.bf16.mxu0 0
        %818 = vmatpush1.bf16.msra.mxu0 0
        %819 = vmatprep.subr.bf16.mxu0 0
        %820 = vmatpush1.bf16.msra.mxu0 0
        %821 = vmatprep.subr.bf16.mxu0 0
        %822 = vmatpush1.bf16.msra.mxu0 0
        %823 = vmatprep.subr.bf16.mxu0 0
        %824 = vmatpush1.bf16.msra.mxu0 0
        %825 = vmatprep.subr.bf16.mxu0 0
        %826 = vmatpush1.bf16.msra.mxu0 0
        %827 = vmatprep.subr.bf16.mxu0 0
        %828 = vmatpush1.bf16.msra.mxu0 0
        %829 = vmatprep.subr.bf16.mxu0 0
        %830 = vmatpush1.bf16.msra.mxu0 0
        %831 = vmatprep.subr.bf16.mxu0 0
        %832 = vmatpush1.bf16.msra.mxu0 0
        %833 = vmatprep.subr.bf16.mxu0 0
        %834 = vmatpush1.bf16.msra.mxu0 0
        %835 = vmatprep.subr.bf16.mxu0 0
        %836 = vmatpush1.bf16.msra.mxu0 0
        %837 = vmatprep.mubr.bf16.mxu0 0
        %838 = vmatmul.mubr.bf16.gmra.mrb[0].mxu0 %v799
        %v839 = vpop.f32.mrb[0].mxu0
        %v840 = vadd.f32 0.0, %v839
        %v841 = vpop.f32.mrb[0].mxu0
        %v842 = vpop.f32.mrb[0].mxu0
        %v843 = vpop.f32.mrb[0].mxu0
        %844 = vdwg.mxu0
        %845 = vst.msk [vmem:[#allocation3] sm:$0xff] %vm734, %v840
        %847 = vrot.lane.b32.xlu0 %v616, 120
        %v848 = vpop.permute.xlu0 %847
        %850 = vrot.lane.b32.xlu0 %v674, 120
        %v851 = vpop.permute.xlu0 %850
        %v853 = vsel %vm734, %v848, 0
        %v856 = vsel %vm734, %v851, 0
        %858 = vmatprep.subr.bf16.mxu0 0
        %859 = vmatpush1.bf16.xpose.msra.mxu0 %v856
        %860 = vmatprep.subr.bf16.mxu0 0
        %861 = vmatpush1.bf16.xpose.msra.mxu0 0
        %862 = vmatprep.subr.bf16.mxu0 0
        %863 = vmatpush1.bf16.xpose.msra.mxu0 0
        %864 = vmatprep.subr.bf16.mxu0 0
        %865 = vmatpush1.bf16.xpose.msra.mxu0 0
        %866 = vmatprep.subr.bf16.mxu0 0
        %867 = vmatpush1.bf16.xpose.msra.mxu0 0
        %868 = vmatprep.subr.bf16.mxu0 0
        %869 = vmatpush1.bf16.xpose.msra.mxu0 0
        %870 = vmatprep.subr.bf16.mxu0 0
        %871 = vmatpush1.bf16.xpose.msra.mxu0 0
        %872 = vmatprep.subr.bf16.mxu0 0
        %873 = vmatpush1.bf16.xpose.msra.mxu0 0
        %874 = vmatprep.subr.bf16.mxu0 0
        %875 = vmatpush1.bf16.xpose.msra.mxu0 0
        %876 = vmatprep.subr.bf16.mxu0 0
        %877 = vmatpush1.bf16.xpose.msra.mxu0 0
        %878 = vmatprep.subr.bf16.mxu0 0
        %879 = vmatpush1.bf16.xpose.msra.mxu0 0
        %880 = vmatprep.subr.bf16.mxu0 0
        %881 = vmatpush1.bf16.xpose.msra.mxu0 0
        %882 = vmatprep.subr.bf16.mxu0 0
        %883 = vmatpush1.bf16.xpose.msra.mxu0 0
        %884 = vmatprep.subr.bf16.mxu0 0
        %885 = vmatpush1.bf16.xpose.msra.mxu0 0
        %886 = vmatprep.subr.bf16.mxu0 0
        %887 = vmatpush1.bf16.xpose.msra.mxu0 0
        %888 = vmatprep.subr.bf16.mxu0 0
        %889 = vmatpush1.bf16.xpose.msra.mxu0 0
        %890 = vmatprep.mubr.bf16.mxu0 0
        %891 = vmatmul.mubr.bf16.gmra.mrb[0].mxu0 %v853
        %v892 = vpop.f32.mrb[0].mxu0
        %v893 = vadd.f32 0.0, %v892
        %v894 = vpop.f32.mrb[0].mxu0
        %v895 = vpop.f32.mrb[0].mxu0
        %v896 = vpop.f32.mrb[0].mxu0
        %897 = vdwg.mxu0
        %v898 = vmul.f32 %v893, 0.35355338
        %v899 = vsel %vm784, -1e+09, %v898
        %v900 = vsel %vm734, %v899, -inf
        %901 = vmax.xlane.f32.xlu0 %v900
        %v902 = vpop.xlane.xlu0 %901
        %v903 = vsub.f32 %v899, %v902
        %v904 = vmul.f32 %v903, 1.442695
        %v905 = vpow.pop %v904
        %v906 = vsel %vm734, %v905, 0.0
        %907 = vadd.xlane.f32.xlu0 %v906
        %v908 = vpop.xlane.xlu0 %907
        %v909 = vrcp.pop %v908
        %v910 = vmul.f32 %v905, %v909
        %v911 = vpack.c.bf16 %v910, %v910
        %913 = vrot.lane.b32.xlu0 %v732, 120
        %v914 = vpop.permute.xlu0 %913
        %v916 = vsel %vm734, %v911, 0
        %v919 = vsel %vm801, %v914, 0
        %921 = vmatprep.subr.bf16.mxu0 0
        %922 = vmatpush1.bf16.msra.mxu0 %v919
        %923 = vmatprep.subr.bf16.mxu0 0
        %924 = vmatpush1.bf16.msra.mxu0 0
        %925 = vmatprep.subr.bf16.mxu0 0
        %926 = vmatpush1.bf16.msra.mxu0 0
        %927 = vmatprep.subr.bf16.mxu0 0
        %928 = vmatpush1.bf16.msra.mxu0 0
        %929 = vmatprep.subr.bf16.mxu0 0
        %930 = vmatpush1.bf16.msra.mxu0 0
        %931 = vmatprep.subr.bf16.mxu0 0
        %932 = vmatpush1.bf16.msra.mxu0 0
        %933 = vmatprep.subr.bf16.mxu0 0
        %934 = vmatpush1.bf16.msra.mxu0 0
        %935 = vmatprep.subr.bf16.mxu0 0
        %936 = vmatpush1.bf16.msra.mxu0 0
        %937 = vmatprep.subr.bf16.mxu0 0
        %938 = vmatpush1.bf16.msra.mxu0 0
        %939 = vmatprep.subr.bf16.mxu0 0
        %940 = vmatpush1.bf16.msra.mxu0 0
        %941 = vmatprep.subr.bf16.mxu0 0
        %942 = vmatpush1.bf16.msra.mxu0 0
        %943 = vmatprep.subr.bf16.mxu0 0
        %944 = vmatpush1.bf16.msra.mxu0 0
        %945 = vmatprep.subr.bf16.mxu0 0
        %946 = vmatpush1.bf16.msra.mxu0 0
        %947 = vmatprep.subr.bf16.mxu0 0
        %948 = vmatpush1.bf16.msra.mxu0 0
        %949 = vmatprep.subr.bf16.mxu0 0
        %950 = vmatpush1.bf16.msra.mxu0 0
        %951 = vmatprep.subr.bf16.mxu0 0
        %952 = vmatpush1.bf16.msra.mxu0 0
        %953 = vmatprep.mubr.bf16.mxu0 0
        %954 = vmatmul.mubr.bf16.gmra.mrb[0].mxu0 %v916
        %v955 = vpop.f32.mrb[0].mxu0
        %v956 = vadd.f32 0.0, %v955
        %v957 = vpop.f32.mrb[0].mxu0
        %v958 = vpop.f32.mrb[0].mxu0
        %v959 = vpop.f32.mrb[0].mxu0
        %960 = vdwg.mxu0
        %962 = vrot.lane.b32.xlu0 %v956, 8
        %v963 = vpop.permute.xlu0 %962
        %vm965 = vcmask 130112
        %966 = vst.msk [vmem:[#allocation3] sm:$0xff] %vm965, %v963
        %967 = vrot.lane.b32.xlu0 %v616, 112
        %v968 = vpop.permute.xlu0 %967
        %969 = vrot.lane.b32.xlu0 %v674, 112
        %v970 = vpop.permute.xlu0 %969
        %v972 = vsel %vm734, %v968, 0
        %v975 = vsel %vm734, %v970, 0
        %977 = vmatprep.subr.bf16.mxu0 0
        %978 = vmatpush1.bf16.xpose.msra.mxu0 %v975
        %979 = vmatprep.subr.bf16.mxu0 0
        %980 = vmatpush1.bf16.xpose.msra.mxu0 0
        %981 = vmatprep.subr.bf16.mxu0 0
        %982 = vmatpush1.bf16.xpose.msra.mxu0 0
        %983 = vmatprep.subr.bf16.mxu0 0
        %984 = vmatpush1.bf16.xpose.msra.mxu0 0
        %985 = vmatprep.subr.bf16.mxu0 0
        %986 = vmatpush1.bf16.xpose.msra.mxu0 0
        %987 = vmatprep.subr.bf16.mxu0 0
        %988 = vmatpush1.bf16.xpose.msra.mxu0 0
        %989 = vmatprep.subr.bf16.mxu0 0
        %990 = vmatpush1.bf16.xpose.msra.mxu0 0
        %991 = vmatprep.subr.bf16.mxu0 0
        %992 = vmatpush1.bf16.xpose.msra.mxu0 0
        %993 = vmatprep.subr.bf16.mxu0 0
        %994 = vmatpush1.bf16.xpose.msra.mxu0 0
        %995 = vmatprep.subr.bf16.mxu0 0
        %996 = vmatpush1.bf16.xpose.msra.mxu0 0
        %997 = vmatprep.subr.bf16.mxu0 0
        %998 = vmatpush1.bf16.xpose.msra.mxu0 0
        %999 = vmatprep.subr.bf16.mxu0 0
        %1000 = vmatpush1.bf16.xpose.msra.mxu0 0
        %1001 = vmatprep.subr.bf16.mxu0 0
        %1002 = vmatpush1.bf16.xpose.msra.mxu0 0
        %1003 = vmatprep.subr.bf16.mxu0 0
        %1004 = vmatpush1.bf16.xpose.msra.mxu0 0
        %1005 = vmatprep.subr.bf16.mxu0 0
        %1006 = vmatpush1.bf16.xpose.msra.mxu0 0
        %1007 = vmatprep.subr.bf16.mxu0 0
        %1008 = vmatpush1.bf16.xpose.msra.mxu0 0
        %1009 = vmatprep.mubr.bf16.mxu0 0
        %1010 = vmatmul.mubr.bf16.gmra.mrb[0].mxu0 %v972
        %v1011 = vpop.f32.mrb[0].mxu0
        %v1012 = vadd.f32 0.0, %v1011
        %v1013 = vpop.f32.mrb[0].mxu0
        %v1014 = vpop.f32.mrb[0].mxu0
        %v1015 = vpop.f32.mrb[0].mxu0
        %1016 = vdwg.mxu0
        %v1017 = vmul.f32 %v1012, 0.35355338
        %v1018 = vsel %vm784, -1e+09, %v1017
        %v1019 = vsel %vm734, %v1018, -inf
        %1020 = vmax.xlane.f32.xlu0 %v1019
        %v1021 = vpop.xlane.xlu0 %1020
        %v1022 = vsub.f32 %v1018, %v1021
        %v1023 = vmul.f32 %v1022, 1.442695
        %v1024 = vpow.pop %v1023
        %v1025 = vsel %vm734, %v1024, 0.0
        %1026 = vadd.xlane.f32.xlu0 %v1025
        %v1027 = vpop.xlane.xlu0 %1026
        %v1028 = vrcp.pop %v1027
        %v1029 = vmul.f32 %v1024, %v1028
        %v1030 = vpack.c.bf16 %v1029, %v1029
        %1031 = vrot.lane.b32.xlu0 %v732, 112
        %v1032 = vpop.permute.xlu0 %1031
        %v1034 = vsel %vm734, %v1030, 0
        %v1037 = vsel %vm801, %v1032, 0
        %1039 = vmatprep.subr.bf16.mxu0 0
        %1040 = vmatpush1.bf16.msra.mxu0 %v1037
        %1041 = vmatprep.subr.bf16.mxu0 0
        %1042 = vmatpush1.bf16.msra.mxu0 0
        %1043 = vmatprep.subr.bf16.mxu0 0
        %1044 = vmatpush1.bf16.msra.mxu0 0
        %1045 = vmatprep.subr.bf16.mxu0 0
        %1046 = vmatpush1.bf16.msra.mxu0 0
        %1047 = vmatprep.subr.bf16.mxu0 0
        %1048 = vmatpush1.bf16.msra.mxu0 0
        %1049 = vmatprep.subr.bf16.mxu0 0
        %1050 = vmatpush1.bf16.msra.mxu0 0
        %1051 = vmatprep.subr.bf16.mxu0 0
        %1052 = vmatpush1.bf16.msra.mxu0 0
        %1053 = vmatprep.subr.bf16.mxu0 0
        %1054 = vmatpush1.bf16.msra.mxu0 0
        %1055 = vmatprep.subr.bf16.mxu0 0
        %1056 = vmatpush1.bf16.msra.mxu0 0
        %1057 = vmatprep.subr.bf16.mxu0 0
        %1058 = vmatpush1.bf16.msra.mxu0 0
        %1059 = vmatprep.subr.bf16.mxu0 0
        %1060 = vmatpush1.bf16.msra.mxu0 0
        %1061 = vmatprep.subr.bf16.mxu0 0
        %1062 = vmatpush1.bf16.msra.mxu0 0
        %1063 = vmatprep.subr.bf16.mxu0 0
        %1064 = vmatpush1.bf16.msra.mxu0 0
        %1065 = vmatprep.subr.bf16.mxu0 0
        %1066 = vmatpush1.bf16.msra.mxu0 0
        %1067 = vmatprep.subr.bf16.mxu0 0
        %1068 = vmatpush1.bf16.msra.mxu0 0
        %1069 = vmatprep.subr.bf16.mxu0 0
        %1070 = vmatpush1.bf16.msra.mxu0 0
        %1071 = vmatprep.mubr.bf16.mxu0 0
        %1072 = vmatmul.mubr.bf16.gmra.mrb[0].mxu0 %v1034
        %v1073 = vpop.f32.mrb[0].mxu0
        %v1074 = vadd.f32 0.0, %v1073
        %v1075 = vpop.f32.mrb[0].mxu0
        %v1076 = vpop.f32.mrb[0].mxu0
        %v1077 = vpop.f32.mrb[0].mxu0
        %1078 = vdwg.mxu0
        %1080 = vrot.lane.b32.xlu0 %v1074, 16
        %v1081 = vpop.permute.xlu0 %1080
        %vm1083 = vcmask 195712
        %1084 = vst.msk [vmem:[#allocation3] sm:$0xff] %vm1083, %v1081
        %1085 = vrot.lane.b32.xlu0 %v616, 104
        %v1086 = vpop.permute.xlu0 %1085
        %1087 = vrot.lane.b32.xlu0 %v674, 104
        %v1088 = vpop.permute.xlu0 %1087
        %v1090 = vsel %vm734, %v1086, 0
        %v1093 = vsel %vm734, %v1088, 0
        %1095 = vmatprep.subr.bf16.mxu0 0
        %1096 = vmatpush1.bf16.xpose.msra.mxu0 %v1093
        %1097 = vmatprep.subr.bf16.mxu0 0
        %1098 = vmatpush1.bf16.xpose.msra.mxu0 0
        %1099 = vmatprep.subr.bf16.mxu0 0
        %1100 = vmatpush1.bf16.xpose.msra.mxu0 0
        %1101 = vmatprep.subr.bf16.mxu0 0
        %1102 = vmatpush1.bf16.xpose.msra.mxu0 0
        %1103 = vmatprep.subr.bf16.mxu0 0
        %1104 = vmatpush1.bf16.xpose.msra.mxu0 0
        %1105 = vmatprep.subr.bf16.mxu0 0
        %1106 = vmatpush1.bf16.xpose.msra.mxu0 0
        %1107 = vmatprep.subr.bf16.mxu0 0
        %1108 = vmatpush1.bf16.xpose.msra.mxu0 0
        %1109 = vmatprep.subr.bf16.mxu0 0
        %1110 = vmatpush1.bf16.xpose.msra.mxu0 0
        %1111 = vmatprep.subr.bf16.mxu0 0
        %1112 = vmatpush1.bf16.xpose.msra.mxu0 0
        %1113 = vmatprep.subr.bf16.mxu0 0
        %1114 = vmatpush1.bf16.xpose.msra.mxu0 0
        %1115 = vmatprep.subr.bf16.mxu0 0
        %1116 = vmatpush1.bf16.xpose.msra.mxu0 0
        %1117 = vmatprep.subr.bf16.mxu0 0
        %1118 = vmatpush1.bf16.xpose.msra.mxu0 0
        %1119 = vmatprep.subr.bf16.mxu0 0
        %1120 = vmatpush1.bf16.xpose.msra.mxu0 0
        %1121 = vmatprep.subr.bf16.mxu0 0
        %1122 = vmatpush1.bf16.xpose.msra.mxu0 0
        %1123 = vmatprep.subr.bf16.mxu0 0
        %1124 = vmatpush1.bf16.xpose.msra.mxu0 0
        %1125 = vmatprep.subr.bf16.mxu0 0
        %1126 = vmatpush1.bf16.xpose.msra.mxu0 0
        %1127 = vmatprep.mubr.bf16.mxu0 0
        %1128 = vmatmul.mubr.bf16.gmra.mrb[0].mxu0 %v1090
        %v1129 = vpop.f32.mrb[0].mxu0
        %v1130 = vadd.f32 0.0, %v1129
        %v1131 = vpop.f32.mrb[0].mxu0
        %v1132 = vpop.f32.mrb[0].mxu0
        %v1133 = vpop.f32.mrb[0].mxu0
        %1134 = vdwg.mxu0
        %v1135 = vmul.f32 %v1130, 0.35355338
        %v1136 = vsel %vm784, -1e+09, %v1135
        %v1137 = vsel %vm734, %v1136, -inf
        %1138 = vmax.xlane.f32.xlu0 %v1137
        %v1139 = vpop.xlane.xlu0 %1138
        %v1140 = vsub.f32 %v1136, %v1139
        %v1141 = vmul.f32 %v1140, 1.442695
        %v1142 = vpow.pop %v1141
        %v1143 = vsel %vm734, %v1142, 0.0
        %1144 = vadd.xlane.f32.xlu0 %v1143
        %v1145 = vpop.xlane.xlu0 %1144
        %v1146 = vrcp.pop %v1145
        %v1147 = vmul.f32 %v1142, %v1146
        %v1148 = vpack.c.bf16 %v1147, %v1147
        %1149 = vrot.lane.b32.xlu0 %v732, 104
        %v1150 = vpop.permute.xlu0 %1149
        %v1152 = vsel %vm734, %v1148, 0
        %v1155 = vsel %vm801, %v1150, 0
        %1157 = vmatprep.subr.bf16.mxu0 0
        %1158 = vmatpush1.bf16.msra.mxu0 %v1155
        %1159 = vmatprep.subr.bf16.mxu0 0
        %1160 = vmatpush1.bf16.msra.mxu0 0
        %1161 = vmatprep.subr.bf16.mxu0 0
        %1162 = vmatpush1.bf16.msra.mxu0 0
        %1163 = vmatprep.subr.bf16.mxu0 0
        %1164 = vmatpush1.bf16.msra.mxu0 0
        %1165 = vmatprep.subr.bf16.mxu0 0
        %1166 = vmatpush1.bf16.msra.mxu0 0
        %1167 = vmatprep.subr.bf16.mxu0 0
        %1168 = vmatpush1.bf16.msra.mxu0 0
        %1169 = vmatprep.subr.bf16.mxu0 0
        %1170 = vmatpush1.bf16.msra.mxu0 0
        %1171 = vmatprep.subr.bf16.mxu0 0
        %1172 = vmatpush1.bf16.msra.mxu0 0
        %1173 = vmatprep.subr.bf16.mxu0 0
        %1174 = vmatpush1.bf16.msra.mxu0 0
        %1175 = vmatprep.subr.bf16.mxu0 0
        %1176 = vmatpush1.bf16.msra.mxu0 0
        %1177 = vmatprep.subr.bf16.mxu0 0
        %1178 = vmatpush1.bf16.msra.mxu0 0
        %1179 = vmatprep.subr.bf16.mxu0 0
        %1180 = vmatpush1.bf16.msra.mxu0 0
        %1181 = vmatprep.subr.bf16.mxu0 0
        %1182 = vmatpush1.bf16.msra.mxu0 0
        %1183 = vmatprep.subr.bf16.mxu0 0
        %1184 = vmatpush1.bf16.msra.mxu0 0
        %1185 = vmatprep.subr.bf16.mxu0 0
        %1186 = vmatpush1.bf16.msra.mxu0 0
        %1187 = vmatprep.subr.bf16.mxu0 0
        %1188 = vmatpush1.bf16.msra.mxu0 0
        %1189 = vmatprep.mubr.bf16.mxu0 0
        %1190 = vmatmul.mubr.bf16.gmra.mrb[0].mxu0 %v1152
        %v1191 = vpop.f32.mrb[0].mxu0
        %v1192 = vadd.f32 0.0, %v1191
        %v1193 = vpop.f32.mrb[0].mxu0
        %v1194 = vpop.f32.mrb[0].mxu0
        %v1195 = vpop.f32.mrb[0].mxu0
        %1196 = vdwg.mxu0
        %1198 = vrot.lane.b32.xlu0 %v1192, 24
        %v1199 = vpop.permute.xlu0 %1198
        %vm1201 = vcmask 261312
        %1202 = vst.msk [vmem:[#allocation3] sm:$0xff] %vm1201, %v1199
        %vm1203 = vcmp.ne.bf16.partialorder %v477, 0
        %v1204 = vrot.slane %v616, 4
        %v1205 = vrot.slane %v674, 4
        %v1207 = vsel %vm734, %v1204, 0
        %v1210 = vsel %vm734, %v1205, 0
        %1212 = vmatprep.subr.bf16.mxu0 0
        %1213 = vmatpush1.bf16.xpose.msra.mxu0 %v1210
        %1214 = vmatprep.subr.bf16.mxu0 0
        %1215 = vmatpush1.bf16.xpose.msra.mxu0 0
        %1216 = vmatprep.subr.bf16.mxu0 0
        %1217 = vmatpush1.bf16.xpose.msra.mxu0 0
        %1218 = vmatprep.subr.bf16.mxu0 0
        %1219 = vmatpush1.bf16.xpose.msra.mxu0 0
        %1220 = vmatprep.subr.bf16.mxu0 0
        %1221 = vmatpush1.bf16.xpose.msra.mxu0 0
        %1222 = vmatprep.subr.bf16.mxu0 0
        %1223 = vmatpush1.bf16.xpose.msra.mxu0 0
        %1224 = vmatprep.subr.bf16.mxu0 0
        %1225 = vmatpush1.bf16.xpose.msra.mxu0 0
        %1226 = vmatprep.subr.bf16.mxu0 0
        %1227 = vmatpush1.bf16.xpose.msra.mxu0 0
        %1228 = vmatprep.subr.bf16.mxu0 0
        %1229 = vmatpush1.bf16.xpose.msra.mxu0 0
        %1230 = vmatprep.subr.bf16.mxu0 0
        %1231 = vmatpush1.bf16.xpose.msra.mxu0 0
        %1232 = vmatprep.subr.bf16.mxu0 0
        %1233 = vmatpush1.bf16.xpose.msra.mxu0 0
        %1234 = vmatprep.subr.bf16.mxu0 0
        %1235 = vmatpush1.bf16.xpose.msra.mxu0 0
        %1236 = vmatprep.subr.bf16.mxu0 0
        %1237 = vmatpush1.bf16.xpose.msra.mxu0 0
        %1238 = vmatprep.subr.bf16.mxu0 0
        %1239 = vmatpush1.bf16.xpose.msra.mxu0 0
        %1240 = vmatprep.subr.bf16.mxu0 0
        %1241 = vmatpush1.bf16.xpose.msra.mxu0 0
        %1242 = vmatprep.subr.bf16.mxu0 0
        %1243 = vmatpush1.bf16.xpose.msra.mxu0 0
        %1244 = vmatprep.mubr.bf16.mxu0 0
        %1245 = vmatmul.mubr.bf16.gmra.mrb[0].mxu0 %v1207
        %v1246 = vpop.f32.mrb[0].mxu0
        %v1247 = vadd.f32 0.0, %v1246
        %v1248 = vpop.f32.mrb[0].mxu0
        %v1249 = vpop.f32.mrb[0].mxu0
        %v1250 = vpop.f32.mrb[0].mxu0
        %1251 = vdwg.mxu0
        %v1252 = vmul.f32 %v1247, 0.35355338
        %v1253 = vsel %vm1203, 65537, 0
        %v1254 = vunpack.c.l.b16 %v1253
        %vm1255 = vcmp.ne.s32.totalorder %v1254, 0
        %v1256 = vsel %vm1255, -1e+09, %v1252
        %v1257 = vsel %vm734, %v1256, -inf
        %1258 = vmax.xlane.f32.xlu0 %v1257
        %v1259 = vpop.xlane.xlu0 %1258
        %v1260 = vsub.f32 %v1256, %v1259
        %v1261 = vmul.f32 %v1260, 1.442695
        %v1262 = vpow.pop %v1261
        %v1263 = vsel %vm734, %v1262, 0.0
        %1264 = vadd.xlane.f32.xlu0 %v1263
        %v1265 = vpop.xlane.xlu0 %1264
        %v1266 = vrcp.pop %v1265
        %v1267 = vmul.f32 %v1262, %v1266
        %v1268 = vpack.c.bf16 %v1267, %v1267
        %v1269 = vrot.slane %v732, 4
        %v1271 = vsel %vm734, %v1268, 0
        %v1274 = vsel %vm801, %v1269, 0
        %1276 = vmatprep.subr.bf16.mxu0 0
        %1277 = vmatpush1.bf16.msra.mxu0 %v1274
        %1278 = vmatprep.subr.bf16.mxu0 0
        %1279 = vmatpush1.bf16.msra.mxu0 0
        %1280 = vmatprep.subr.bf16.mxu0 0
        %1281 = vmatpush1.bf16.msra.mxu0 0
        %1282 = vmatprep.subr.bf16.mxu0 0
        %1283 = vmatpush1.bf16.msra.mxu0 0
        %1284 = vmatprep.subr.bf16.mxu0 0
        %1285 = vmatpush1.bf16.msra.mxu0 0
        %1286 = vmatprep.subr.bf16.mxu0 0
        %1287 = vmatpush1.bf16.msra.mxu0 0
        %1288 = vmatprep.subr.bf16.mxu0 0
        %1289 = vmatpush1.bf16.msra.mxu0 0
        %1290 = vmatprep.subr.bf16.mxu0 0
        %1291 = vmatpush1.bf16.msra.mxu0 0
        %1292 = vmatprep.subr.bf16.mxu0 0
        %1293 = vmatpush1.bf16.msra.mxu0 0
        %1294 = vmatprep.subr.bf16.mxu0 0
        %1295 = vmatpush1.bf16.msra.mxu0 0
        %1296 = vmatprep.subr.bf16.mxu0 0
        %1297 = vmatpush1.bf16.msra.mxu0 0
        %1298 = vmatprep.subr.bf16.mxu0 0
        %1299 = vmatpush1.bf16.msra.mxu0 0
        %1300 = vmatprep.subr.bf16.mxu0 0
        %1301 = vmatpush1.bf16.msra.mxu0 0
        %1302 = vmatprep.subr.bf16.mxu0 0
        %1303 = vmatpush1.bf16.msra.mxu0 0
        %1304 = vmatprep.subr.bf16.mxu0 0
        %1305 = vmatpush1.bf16.msra.mxu0 0
        %1306 = vmatprep.subr.bf16.mxu0 0
        %1307 = vmatpush1.bf16.msra.mxu0 0
        %1308 = vmatprep.mubr.bf16.mxu0 0
        %1309 = vmatmul.mubr.bf16.gmra.mrb[0].mxu0 %v1271
        %v1310 = vpop.f32.mrb[0].mxu0
        %v1311 = vadd.f32 0.0, %v1310
        %v1312 = vpop.f32.mrb[0].mxu0
        %v1313 = vpop.f32.mrb[0].mxu0
        %v1314 = vpop.f32.mrb[0].mxu0
        %1315 = vdwg.mxu0
        %1316 = vst.msk [vmem:[#allocation3 + $0x8] sm:$0xff] %vm734, %v1311
        %1317 = vrot.lane.b32.xlu0 %v1204, 120
        %v1318 = vpop.permute.xlu0 %1317
        %1319 = vrot.lane.b32.xlu0 %v1205, 120
        %v1320 = vpop.permute.xlu0 %1319
        %v1322 = vsel %vm734, %v1318, 0
        %v1325 = vsel %vm734, %v1320, 0
        %1327 = vmatprep.subr.bf16.mxu0 0
        %1328 = vmatpush1.bf16.xpose.msra.mxu0 %v1325
        %1329 = vmatprep.subr.bf16.mxu0 0
        %1330 = vmatpush1.bf16.xpose.msra.mxu0 0
        %1331 = vmatprep.subr.bf16.mxu0 0
        %1332 = vmatpush1.bf16.xpose.msra.mxu0 0
        %1333 = vmatprep.subr.bf16.mxu0 0
        %1334 = vmatpush1.bf16.xpose.msra.mxu0 0
        %1335 = vmatprep.subr.bf16.mxu0 0
        %1336 = vmatpush1.bf16.xpose.msra.mxu0 0
        %1337 = vmatprep.subr.bf16.mxu0 0
        %1338 = vmatpush1.bf16.xpose.msra.mxu0 0
        %1339 = vmatprep.subr.bf16.mxu0 0
        %1340 = vmatpush1.bf16.xpose.msra.mxu0 0
        %1341 = vmatprep.subr.bf16.mxu0 0
        %1342 = vmatpush1.bf16.xpose.msra.mxu0 0
        %1343 = vmatprep.subr.bf16.mxu0 0
        %1344 = vmatpush1.bf16.xpose.msra.mxu0 0
        %1345 = vmatprep.subr.bf16.mxu0 0
        %1346 = vmatpush1.bf16.xpose.msra.mxu0 0
        %1347 = vmatprep.subr.bf16.mxu0 0
        %1348 = vmatpush1.bf16.xpose.msra.mxu0 0
        %1349 = vmatprep.subr.bf16.mxu0 0
        %1350 = vmatpush1.bf16.xpose.msra.mxu0 0
        %1351 = vmatprep.subr.bf16.mxu0 0
        %1352 = vmatpush1.bf16.xpose.msra.mxu0 0
        %1353 = vmatprep.subr.bf16.mxu0 0
        %1354 = vmatpush1.bf16.xpose.msra.mxu0 0
        %1355 = vmatprep.subr.bf16.mxu0 0
        %1356 = vmatpush1.bf16.xpose.msra.mxu0 0
        %1357 = vmatprep.subr.bf16.mxu0 0
        %1358 = vmatpush1.bf16.xpose.msra.mxu0 0
        %1359 = vmatprep.mubr.bf16.mxu0 0
        %1360 = vmatmul.mubr.bf16.gmra.mrb[0].mxu0 %v1322
        %v1361 = vpop.f32.mrb[0].mxu0
        %v1362 = vadd.f32 0.0, %v1361
        %v1363 = vpop.f32.mrb[0].mxu0
        %v1364 = vpop.f32.mrb[0].mxu0
        %v1365 = vpop.f32.mrb[0].mxu0
        %1366 = vdwg.mxu0
        %v1367 = vmul.f32 %v1362, 0.35355338
        %v1368 = vsel %vm1255, -1e+09, %v1367
        %v1369 = vsel %vm734, %v1368, -inf
        %1370 = vmax.xlane.f32.xlu0 %v1369
        %v1371 = vpop.xlane.xlu0 %1370
        %v1372 = vsub.f32 %v1368, %v1371
        %v1373 = vmul.f32 %v1372, 1.442695
        %v1374 = vpow.pop %v1373
        %v1375 = vsel %vm734, %v1374, 0.0
        %1376 = vadd.xlane.f32.xlu0 %v1375
        %v1377 = vpop.xlane.xlu0 %1376
        %v1378 = vrcp.pop %v1377
        %v1379 = vmul.f32 %v1374, %v1378
        %v1380 = vpack.c.bf16 %v1379, %v1379
        %1381 = vrot.lane.b32.xlu0 %v1269, 120
        %v1382 = vpop.permute.xlu0 %1381
        %v1384 = vsel %vm734, %v1380, 0
        %v1387 = vsel %vm801, %v1382, 0
        %1389 = vmatprep.subr.bf16.mxu0 0
        %1390 = vmatpush1.bf16.msra.mxu0 %v1387
        %1391 = vmatprep.subr.bf16.mxu0 0
        %1392 = vmatpush1.bf16.msra.mxu0 0
        %1393 = vmatprep.subr.bf16.mxu0 0
        %1394 = vmatpush1.bf16.msra.mxu0 0
        %1395 = vmatprep.subr.bf16.mxu0 0
        %1396 = vmatpush1.bf16.msra.mxu0 0
        %1397 = vmatprep.subr.bf16.mxu0 0
        %1398 = vmatpush1.bf16.msra.mxu0 0
        %1399 = vmatprep.subr.bf16.mxu0 0
        %1400 = vmatpush1.bf16.msra.mxu0 0
        %1401 = vmatprep.subr.bf16.mxu0 0
        %1402 = vmatpush1.bf16.msra.mxu0 0
        %1403 = vmatprep.subr.bf16.mxu0 0
        %1404 = vmatpush1.bf16.msra.mxu0 0
        %1405 = vmatprep.subr.bf16.mxu0 0
        %1406 = vmatpush1.bf16.msra.mxu0 0
        %1407 = vmatprep.subr.bf16.mxu0 0
        %1408 = vmatpush1.bf16.msra.mxu0 0
        %1409 = vmatprep.subr.bf16.mxu0 0
        %1410 = vmatpush1.bf16.msra.mxu0 0
        %1411 = vmatprep.subr.bf16.mxu0 0
        %1412 = vmatpush1.bf16.msra.mxu0 0
        %1413 = vmatprep.subr.bf16.mxu0 0
        %1414 = vmatpush1.bf16.msra.mxu0 0
        %1415 = vmatprep.subr.bf16.mxu0 0
        %1416 = vmatpush1.bf16.msra.mxu0 0
        %1417 = vmatprep.subr.bf16.mxu0 0
        %1418 = vmatpush1.bf16.msra.mxu0 0
        %1419 = vmatprep.subr.bf16.mxu0 0
        %1420 = vmatpush1.bf16.msra.mxu0 0
        %1421 = vmatprep.mubr.bf16.mxu0 0
        %1422 = vmatmul.mubr.bf16.gmra.mrb[0].mxu0 %v1384
        %v1423 = vpop.f32.mrb[0].mxu0
        %v1424 = vadd.f32 0.0, %v1423
        %v1425 = vpop.f32.mrb[0].mxu0
        %v1426 = vpop.f32.mrb[0].mxu0
        %v1427 = vpop.f32.mrb[0].mxu0
        %1428 = vdwg.mxu0
        %1430 = vrot.lane.b32.xlu0 %v1424, 8
        %v1431 = vpop.permute.xlu0 %1430
        %1433 = vst.msk [vmem:[#allocation3 + $0x8] sm:$0xff] %vm965, %v1431
        %1434 = vrot.lane.b32.xlu0 %v1204, 112
        %v1435 = vpop.permute.xlu0 %1434
        %1436 = vrot.lane.b32.xlu0 %v1205, 112
        %v1437 = vpop.permute.xlu0 %1436
        %v1439 = vsel %vm734, %v1435, 0
        %v1442 = vsel %vm734, %v1437, 0
        %1444 = vmatprep.subr.bf16.mxu0 0
        %1445 = vmatpush1.bf16.xpose.msra.mxu0 %v1442
        %1446 = vmatprep.subr.bf16.mxu0 0
        %1447 = vmatpush1.bf16.xpose.msra.mxu0 0
        %1448 = vmatprep.subr.bf16.mxu0 0
        %1449 = vmatpush1.bf16.xpose.msra.mxu0 0
        %1450 = vmatprep.subr.bf16.mxu0 0
        %1451 = vmatpush1.bf16.xpose.msra.mxu0 0
        %1452 = vmatprep.subr.bf16.mxu0 0
        %1453 = vmatpush1.bf16.xpose.msra.mxu0 0
        %1454 = vmatprep.subr.bf16.mxu0 0
        %1455 = vmatpush1.bf16.xpose.msra.mxu0 0
        %1456 = vmatprep.subr.bf16.mxu0 0
        %1457 = vmatpush1.bf16.xpose.msra.mxu0 0
        %1458 = vmatprep.subr.bf16.mxu0 0
        %1459 = vmatpush1.bf16.xpose.msra.mxu0 0
        %1460 = vmatprep.subr.bf16.mxu0 0
        %1461 = vmatpush1.bf16.xpose.msra.mxu0 0
        %1462 = vmatprep.subr.bf16.mxu0 0
        %1463 = vmatpush1.bf16.xpose.msra.mxu0 0
        %1464 = vmatprep.subr.bf16.mxu0 0
        %1465 = vmatpush1.bf16.xpose.msra.mxu0 0
        %1466 = vmatprep.subr.bf16.mxu0 0
        %1467 = vmatpush1.bf16.xpose.msra.mxu0 0
        %1468 = vmatprep.subr.bf16.mxu0 0
        %1469 = vmatpush1.bf16.xpose.msra.mxu0 0
        %1470 = vmatprep.subr.bf16.mxu0 0
        %1471 = vmatpush1.bf16.xpose.msra.mxu0 0
        %1472 = vmatprep.subr.bf16.mxu0 0
        %1473 = vmatpush1.bf16.xpose.msra.mxu0 0
        %1474 = vmatprep.subr.bf16.mxu0 0
        %1475 = vmatpush1.bf16.xpose.msra.mxu0 0
        %1476 = vmatprep.mubr.bf16.mxu0 0
        %1477 = vmatmul.mubr.bf16.gmra.mrb[0].mxu0 %v1439
        %v1478 = vpop.f32.mrb[0].mxu0
        %v1479 = vadd.f32 0.0, %v1478
        %v1480 = vpop.f32.mrb[0].mxu0
        %v1481 = vpop.f32.mrb[0].mxu0
        %v1482 = vpop.f32.mrb[0].mxu0
        %1483 = vdwg.mxu0
        %v1484 = vmul.f32 %v1479, 0.35355338
        %v1485 = vsel %vm1255, -1e+09, %v1484
        %v1486 = vsel %vm734, %v1485, -inf
        %1487 = vmax.xlane.f32.xlu0 %v1486
        %v1488 = vpop.xlane.xlu0 %1487
        %v1489 = vsub.f32 %v1485, %v1488
        %v1490 = vmul.f32 %v1489, 1.442695
        %v1491 = vpow.pop %v1490
        %v1492 = vsel %vm734, %v1491, 0.0
        %1493 = vadd.xlane.f32.xlu0 %v1492
        %v1494 = vpop.xlane.xlu0 %1493
        %v1495 = vrcp.pop %v1494
        %v1496 = vmul.f32 %v1491, %v1495
        %v1497 = vpack.c.bf16 %v1496, %v1496
        %1498 = vrot.lane.b32.xlu0 %v1269, 112
        %v1499 = vpop.permute.xlu0 %1498
        %v1501 = vsel %vm734, %v1497, 0
        %v1504 = vsel %vm801, %v1499, 0
        %1506 = vmatprep.subr.bf16.mxu0 0
        %1507 = vmatpush1.bf16.msra.mxu0 %v1504
        %1508 = vmatprep.subr.bf16.mxu0 0
        %1509 = vmatpush1.bf16.msra.mxu0 0
        %1510 = vmatprep.subr.bf16.mxu0 0
        %1511 = vmatpush1.bf16.msra.mxu0 0
        %1512 = vmatprep.subr.bf16.mxu0 0
        %1513 = vmatpush1.bf16.msra.mxu0 0
        %1514 = vmatprep.subr.bf16.mxu0 0
        %1515 = vmatpush1.bf16.msra.mxu0 0
        %1516 = vmatprep.subr.bf16.mxu0 0
        %1517 = vmatpush1.bf16.msra.mxu0 0
        %1518 = vmatprep.subr.bf16.mxu0 0
        %1519 = vmatpush1.bf16.msra.mxu0 0
        %1520 = vmatprep.subr.bf16.mxu0 0
        %1521 = vmatpush1.bf16.msra.mxu0 0
        %1522 = vmatprep.subr.bf16.mxu0 0
        %1523 = vmatpush1.bf16.msra.mxu0 0
        %1524 = vmatprep.subr.bf16.mxu0 0
        %1525 = vmatpush1.bf16.msra.mxu0 0
        %1526 = vmatprep.subr.bf16.mxu0 0
        %1527 = vmatpush1.bf16.msra.mxu0 0
        %1528 = vmatprep.subr.bf16.mxu0 0
        %1529 = vmatpush1.bf16.msra.mxu0 0
        %1530 = vmatprep.subr.bf16.mxu0 0
        %1531 = vmatpush1.bf16.msra.mxu0 0
        %1532 = vmatprep.subr.bf16.mxu0 0
        %1533 = vmatpush1.bf16.msra.mxu0 0
        %1534 = vmatprep.subr.bf16.mxu0 0
        %1535 = vmatpush1.bf16.msra.mxu0 0
        %1536 = vmatprep.subr.bf16.mxu0 0
        %1537 = vmatpush1.bf16.msra.mxu0 0
        %1538 = vmatprep.mubr.bf16.mxu0 0
        %1539 = vmatmul.mubr.bf16.gmra.mrb[0].mxu0 %v1501
        %v1540 = vpop.f32.mrb[0].mxu0
        %v1541 = vadd.f32 0.0, %v1540
        %v1542 = vpop.f32.mrb[0].mxu0
        %v1543 = vpop.f32.mrb[0].mxu0
        %v1544 = vpop.f32.mrb[0].mxu0
        %1545 = vdwg.mxu0
        %1547 = vrot.lane.b32.xlu0 %v1541, 16
        %v1548 = vpop.permute.xlu0 %1547
        %1550 = vst.msk [vmem:[#allocation3 + $0x8] sm:$0xff] %vm1083, %v1548
        %1551 = vrot.lane.b32.xlu0 %v1204, 104
        %v1552 = vpop.permute.xlu0 %1551
        %1553 = vrot.lane.b32.xlu0 %v1205, 104
        %v1554 = vpop.permute.xlu0 %1553
        %v1556 = vsel %vm734, %v1552, 0
        %v1559 = vsel %vm734, %v1554, 0
        %1561 = vmatprep.subr.bf16.mxu0 0
        %1562 = vmatpush1.bf16.xpose.msra.mxu0 %v1559
        %1563 = vmatprep.subr.bf16.mxu0 0
        %1564 = vmatpush1.bf16.xpose.msra.mxu0 0
        %1565 = vmatprep.subr.bf16.mxu0 0
        %1566 = vmatpush1.bf16.xpose.msra.mxu0 0
        %1567 = vmatprep.subr.bf16.mxu0 0
        %1568 = vmatpush1.bf16.xpose.msra.mxu0 0
        %1569 = vmatprep.subr.bf16.mxu0 0
        %1570 = vmatpush1.bf16.xpose.msra.mxu0 0
        %1571 = vmatprep.subr.bf16.mxu0 0
        %1572 = vmatpush1.bf16.xpose.msra.mxu0 0
        %1573 = vmatprep.subr.bf16.mxu0 0
        %1574 = vmatpush1.bf16.xpose.msra.mxu0 0
        %1575 = vmatprep.subr.bf16.mxu0 0
        %1576 = vmatpush1.bf16.xpose.msra.mxu0 0
        %1577 = vmatprep.subr.bf16.mxu0 0
        %1578 = vmatpush1.bf16.xpose.msra.mxu0 0
        %1579 = vmatprep.subr.bf16.mxu0 0
        %1580 = vmatpush1.bf16.xpose.msra.mxu0 0
        %1581 = vmatprep.subr.bf16.mxu0 0
        %1582 = vmatpush1.bf16.xpose.msra.mxu0 0
        %1583 = vmatprep.subr.bf16.mxu0 0
        %1584 = vmatpush1.bf16.xpose.msra.mxu0 0
        %1585 = vmatprep.subr.bf16.mxu0 0
        %1586 = vmatpush1.bf16.xpose.msra.mxu0 0
        %1587 = vmatprep.subr.bf16.mxu0 0
        %1588 = vmatpush1.bf16.xpose.msra.mxu0 0
        %1589 = vmatprep.subr.bf16.mxu0 0
        %1590 = vmatpush1.bf16.xpose.msra.mxu0 0
        %1591 = vmatprep.subr.bf16.mxu0 0
        %1592 = vmatpush1.bf16.xpose.msra.mxu0 0
        %1593 = vmatprep.mubr.bf16.mxu0 0
        %1594 = vmatmul.mubr.bf16.gmra.mrb[0].mxu0 %v1556
        %v1595 = vpop.f32.mrb[0].mxu0
        %v1596 = vadd.f32 0.0, %v1595
        %v1597 = vpop.f32.mrb[0].mxu0
        %v1598 = vpop.f32.mrb[0].mxu0
        %v1599 = vpop.f32.mrb[0].mxu0
        %1600 = vdwg.mxu0
        %v1601 = vmul.f32 %v1596, 0.35355338
        %v1602 = vsel %vm1255, -1e+09, %v1601
        %v1603 = vsel %vm734, %v1602, -inf
        %1604 = vmax.xlane.f32.xlu0 %v1603
        %v1605 = vpop.xlane.xlu0 %1604
        %v1606 = vsub.f32 %v1602, %v1605
        %v1607 = vmul.f32 %v1606, 1.442695
        %v1608 = vpow.pop %v1607
        %v1609 = vsel %vm734, %v1608, 0.0
        %1610 = vadd.xlane.f32.xlu0 %v1609
        %v1611 = vpop.xlane.xlu0 %1610
        %v1612 = vrcp.pop %v1611
        %v1613 = vmul.f32 %v1608, %v1612
        %v1614 = vpack.c.bf16 %v1613, %v1613
        %1615 = vrot.lane.b32.xlu0 %v1269, 104
        %v1616 = vpop.permute.xlu0 %1615
        %v1618 = vsel %vm734, %v1614, 0
        %v1621 = vsel %vm801, %v1616, 0
        %1623 = vmatprep.subr.bf16.mxu0 0
        %1624 = vmatpush1.bf16.msra.mxu0 %v1621
        %1625 = vmatprep.subr.bf16.mxu0 0
        %1626 = vmatpush1.bf16.msra.mxu0 0
        %1627 = vmatprep.subr.bf16.mxu0 0
        %1628 = vmatpush1.bf16.msra.mxu0 0
        %1629 = vmatprep.subr.bf16.mxu0 0
        %1630 = vmatpush1.bf16.msra.mxu0 0
        %1631 = vmatprep.subr.bf16.mxu0 0
        %1632 = vmatpush1.bf16.msra.mxu0 0
        %1633 = vmatprep.subr.bf16.mxu0 0
        %1634 = vmatpush1.bf16.msra.mxu0 0
        %1635 = vmatprep.subr.bf16.mxu0 0
        %1636 = vmatpush1.bf16.msra.mxu0 0
        %1637 = vmatprep.subr.bf16.mxu0 0
        %1638 = vmatpush1.bf16.msra.mxu0 0
        %1639 = vmatprep.subr.bf16.mxu0 0
        %1640 = vmatpush1.bf16.msra.mxu0 0
        %1641 = vmatprep.subr.bf16.mxu0 0
        %1642 = vmatpush1.bf16.msra.mxu0 0
        %1643 = vmatprep.subr.bf16.mxu0 0
        %1644 = vmatpush1.bf16.msra.mxu0 0
        %1645 = vmatprep.subr.bf16.mxu0 0
        %1646 = vmatpush1.bf16.msra.mxu0 0
        %1647 = vmatprep.subr.bf16.mxu0 0
        %1648 = vmatpush1.bf16.msra.mxu0 0
        %1649 = vmatprep.subr.bf16.mxu0 0
        %1650 = vmatpush1.bf16.msra.mxu0 0
        %1651 = vmatprep.subr.bf16.mxu0 0
        %1652 = vmatpush1.bf16.msra.mxu0 0
        %1653 = vmatprep.subr.bf16.mxu0 0
        %1654 = vmatpush1.bf16.msra.mxu0 0
        %1655 = vmatprep.mubr.bf16.mxu0 0
        %1656 = vmatmul.mubr.bf16.gmra.mrb[0].mxu0 %v1618
        %v1657 = vpop.f32.mrb[0].mxu0
        %v1658 = vadd.f32 0.0, %v1657
        %v1659 = vpop.f32.mrb[0].mxu0
        %v1660 = vpop.f32.mrb[0].mxu0
        %v1661 = vpop.f32.mrb[0].mxu0
        %1662 = vdwg.mxu0
        %1664 = vrot.lane.b32.xlu0 %v1658, 24
        %v1665 = vpop.permute.xlu0 %1664
        %1667 = vst.msk [vmem:[#allocation3 + $0x8] sm:$0xff] %vm1201, %v1665
        %v1668 = vld [vmem:[#allocation3] sm:$0xff]
        %v1669 = vld [vmem:[#allocation3 + $0x8] sm:$0xff]
        %v1670 = vpack.c.bf16 %v1669, %v1668
        %v1671 = vlaneseq
        %v1672 = vshrl.u32 %v1671, 7
        %v1673 = vsub.s32 3, %v1672
        %v1674 = vrot.slane %v480, %v1673
        %v1679 = vunpack.c.l.b16 %v551
        %v1680 = vunpack.c.l.b16 %v552
        %v1681 = vunpack.c.l.b16 %v553
        %v1682 = vunpack.c.l.b16 %v554
        %v1683 = vpack.c.b16 %v1680, %v1679
        %v1684 = vpack.c.b16 %v1682, %v1681
        %v1688 = vsel %vm482, %v1670, 0
        %1690 = vmatprep.subr.bf16.mxu0 0
        %1691 = vmatpush1.bf16.msra.mxu0 %v1683
        %1692 = vmatprep.subr.bf16.mxu0 0
        %1693 = vmatpush1.bf16.msra.mxu0 %v1684
        %1694 = vmatprep.subr.bf16.mxu0 0
        %1695 = vmatpush1.bf16.msra.mxu0 0
        %1696 = vmatprep.subr.bf16.mxu0 0
        %1697 = vmatpush1.bf16.msra.mxu0 0
        %1698 = vmatprep.subr.bf16.mxu0 0
        %1699 = vmatpush1.bf16.msra.mxu0 0
        %1700 = vmatprep.subr.bf16.mxu0 0
        %1701 = vmatpush1.bf16.msra.mxu0 0
        %1702 = vmatprep.subr.bf16.mxu0 0
        %1703 = vmatpush1.bf16.msra.mxu0 0
        %1704 = vmatprep.subr.bf16.mxu0 0
        %1705 = vmatpush1.bf16.msra.mxu0 0
        %1706 = vmatprep.subr.bf16.mxu0 0
        %1707 = vmatpush1.bf16.msra.mxu0 0
        %1708 = vmatprep.subr.bf16.mxu0 0
        %1709 = vmatpush1.bf16.msra.mxu0 0
        %1710 = vmatprep.subr.bf16.mxu0 0
        %1711 = vmatpush1.bf16.msra.mxu0 0
        %1712 = vmatprep.subr.bf16.mxu0 0
        %1713 = vmatpush1.bf16.msra.mxu0 0
        %1714 = vmatprep.subr.bf16.mxu0 0
        %1715 = vmatpush1.bf16.msra.mxu0 0
        %1716 = vmatprep.subr.bf16.mxu0 0
        %1717 = vmatpush1.bf16.msra.mxu0 0
        %1718 = vmatprep.subr.bf16.mxu0 0
        %1719 = vmatpush1.bf16.msra.mxu0 0
        %1720 = vmatprep.subr.bf16.mxu0 0
        %1721 = vmatpush1.bf16.msra.mxu0 0
        %1722 = vmatprep.mubr.bf16.mxu0 0
        %1723 = vmatmul.mubr.bf16.gmra.mrb[0].mxu0 %v1688
        %v1724 = vpop.f32.mrb[0].mxu0
        %v1725 = vadd.f32 %v1674, %v1724
        %v1726 = vpop.f32.mrb[0].mxu0
        %v1727 = vpop.f32.mrb[0].mxu0
        %v1728 = vadd.f32 %v1674, %v1727
        %v1729 = vpop.f32.mrb[0].mxu0
        %1730 = vdwg.mxu0
        %v1731 = vadd.f32 %v472, %v1725
        %v1732 = vadd.f32 %v473, %v1728
        %v1733 = vsel %vm482, %v1731, 0.0
        %1734 = vadd.xlane.f32.xlu0 %v1733
        %v1735 = vpop.xlane.xlu0 %1734
        %v1736 = vsel %vm482, %v1732, 0.0
        %1737 = vadd.xlane.f32.xlu0 %v1736
        %v1738 = vpop.xlane.xlu0 %1737
        %v1739 = vmul.f32 %v1735, %v489
        %v1740 = vmul.f32 %v1738, %v489
        %v1741 = vsub.f32 %v1731, %v1739
        %v1742 = vsub.f32 %v1732, %v1740
        %v1743 = vmul.f32 %v1741, %v1741
        %v1744 = vmul.f32 %v1742, %v1742
        %v1745 = vsel %vm482, %v1743, 0.0
        %1746 = vadd.xlane.f32.xlu0 %v1745
        %v1747 = vpop.xlane.xlu0 %1746
        %v1748 = vsel %vm482, %v1744, 0.0
        %1749 = vadd.xlane.f32.xlu0 %v1748
        %v1750 = vpop.xlane.xlu0 %1749
        %v1751 = vmul.f32 %v1747, 0.032258064
        %v1752 = vmul.f32 %v1750, 0.032258064
        %v1753 = vrsqrt.pop %v1751
        %v1754 = vmul.f32 %v1751, %v1753
        %vm1755 = vcmp.eq.f32.partialorder %v1751, inf
        %v1756 = vsel %vm1755, %v1751, %v1754
        %vm1757 = vcmp.eq.f32.partialorder %v1751, 0.0
        %v1758 = vand.u32 %v1751, 2147483648
        %v1759 = vsel %vm1757, %v1758, %v1756
        %v1760 = vrsqrt.pop %v1752
        %v1761 = vmul.f32 %v1752, %v1760
        %vm1762 = vcmp.eq.f32.partialorder %v1752, inf
        %v1763 = vsel %vm1762, %v1752, %v1761
        %vm1764 = vcmp.eq.f32.partialorder %v1752, 0.0
        %v1765 = vand.u32 %v1752, 2147483648
        %v1766 = vsel %vm1764, %v1765, %v1763
        %v1767 = vlaneseq
        %v1768 = vshrl.u32 %v1767, 7
        %v1769 = vsub.s32 4, %v1768
        %v1770 = vrot.slane %v481, %v1769
        %v1771 = vmul.f32 %v1770, %v1741
        %v1772 = vmul.f32 %v1770, %v1742
        %v1773 = vadd.f32 %v1759, 1e-06
        %v1774 = vadd.f32 %v1766, 1e-06
        %v1775 = vrcp.pop %v1773
        %v1776 = vmul.f32 %v1771, %v1775
        %v1777 = vrcp.pop %v1774
        %v1778 = vmul.f32 %v1772, %v1777
        %v1779 = vlaneseq
        %v1780 = vshrl.u32 %v1779, 7
        %v1781 = vsub.s32 5, %v1780
        %v1782 = vrot.slane %v481, %v1781
        %v1783 = vadd.f32 %v1776, %v1782
        %v1784 = vadd.f32 %v1778, %v1782
        %s1785 = scalar_lea.vmem %s396, 64 [#allocation10]
        %v1786 = vld [vmem:[%s1785] sm:$0xf]
        %v1787 = vld [vmem:[%s1785 + $0x4] sm:$0xf]
        %v1788 = vld [vmem:[%s1785 + $0x8] sm:$0xf]
        %v1789 = vld [vmem:[%s1785 + $0xc] sm:$0xf]
        %s1790 = scalar_lea.vmem %s396, 80 [#allocation10]
        %v1791 = vld [vmem:[%s1790] sm:$0xf]
        %v1792 = vld [vmem:[%s1790 + $0x4] sm:$0xf]
        %v1793 = vld [vmem:[%s1790 + $0x8] sm:$0xf]
        %v1794 = vld [vmem:[%s1790 + $0xc] sm:$0xf]
        %s1795 = scalar_lea.vmem %s396, 96 [#allocation10]
        %v1796 = vld [vmem:[%s1795] sm:$0xf]
        %v1797 = vld [vmem:[%s1795 + $0x4] sm:$0xf]
        %v1798 = vld [vmem:[%s1795 + $0x8] sm:$0xf]
        %v1799 = vld [vmem:[%s1795 + $0xc] sm:$0xf]
        %s1800 = scalar_lea.vmem %s396, 112 [#allocation10]
        %v1801 = vld [vmem:[%s1800] sm:$0xf]
        %v1802 = vld [vmem:[%s1800 + $0x4] sm:$0xf]
        %v1803 = vld [vmem:[%s1800 + $0x8] sm:$0xf]
        %v1804 = vld [vmem:[%s1800 + $0xc] sm:$0xf]
        %v1805 = vpack.c.bf16 %v1784, %v1783
        %v1806 = vpack.c.bf16 %v475, %v474
        %v1807 = vlaneseq
        %v1808 = vshrl.u32 %v1807, 7
        %v1809 = vsub.s32 4, %v1808
        %v1810 = vrot.slane %v480, %v1809
        %v1815 = vunpack.c.l.b16 %v1786
        %v1816 = vunpack.c.l.b16 %v1787
        %v1817 = vunpack.c.l.b16 %v1788
        %v1818 = vunpack.c.l.b16 %v1789
        %v1819 = vpack.c.b16 %v1816, %v1815
        %v1820 = vpack.c.b16 %v1818, %v1817
        %v1824 = vsel %vm482, %v1805, 0
        %1826 = vmatprep.subr.bf16.mxu0 0
        %1827 = vmatpush1.bf16.msra.mxu0 %v1819
        %1828 = vmatprep.subr.bf16.mxu0 0
        %1829 = vmatpush1.bf16.msra.mxu0 %v1820
        %1830 = vmatprep.subr.bf16.mxu0 0
        %1831 = vmatpush1.bf16.msra.mxu0 0
        %1832 = vmatprep.subr.bf16.mxu0 0
        %1833 = vmatpush1.bf16.msra.mxu0 0
        %1834 = vmatprep.subr.bf16.mxu0 0
        %1835 = vmatpush1.bf16.msra.mxu0 0
        %1836 = vmatprep.subr.bf16.mxu0 0
        %1837 = vmatpush1.bf16.msra.mxu0 0
        %1838 = vmatprep.subr.bf16.mxu0 0
        %1839 = vmatpush1.bf16.msra.mxu0 0
        %1840 = vmatprep.subr.bf16.mxu0 0
        %1841 = vmatpush1.bf16.msra.mxu0 0
        %1842 = vmatprep.subr.bf16.mxu0 0
        %1843 = vmatpush1.bf16.msra.mxu0 0
        %1844 = vmatprep.subr.bf16.mxu0 0
        %1845 = vmatpush1.bf16.msra.mxu0 0
        %1846 = vmatprep.subr.bf16.mxu0 0
        %1847 = vmatpush1.bf16.msra.mxu0 0
        %1848 = vmatprep.subr.bf16.mxu0 0
        %1849 = vmatpush1.bf16.msra.mxu0 0
        %1850 = vmatprep.subr.bf16.mxu0 0
        %1851 = vmatpush1.bf16.msra.mxu0 0
        %1852 = vmatprep.subr.bf16.mxu0 0
        %1853 = vmatpush1.bf16.msra.mxu0 0
        %1854 = vmatprep.subr.bf16.mxu0 0
        %1855 = vmatpush1.bf16.msra.mxu0 0
        %1856 = vmatprep.subr.bf16.mxu0 0
        %1857 = vmatpush1.bf16.msra.mxu0 0
        %1858 = vmatprep.mubr.bf16.mxu0 0
        %1859 = vmatmul.mubr.bf16.gmra.mrb[0].mxu0 %v1824
        %v1860 = vpop.f32.mrb[0].mxu0
        %v1861 = vadd.f32 %v1810, %v1860
        %v1862 = vpop.f32.mrb[0].mxu0
        %v1863 = vpop.f32.mrb[0].mxu0
        %v1864 = vadd.f32 %v1810, %v1863
        %v1865 = vpop.f32.mrb[0].mxu0
        %1866 = vdwg.mxu0
        %v1867 = vpack.c.bf16 %v1864, %v1861
        %v1868 = vlaneseq
        %v1869 = vshrl.u32 %v1868, 7
        %v1870 = vsub.s32 5, %v1869
        %v1871 = vrot.slane %v480, %v1870
        %v1876 = vunpack.c.l.b16 %v1791
        %v1877 = vunpack.c.l.b16 %v1792
        %v1878 = vunpack.c.l.b16 %v1793
        %v1879 = vunpack.c.l.b16 %v1794
        %v1880 = vpack.c.b16 %v1877, %v1876
        %v1881 = vpack.c.b16 %v1879, %v1878
        %v1885 = vsel %vm482, %v1806, 0
        %1887 = vmatprep.subr.bf16.mxu0 0
        %1888 = vmatpush1.bf16.msra.mxu0 %v1880
        %1889 = vmatprep.subr.bf16.mxu0 0
        %1890 = vmatpush1.bf16.msra.mxu0 %v1881
        %1891 = vmatprep.subr.bf16.mxu0 0
        %1892 = vmatpush1.bf16.msra.mxu0 0
        %1893 = vmatprep.subr.bf16.mxu0 0
        %1894 = vmatpush1.bf16.msra.mxu0 0
        %1895 = vmatprep.subr.bf16.mxu0 0
        %1896 = vmatpush1.bf16.msra.mxu0 0
        %1897 = vmatprep.subr.bf16.mxu0 0
        %1898 = vmatpush1.bf16.msra.mxu0 0
        %1899 = vmatprep.subr.bf16.mxu0 0
        %1900 = vmatpush1.bf16.msra.mxu0 0
        %1901 = vmatprep.subr.bf16.mxu0 0
        %1902 = vmatpush1.bf16.msra.mxu0 0
        %1903 = vmatprep.subr.bf16.mxu0 0
        %1904 = vmatpush1.bf16.msra.mxu0 0
        %1905 = vmatprep.subr.bf16.mxu0 0
        %1906 = vmatpush1.bf16.msra.mxu0 0
        %1907 = vmatprep.subr.bf16.mxu0 0
        %1908 = vmatpush1.bf16.msra.mxu0 0
        %1909 = vmatprep.subr.bf16.mxu0 0
        %1910 = vmatpush1.bf16.msra.mxu0 0
        %1911 = vmatprep.subr.bf16.mxu0 0
        %1912 = vmatpush1.bf16.msra.mxu0 0
        %1913 = vmatprep.subr.bf16.mxu0 0
        %1914 = vmatpush1.bf16.msra.mxu0 0
        %1915 = vmatprep.subr.bf16.mxu0 0
        %1916 = vmatpush1.bf16.msra.mxu0 0
        %1917 = vmatprep.subr.bf16.mxu0 0
        %1918 = vmatpush1.bf16.msra.mxu0 0
        %1919 = vmatprep.mubr.bf16.mxu0 0
        %1920 = vmatmul.mubr.bf16.gmra.mrb[0].mxu0 %v1885
        %v1921 = vpop.f32.mrb[0].mxu0
        %v1922 = vadd.f32 %v1871, %v1921
        %v1923 = vpop.f32.mrb[0].mxu0
        %v1924 = vpop.f32.mrb[0].mxu0
        %v1925 = vadd.f32 %v1871, %v1924
        %v1926 = vpop.f32.mrb[0].mxu0
        %1927 = vdwg.mxu0
        %v1928 = vpack.c.bf16 %v1925, %v1922
        %v1929 = vlaneseq
        %v1930 = vshrl.u32 %v1929, 7
        %v1931 = vsub.s32 6, %v1930
        %v1932 = vrot.slane %v480, %v1931
        %v1937 = vunpack.c.l.b16 %v1796
        %v1938 = vunpack.c.l.b16 %v1797
        %v1939 = vunpack.c.l.b16 %v1798
        %v1940 = vunpack.c.l.b16 %v1799
        %v1941 = vpack.c.b16 %v1938, %v1937
        %v1942 = vpack.c.b16 %v1940, %v1939
        %1945 = vmatprep.subr.bf16.mxu0 0
        %1946 = vmatpush1.bf16.msra.mxu0 %v1941
        %1947 = vmatprep.subr.bf16.mxu0 0
        %1948 = vmatpush1.bf16.msra.mxu0 %v1942
        %1949 = vmatprep.subr.bf16.mxu0 0
        %1950 = vmatpush1.bf16.msra.mxu0 0
        %1951 = vmatprep.subr.bf16.mxu0 0
        %1952 = vmatpush1.bf16.msra.mxu0 0
        %1953 = vmatprep.subr.bf16.mxu0 0
        %1954 = vmatpush1.bf16.msra.mxu0 0
        %1955 = vmatprep.subr.bf16.mxu0 0
        %1956 = vmatpush1.bf16.msra.mxu0 0
        %1957 = vmatprep.subr.bf16.mxu0 0
        %1958 = vmatpush1.bf16.msra.mxu0 0
        %1959 = vmatprep.subr.bf16.mxu0 0
        %1960 = vmatpush1.bf16.msra.mxu0 0
        %1961 = vmatprep.subr.bf16.mxu0 0
        %1962 = vmatpush1.bf16.msra.mxu0 0
        %1963 = vmatprep.subr.bf16.mxu0 0
        %1964 = vmatpush1.bf16.msra.mxu0 0
        %1965 = vmatprep.subr.bf16.mxu0 0
        %1966 = vmatpush1.bf16.msra.mxu0 0
        %1967 = vmatprep.subr.bf16.mxu0 0
        %1968 = vmatpush1.bf16.msra.mxu0 0
        %1969 = vmatprep.subr.bf16.mxu0 0
        %1970 = vmatpush1.bf16.msra.mxu0 0
        %1971 = vmatprep.subr.bf16.mxu0 0
        %1972 = vmatpush1.bf16.msra.mxu0 0
        %1973 = vmatprep.subr.bf16.mxu0 0
        %1974 = vmatpush1.bf16.msra.mxu0 0
        %1975 = vmatprep.subr.bf16.mxu0 0
        %1976 = vmatpush1.bf16.msra.mxu0 0
        %1977 = vmatprep.mubr.bf16.mxu0 0
        %1978 = vmatmul.mubr.bf16.gmra.mrb[0].mxu0 %v1885
        %v1979 = vpop.f32.mrb[0].mxu0
        %v1980 = vadd.f32 %v1932, %v1979
        %v1981 = vpop.f32.mrb[0].mxu0
        %v1982 = vpop.f32.mrb[0].mxu0
        %v1983 = vadd.f32 %v1932, %v1982
        %v1984 = vpop.f32.mrb[0].mxu0
        %1985 = vdwg.mxu0
        %v1986 = vpack.c.bf16 %v1983, %v1980
        %vm1987 = vcmp.ne.bf16.partialorder %v478, 0
        %v1989 = vsel %vm734, %v1867, 0
        %v1992 = vsel %vm734, %v1928, 0
        %1994 = vmatprep.subr.bf16.mxu0 0
        %1995 = vmatpush1.bf16.xpose.msra.mxu0 %v1992
        %1996 = vmatprep.subr.bf16.mxu0 0
        %1997 = vmatpush1.bf16.xpose.msra.mxu0 0
        %1998 = vmatprep.subr.bf16.mxu0 0
        %1999 = vmatpush1.bf16.xpose.msra.mxu0 0
        %2000 = vmatprep.subr.bf16.mxu0 0
        %2001 = vmatpush1.bf16.xpose.msra.mxu0 0
        %2002 = vmatprep.subr.bf16.mxu0 0
        %2003 = vmatpush1.bf16.xpose.msra.mxu0 0
        %2004 = vmatprep.subr.bf16.mxu0 0
        %2005 = vmatpush1.bf16.xpose.msra.mxu0 0
        %2006 = vmatprep.subr.bf16.mxu0 0
        %2007 = vmatpush1.bf16.xpose.msra.mxu0 0
        %2008 = vmatprep.subr.bf16.mxu0 0
        %2009 = vmatpush1.bf16.xpose.msra.mxu0 0
        %2010 = vmatprep.subr.bf16.mxu0 0
        %2011 = vmatpush1.bf16.xpose.msra.mxu0 0
        %2012 = vmatprep.subr.bf16.mxu0 0
        %2013 = vmatpush1.bf16.xpose.msra.mxu0 0
        %2014 = vmatprep.subr.bf16.mxu0 0
        %2015 = vmatpush1.bf16.xpose.msra.mxu0 0
        %2016 = vmatprep.subr.bf16.mxu0 0
        %2017 = vmatpush1.bf16.xpose.msra.mxu0 0
        %2018 = vmatprep.subr.bf16.mxu0 0
        %2019 = vmatpush1.bf16.xpose.msra.mxu0 0
        %2020 = vmatprep.subr.bf16.mxu0 0
        %2021 = vmatpush1.bf16.xpose.msra.mxu0 0
        %2022 = vmatprep.subr.bf16.mxu0 0
        %2023 = vmatpush1.bf16.xpose.msra.mxu0 0
        %2024 = vmatprep.subr.bf16.mxu0 0
        %2025 = vmatpush1.bf16.xpose.msra.mxu0 0
        %2026 = vmatprep.mubr.bf16.mxu0 0
        %2027 = vmatmul.mubr.bf16.gmra.mrb[0].mxu0 %v1989
        %v2028 = vpop.f32.mrb[0].mxu0
        %v2029 = vadd.f32 0.0, %v2028
        %v2030 = vpop.f32.mrb[0].mxu0
        %v2031 = vpop.f32.mrb[0].mxu0
        %v2032 = vpop.f32.mrb[0].mxu0
        %2033 = vdwg.mxu0
        %v2034 = vmul.f32 %v2029, 0.35355338
        %v2035 = vsel %vm1987, 65537, 0
        %v2036 = vunpack.c.l.b16 %v2035
        %vm2037 = vcmp.ne.s32.totalorder %v2036, 0
        %v2038 = vsel %vm2037, -1e+09, %v2034
        %v2039 = vsel %vm734, %v2038, -inf
        %2040 = vmax.xlane.f32.xlu0 %v2039
        %v2041 = vpop.xlane.xlu0 %2040
        %v2042 = vsub.f32 %v2038, %v2041
        %v2043 = vmul.f32 %v2042, 1.442695
        %v2044 = vpow.pop %v2043
        %v2045 = vsel %vm734, %v2044, 0.0
        %2046 = vadd.xlane.f32.xlu0 %v2045
        %v2047 = vpop.xlane.xlu0 %2046
        %v2048 = vrcp.pop %v2047
        %v2049 = vmul.f32 %v2044, %v2048
        %v2050 = vpack.c.bf16 %v2049, %v2049
        %v2052 = vsel %vm734, %v2050, 0
        %v2055 = vsel %vm801, %v1986, 0
        %2057 = vmatprep.subr.bf16.mxu0 0
        %2058 = vmatpush1.bf16.msra.mxu0 %v2055
        %2059 = vmatprep.subr.bf16.mxu0 0
        %2060 = vmatpush1.bf16.msra.mxu0 0
        %2061 = vmatprep.subr.bf16.mxu0 0
        %2062 = vmatpush1.bf16.msra.mxu0 0
        %2063 = vmatprep.subr.bf16.mxu0 0
        %2064 = vmatpush1.bf16.msra.mxu0 0
        %2065 = vmatprep.subr.bf16.mxu0 0
        %2066 = vmatpush1.bf16.msra.mxu0 0
        %2067 = vmatprep.subr.bf16.mxu0 0
        %2068 = vmatpush1.bf16.msra.mxu0 0
        %2069 = vmatprep.subr.bf16.mxu0 0
        %2070 = vmatpush1.bf16.msra.mxu0 0
        %2071 = vmatprep.subr.bf16.mxu0 0
        %2072 = vmatpush1.bf16.msra.mxu0 0
        %2073 = vmatprep.subr.bf16.mxu0 0
        %2074 = vmatpush1.bf16.msra.mxu0 0
        %2075 = vmatprep.subr.bf16.mxu0 0
        %2076 = vmatpush1.bf16.msra.mxu0 0
        %2077 = vmatprep.subr.bf16.mxu0 0
        %2078 = vmatpush1.bf16.msra.mxu0 0
        %2079 = vmatprep.subr.bf16.mxu0 0
        %2080 = vmatpush1.bf16.msra.mxu0 0
        %2081 = vmatprep.subr.bf16.mxu0 0
        %2082 = vmatpush1.bf16.msra.mxu0 0
        %2083 = vmatprep.subr.bf16.mxu0 0
        %2084 = vmatpush1.bf16.msra.mxu0 0
        %2085 = vmatprep.subr.bf16.mxu0 0
        %2086 = vmatpush1.bf16.msra.mxu0 0
        %2087 = vmatprep.subr.bf16.mxu0 0
        %2088 = vmatpush1.bf16.msra.mxu0 0
        %2089 = vmatprep.mubr.bf16.mxu0 0
        %2090 = vmatmul.mubr.bf16.gmra.mrb[0].mxu0 %v2052
        %v2091 = vpop.f32.mrb[0].mxu0
        %v2092 = vadd.f32 0.0, %v2091
        %v2093 = vpop.f32.mrb[0].mxu0
        %v2094 = vpop.f32.mrb[0].mxu0
        %v2095 = vpop.f32.mrb[0].mxu0
        %2096 = vdwg.mxu0
        %2097 = vst.msk [vmem:[#allocation3] sm:$0xff] %vm734, %v2092
        %2099 = vrot.lane.b32.xlu0 %v1867, 120
        %v2100 = vpop.permute.xlu0 %2099
        %2102 = vrot.lane.b32.xlu0 %v1928, 120
        %v2103 = vpop.permute.xlu0 %2102
        %v2105 = vsel %vm734, %v2100, 0
        %v2108 = vsel %vm734, %v2103, 0
        %2110 = vmatprep.subr.bf16.mxu0 0
        %2111 = vmatpush1.bf16.xpose.msra.mxu0 %v2108
        %2112 = vmatprep.subr.bf16.mxu0 0
        %2113 = vmatpush1.bf16.xpose.msra.mxu0 0
        %2114 = vmatprep.subr.bf16.mxu0 0
        %2115 = vmatpush1.bf16.xpose.msra.mxu0 0
        %2116 = vmatprep.subr.bf16.mxu0 0
        %2117 = vmatpush1.bf16.xpose.msra.mxu0 0
        %2118 = vmatprep.subr.bf16.mxu0 0
        %2119 = vmatpush1.bf16.xpose.msra.mxu0 0
        %2120 = vmatprep.subr.bf16.mxu0 0
        %2121 = vmatpush1.bf16.xpose.msra.mxu0 0
        %2122 = vmatprep.subr.bf16.mxu0 0
        %2123 = vmatpush1.bf16.xpose.msra.mxu0 0
        %2124 = vmatprep.subr.bf16.mxu0 0
        %2125 = vmatpush1.bf16.xpose.msra.mxu0 0
        %2126 = vmatprep.subr.bf16.mxu0 0
        %2127 = vmatpush1.bf16.xpose.msra.mxu0 0
        %2128 = vmatprep.subr.bf16.mxu0 0
        %2129 = vmatpush1.bf16.xpose.msra.mxu0 0
        %2130 = vmatprep.subr.bf16.mxu0 0
        %2131 = vmatpush1.bf16.xpose.msra.mxu0 0
        %2132 = vmatprep.subr.bf16.mxu0 0
        %2133 = vmatpush1.bf16.xpose.msra.mxu0 0
        %2134 = vmatprep.subr.bf16.mxu0 0
        %2135 = vmatpush1.bf16.xpose.msra.mxu0 0
        %2136 = vmatprep.subr.bf16.mxu0 0
        %2137 = vmatpush1.bf16.xpose.msra.mxu0 0
        %2138 = vmatprep.subr.bf16.mxu0 0
        %2139 = vmatpush1.bf16.xpose.msra.mxu0 0
        %2140 = vmatprep.subr.bf16.mxu0 0
        %2141 = vmatpush1.bf16.xpose.msra.mxu0 0
        %2142 = vmatprep.mubr.bf16.mxu0 0
        %2143 = vmatmul.mubr.bf16.gmra.mrb[0].mxu0 %v2105
        %v2144 = vpop.f32.mrb[0].mxu0
        %v2145 = vadd.f32 0.0, %v2144
        %v2146 = vpop.f32.mrb[0].mxu0
        %v2147 = vpop.f32.mrb[0].mxu0
        %v2148 = vpop.f32.mrb[0].mxu0
        %2149 = vdwg.mxu0
        %v2150 = vmul.f32 %v2145, 0.35355338
        %v2151 = vsel %vm2037, -1e+09, %v2150
        %v2152 = vsel %vm734, %v2151, -inf
        %2153 = vmax.xlane.f32.xlu0 %v2152
        %v2154 = vpop.xlane.xlu0 %2153
        %v2155 = vsub.f32 %v2151, %v2154
        %v2156 = vmul.f32 %v2155, 1.442695
        %v2157 = vpow.pop %v2156
        %v2158 = vsel %vm734, %v2157, 0.0
        %2159 = vadd.xlane.f32.xlu0 %v2158
        %v2160 = vpop.xlane.xlu0 %2159
        %v2161 = vrcp.pop %v2160
        %v2162 = vmul.f32 %v2157, %v2161
        %v2163 = vpack.c.bf16 %v2162, %v2162
        %2165 = vrot.lane.b32.xlu0 %v1986, 120
        %v2166 = vpop.permute.xlu0 %2165
        %v2168 = vsel %vm734, %v2163, 0
        %v2171 = vsel %vm801, %v2166, 0
        %2173 = vmatprep.subr.bf16.mxu0 0
        %2174 = vmatpush1.bf16.msra.mxu0 %v2171
        %2175 = vmatprep.subr.bf16.mxu0 0
        %2176 = vmatpush1.bf16.msra.mxu0 0
        %2177 = vmatprep.subr.bf16.mxu0 0
        %2178 = vmatpush1.bf16.msra.mxu0 0
        %2179 = vmatprep.subr.bf16.mxu0 0
        %2180 = vmatpush1.bf16.msra.mxu0 0
        %2181 = vmatprep.subr.bf16.mxu0 0
        %2182 = vmatpush1.bf16.msra.mxu0 0
        %2183 = vmatprep.subr.bf16.mxu0 0
        %2184 = vmatpush1.bf16.msra.mxu0 0
        %2185 = vmatprep.subr.bf16.mxu0 0
        %2186 = vmatpush1.bf16.msra.mxu0 0
        %2187 = vmatprep.subr.bf16.mxu0 0
        %2188 = vmatpush1.bf16.msra.mxu0 0
        %2189 = vmatprep.subr.bf16.mxu0 0
        %2190 = vmatpush1.bf16.msra.mxu0 0
        %2191 = vmatprep.subr.bf16.mxu0 0
        %2192 = vmatpush1.bf16.msra.mxu0 0
        %2193 = vmatprep.subr.bf16.mxu0 0
        %2194 = vmatpush1.bf16.msra.mxu0 0
        %2195 = vmatprep.subr.bf16.mxu0 0
        %2196 = vmatpush1.bf16.msra.mxu0 0
        %2197 = vmatprep.subr.bf16.mxu0 0
        %2198 = vmatpush1.bf16.msra.mxu0 0
        %2199 = vmatprep.subr.bf16.mxu0 0
        %2200 = vmatpush1.bf16.msra.mxu0 0
        %2201 = vmatprep.subr.bf16.mxu0 0
        %2202 = vmatpush1.bf16.msra.mxu0 0
        %2203 = vmatprep.subr.bf16.mxu0 0
        %2204 = vmatpush1.bf16.msra.mxu0 0
        %2205 = vmatprep.mubr.bf16.mxu0 0
        %2206 = vmatmul.mubr.bf16.gmra.mrb[0].mxu0 %v2168
        %v2207 = vpop.f32.mrb[0].mxu0
        %v2208 = vadd.f32 0.0, %v2207
        %v2209 = vpop.f32.mrb[0].mxu0
        %v2210 = vpop.f32.mrb[0].mxu0
        %v2211 = vpop.f32.mrb[0].mxu0
        %2212 = vdwg.mxu0
        %2214 = vrot.lane.b32.xlu0 %v2208, 8
        %v2215 = vpop.permute.xlu0 %2214
        %2217 = vst.msk [vmem:[#allocation3] sm:$0xff] %vm965, %v2215
        %2218 = vrot.lane.b32.xlu0 %v1867, 112
        %v2219 = vpop.permute.xlu0 %2218
        %2220 = vrot.lane.b32.xlu0 %v1928, 112
        %v2221 = vpop.permute.xlu0 %2220
        %v2223 = vsel %vm734, %v2219, 0
        %v2226 = vsel %vm734, %v2221, 0
        %2228 = vmatprep.subr.bf16.mxu0 0
        %2229 = vmatpush1.bf16.xpose.msra.mxu0 %v2226
        %2230 = vmatprep.subr.bf16.mxu0 0
        %2231 = vmatpush1.bf16.xpose.msra.mxu0 0
        %2232 = vmatprep.subr.bf16.mxu0 0
        %2233 = vmatpush1.bf16.xpose.msra.mxu0 0
        %2234 = vmatprep.subr.bf16.mxu0 0
        %2235 = vmatpush1.bf16.xpose.msra.mxu0 0
        %2236 = vmatprep.subr.bf16.mxu0 0
        %2237 = vmatpush1.bf16.xpose.msra.mxu0 0
        %2238 = vmatprep.subr.bf16.mxu0 0
        %2239 = vmatpush1.bf16.xpose.msra.mxu0 0
        %2240 = vmatprep.subr.bf16.mxu0 0
        %2241 = vmatpush1.bf16.xpose.msra.mxu0 0
        %2242 = vmatprep.subr.bf16.mxu0 0
        %2243 = vmatpush1.bf16.xpose.msra.mxu0 0
        %2244 = vmatprep.subr.bf16.mxu0 0
        %2245 = vmatpush1.bf16.xpose.msra.mxu0 0
        %2246 = vmatprep.subr.bf16.mxu0 0
        %2247 = vmatpush1.bf16.xpose.msra.mxu0 0
        %2248 = vmatprep.subr.bf16.mxu0 0
        %2249 = vmatpush1.bf16.xpose.msra.mxu0 0
        %2250 = vmatprep.subr.bf16.mxu0 0
        %2251 = vmatpush1.bf16.xpose.msra.mxu0 0
        %2252 = vmatprep.subr.bf16.mxu0 0
        %2253 = vmatpush1.bf16.xpose.msra.mxu0 0
        %2254 = vmatprep.subr.bf16.mxu0 0
        %2255 = vmatpush1.bf16.xpose.msra.mxu0 0
        %2256 = vmatprep.subr.bf16.mxu0 0
        %2257 = vmatpush1.bf16.xpose.msra.mxu0 0
        %2258 = vmatprep.subr.bf16.mxu0 0
        %2259 = vmatpush1.bf16.xpose.msra.mxu0 0
        %2260 = vmatprep.mubr.bf16.mxu0 0
        %2261 = vmatmul.mubr.bf16.gmra.mrb[0].mxu0 %v2223
        %v2262 = vpop.f32.mrb[0].mxu0
        %v2263 = vadd.f32 0.0, %v2262
        %v2264 = vpop.f32.mrb[0].mxu0
        %v2265 = vpop.f32.mrb[0].mxu0
        %v2266 = vpop.f32.mrb[0].mxu0
        %2267 = vdwg.mxu0
        %v2268 = vmul.f32 %v2263, 0.35355338
        %v2269 = vsel %vm2037, -1e+09, %v2268
        %v2270 = vsel %vm734, %v2269, -inf
        %2271 = vmax.xlane.f32.xlu0 %v2270
        %v2272 = vpop.xlane.xlu0 %2271
        %v2273 = vsub.f32 %v2269, %v2272
        %v2274 = vmul.f32 %v2273, 1.442695
        %v2275 = vpow.pop %v2274
        %v2276 = vsel %vm734, %v2275, 0.0
        %2277 = vadd.xlane.f32.xlu0 %v2276
        %v2278 = vpop.xlane.xlu0 %2277
        %v2279 = vrcp.pop %v2278
        %v2280 = vmul.f32 %v2275, %v2279
        %v2281 = vpack.c.bf16 %v2280, %v2280
        %2282 = vrot.lane.b32.xlu0 %v1986, 112
        %v2283 = vpop.permute.xlu0 %2282
        %v2285 = vsel %vm734, %v2281, 0
        %v2288 = vsel %vm801, %v2283, 0
        %2290 = vmatprep.subr.bf16.mxu0 0
        %2291 = vmatpush1.bf16.msra.mxu0 %v2288
        %2292 = vmatprep.subr.bf16.mxu0 0
        %2293 = vmatpush1.bf16.msra.mxu0 0
        %2294 = vmatprep.subr.bf16.mxu0 0
        %2295 = vmatpush1.bf16.msra.mxu0 0
        %2296 = vmatprep.subr.bf16.mxu0 0
        %2297 = vmatpush1.bf16.msra.mxu0 0
        %2298 = vmatprep.subr.bf16.mxu0 0
        %2299 = vmatpush1.bf16.msra.mxu0 0
        %2300 = vmatprep.subr.bf16.mxu0 0
        %2301 = vmatpush1.bf16.msra.mxu0 0
        %2302 = vmatprep.subr.bf16.mxu0 0
        %2303 = vmatpush1.bf16.msra.mxu0 0
        %2304 = vmatprep.subr.bf16.mxu0 0
        %2305 = vmatpush1.bf16.msra.mxu0 0
        %2306 = vmatprep.subr.bf16.mxu0 0
        %2307 = vmatpush1.bf16.msra.mxu0 0
        %2308 = vmatprep.subr.bf16.mxu0 0
        %2309 = vmatpush1.bf16.msra.mxu0 0
        %2310 = vmatprep.subr.bf16.mxu0 0
        %2311 = vmatpush1.bf16.msra.mxu0 0
        %2312 = vmatprep.subr.bf16.mxu0 0
        %2313 = vmatpush1.bf16.msra.mxu0 0
        %2314 = vmatprep.subr.bf16.mxu0 0
        %2315 = vmatpush1.bf16.msra.mxu0 0
        %2316 = vmatprep.subr.bf16.mxu0 0
        %2317 = vmatpush1.bf16.msra.mxu0 0
        %2318 = vmatprep.subr.bf16.mxu0 0
        %2319 = vmatpush1.bf16.msra.mxu0 0
        %2320 = vmatprep.subr.bf16.mxu0 0
        %2321 = vmatpush1.bf16.msra.mxu0 0
        %2322 = vmatprep.mubr.bf16.mxu0 0
        %2323 = vmatmul.mubr.bf16.gmra.mrb[0].mxu0 %v2285
        %v2324 = vpop.f32.mrb[0].mxu0
        %v2325 = vadd.f32 0.0, %v2324
        %v2326 = vpop.f32.mrb[0].mxu0
        %v2327 = vpop.f32.mrb[0].mxu0
        %v2328 = vpop.f32.mrb[0].mxu0
        %2329 = vdwg.mxu0
        %2331 = vrot.lane.b32.xlu0 %v2325, 16
        %v2332 = vpop.permute.xlu0 %2331
        %2334 = vst.msk [vmem:[#allocation3] sm:$0xff] %vm1083, %v2332
        %2335 = vrot.lane.b32.xlu0 %v1867, 104
        %v2336 = vpop.permute.xlu0 %2335
        %2337 = vrot.lane.b32.xlu0 %v1928, 104
        %v2338 = vpop.permute.xlu0 %2337
        %v2340 = vsel %vm734, %v2336, 0
        %v2343 = vsel %vm734, %v2338, 0
        %2345 = vmatprep.subr.bf16.mxu0 0
        %2346 = vmatpush1.bf16.xpose.msra.mxu0 %v2343
        %2347 = vmatprep.subr.bf16.mxu0 0
        %2348 = vmatpush1.bf16.xpose.msra.mxu0 0
        %2349 = vmatprep.subr.bf16.mxu0 0
        %2350 = vmatpush1.bf16.xpose.msra.mxu0 0
        %2351 = vmatprep.subr.bf16.mxu0 0
        %2352 = vmatpush1.bf16.xpose.msra.mxu0 0
        %2353 = vmatprep.subr.bf16.mxu0 0
        %2354 = vmatpush1.bf16.xpose.msra.mxu0 0
        %2355 = vmatprep.subr.bf16.mxu0 0
        %2356 = vmatpush1.bf16.xpose.msra.mxu0 0
        %2357 = vmatprep.subr.bf16.mxu0 0
        %2358 = vmatpush1.bf16.xpose.msra.mxu0 0
        %2359 = vmatprep.subr.bf16.mxu0 0
        %2360 = vmatpush1.bf16.xpose.msra.mxu0 0
        %2361 = vmatprep.subr.bf16.mxu0 0
        %2362 = vmatpush1.bf16.xpose.msra.mxu0 0
        %2363 = vmatprep.subr.bf16.mxu0 0
        %2364 = vmatpush1.bf16.xpose.msra.mxu0 0
        %2365 = vmatprep.subr.bf16.mxu0 0
        %2366 = vmatpush1.bf16.xpose.msra.mxu0 0
        %2367 = vmatprep.subr.bf16.mxu0 0
        %2368 = vmatpush1.bf16.xpose.msra.mxu0 0
        %2369 = vmatprep.subr.bf16.mxu0 0
        %2370 = vmatpush1.bf16.xpose.msra.mxu0 0
        %2371 = vmatprep.subr.bf16.mxu0 0
        %2372 = vmatpush1.bf16.xpose.msra.mxu0 0
        %2373 = vmatprep.subr.bf16.mxu0 0
        %2374 = vmatpush1.bf16.xpose.msra.mxu0 0
        %2375 = vmatprep.subr.bf16.mxu0 0
        %2376 = vmatpush1.bf16.xpose.msra.mxu0 0
        %2377 = vmatprep.mubr.bf16.mxu0 0
        %2378 = vmatmul.mubr.bf16.gmra.mrb[0].mxu0 %v2340
        %v2379 = vpop.f32.mrb[0].mxu0
        %v2380 = vadd.f32 0.0, %v2379
        %v2381 = vpop.f32.mrb[0].mxu0
        %v2382 = vpop.f32.mrb[0].mxu0
        %v2383 = vpop.f32.mrb[0].mxu0
        %2384 = vdwg.mxu0
        %v2385 = vmul.f32 %v2380, 0.35355338
        %v2386 = vsel %vm2037, -1e+09, %v2385
        %v2387 = vsel %vm734, %v2386, -inf
        %2388 = vmax.xlane.f32.xlu0 %v2387
        %v2389 = vpop.xlane.xlu0 %2388
        %v2390 = vsub.f32 %v2386, %v2389
        %v2391 = vmul.f32 %v2390, 1.442695
        %v2392 = vpow.pop %v2391
        %v2393 = vsel %vm734, %v2392, 0.0
        %2394 = vadd.xlane.f32.xlu0 %v2393
        %v2395 = vpop.xlane.xlu0 %2394
        %v2396 = vrcp.pop %v2395
        %v2397 = vmul.f32 %v2392, %v2396
        %v2398 = vpack.c.bf16 %v2397, %v2397
        %2399 = vrot.lane.b32.xlu0 %v1986, 104
        %v2400 = vpop.permute.xlu0 %2399
        %v2402 = vsel %vm734, %v2398, 0
        %v2405 = vsel %vm801, %v2400, 0
        %2407 = vmatprep.subr.bf16.mxu0 0
        %2408 = vmatpush1.bf16.msra.mxu0 %v2405
        %2409 = vmatprep.subr.bf16.mxu0 0
        %2410 = vmatpush1.bf16.msra.mxu0 0
        %2411 = vmatprep.subr.bf16.mxu0 0
        %2412 = vmatpush1.bf16.msra.mxu0 0
        %2413 = vmatprep.subr.bf16.mxu0 0
        %2414 = vmatpush1.bf16.msra.mxu0 0
        %2415 = vmatprep.subr.bf16.mxu0 0
        %2416 = vmatpush1.bf16.msra.mxu0 0
        %2417 = vmatprep.subr.bf16.mxu0 0
        %2418 = vmatpush1.bf16.msra.mxu0 0
        %2419 = vmatprep.subr.bf16.mxu0 0
        %2420 = vmatpush1.bf16.msra.mxu0 0
        %2421 = vmatprep.subr.bf16.mxu0 0
        %2422 = vmatpush1.bf16.msra.mxu0 0
        %2423 = vmatprep.subr.bf16.mxu0 0
        %2424 = vmatpush1.bf16.msra.mxu0 0
        %2425 = vmatprep.subr.bf16.mxu0 0
        %2426 = vmatpush1.bf16.msra.mxu0 0
        %2427 = vmatprep.subr.bf16.mxu0 0
        %2428 = vmatpush1.bf16.msra.mxu0 0
        %2429 = vmatprep.subr.bf16.mxu0 0
        %2430 = vmatpush1.bf16.msra.mxu0 0
        %2431 = vmatprep.subr.bf16.mxu0 0
        %2432 = vmatpush1.bf16.msra.mxu0 0
        %2433 = vmatprep.subr.bf16.mxu0 0
        %2434 = vmatpush1.bf16.msra.mxu0 0
        %2435 = vmatprep.subr.bf16.mxu0 0
        %2436 = vmatpush1.bf16.msra.mxu0 0
        %2437 = vmatprep.subr.bf16.mxu0 0
        %2438 = vmatpush1.bf16.msra.mxu0 0
        %2439 = vmatprep.mubr.bf16.mxu0 0
        %2440 = vmatmul.mubr.bf16.gmra.mrb[0].mxu0 %v2402
        %v2441 = vpop.f32.mrb[0].mxu0
        %v2442 = vadd.f32 0.0, %v2441
        %v2443 = vpop.f32.mrb[0].mxu0
        %v2444 = vpop.f32.mrb[0].mxu0
        %v2445 = vpop.f32.mrb[0].mxu0
        %2446 = vdwg.mxu0
        %2448 = vrot.lane.b32.xlu0 %v2442, 24
        %v2449 = vpop.permute.xlu0 %2448
        %2451 = vst.msk [vmem:[#allocation3] sm:$0xff] %vm1201, %v2449
        %vm2452 = vcmp.ne.bf16.partialorder %v479, 0
        %v2453 = vrot.slane %v1867, 4
        %v2454 = vrot.slane %v1928, 4
        %v2456 = vsel %vm734, %v2453, 0
        %v2459 = vsel %vm734, %v2454, 0
        %2461 = vmatprep.subr.bf16.mxu0 0
        %2462 = vmatpush1.bf16.xpose.msra.mxu0 %v2459
        %2463 = vmatprep.subr.bf16.mxu0 0
        %2464 = vmatpush1.bf16.xpose.msra.mxu0 0
        %2465 = vmatprep.subr.bf16.mxu0 0
        %2466 = vmatpush1.bf16.xpose.msra.mxu0 0
        %2467 = vmatprep.subr.bf16.mxu0 0
        %2468 = vmatpush1.bf16.xpose.msra.mxu0 0
        %2469 = vmatprep.subr.bf16.mxu0 0
        %2470 = vmatpush1.bf16.xpose.msra.mxu0 0
        %2471 = vmatprep.subr.bf16.mxu0 0
        %2472 = vmatpush1.bf16.xpose.msra.mxu0 0
        %2473 = vmatprep.subr.bf16.mxu0 0
        %2474 = vmatpush1.bf16.xpose.msra.mxu0 0
        %2475 = vmatprep.subr.bf16.mxu0 0
        %2476 = vmatpush1.bf16.xpose.msra.mxu0 0
        %2477 = vmatprep.subr.bf16.mxu0 0
        %2478 = vmatpush1.bf16.xpose.msra.mxu0 0
        %2479 = vmatprep.subr.bf16.mxu0 0
        %2480 = vmatpush1.bf16.xpose.msra.mxu0 0
        %2481 = vmatprep.subr.bf16.mxu0 0
        %2482 = vmatpush1.bf16.xpose.msra.mxu0 0
        %2483 = vmatprep.subr.bf16.mxu0 0
        %2484 = vmatpush1.bf16.xpose.msra.mxu0 0
        %2485 = vmatprep.subr.bf16.mxu0 0
        %2486 = vmatpush1.bf16.xpose.msra.mxu0 0
        %2487 = vmatprep.subr.bf16.mxu0 0
        %2488 = vmatpush1.bf16.xpose.msra.mxu0 0
        %2489 = vmatprep.subr.bf16.mxu0 0
        %2490 = vmatpush1.bf16.xpose.msra.mxu0 0
        %2491 = vmatprep.subr.bf16.mxu0 0
        %2492 = vmatpush1.bf16.xpose.msra.mxu0 0
        %2493 = vmatprep.mubr.bf16.mxu0 0
        %2494 = vmatmul.mubr.bf16.gmra.mrb[0].mxu0 %v2456
        %v2495 = vpop.f32.mrb[0].mxu0
        %v2496 = vadd.f32 0.0, %v2495
        %v2497 = vpop.f32.mrb[0].mxu0
        %v2498 = vpop.f32.mrb[0].mxu0
        %v2499 = vpop.f32.mrb[0].mxu0
        %2500 = vdwg.mxu0
        %v2501 = vmul.f32 %v2496, 0.35355338
        %v2502 = vsel %vm2452, 65537, 0
        %v2503 = vunpack.c.l.b16 %v2502
        %vm2504 = vcmp.ne.s32.totalorder %v2503, 0
        %v2505 = vsel %vm2504, -1e+09, %v2501
        %v2506 = vsel %vm734, %v2505, -inf
        %2507 = vmax.xlane.f32.xlu0 %v2506
        %v2508 = vpop.xlane.xlu0 %2507
        %v2509 = vsub.f32 %v2505, %v2508
        %v2510 = vmul.f32 %v2509, 1.442695
        %v2511 = vpow.pop %v2510
        %v2512 = vsel %vm734, %v2511, 0.0
        %2513 = vadd.xlane.f32.xlu0 %v2512
        %v2514 = vpop.xlane.xlu0 %2513
        %v2515 = vrcp.pop %v2514
        %v2516 = vmul.f32 %v2511, %v2515
        %v2517 = vpack.c.bf16 %v2516, %v2516
        %v2518 = vrot.slane %v1986, 4
        %v2520 = vsel %vm734, %v2517, 0
        %v2523 = vsel %vm801, %v2518, 0
        %2525 = vmatprep.subr.bf16.mxu0 0
        %2526 = vmatpush1.bf16.msra.mxu0 %v2523
        %2527 = vmatprep.subr.bf16.mxu0 0
        %2528 = vmatpush1.bf16.msra.mxu0 0
        %2529 = vmatprep.subr.bf16.mxu0 0
        %2530 = vmatpush1.bf16.msra.mxu0 0
        %2531 = vmatprep.subr.bf16.mxu0 0
        %2532 = vmatpush1.bf16.msra.mxu0 0
        %2533 = vmatprep.subr.bf16.mxu0 0
        %2534 = vmatpush1.bf16.msra.mxu0 0
        %2535 = vmatprep.subr.bf16.mxu0 0
        %2536 = vmatpush1.bf16.msra.mxu0 0
        %2537 = vmatprep.subr.bf16.mxu0 0
        %2538 = vmatpush1.bf16.msra.mxu0 0
        %2539 = vmatprep.subr.bf16.mxu0 0
        %2540 = vmatpush1.bf16.msra.mxu0 0
        %2541 = vmatprep.subr.bf16.mxu0 0
        %2542 = vmatpush1.bf16.msra.mxu0 0
        %2543 = vmatprep.subr.bf16.mxu0 0
        %2544 = vmatpush1.bf16.msra.mxu0 0
        %2545 = vmatprep.subr.bf16.mxu0 0
        %2546 = vmatpush1.bf16.msra.mxu0 0
        %2547 = vmatprep.subr.bf16.mxu0 0
        %2548 = vmatpush1.bf16.msra.mxu0 0
        %2549 = vmatprep.subr.bf16.mxu0 0
        %2550 = vmatpush1.bf16.msra.mxu0 0
        %2551 = vmatprep.subr.bf16.mxu0 0
        %2552 = vmatpush1.bf16.msra.mxu0 0
        %2553 = vmatprep.subr.bf16.mxu0 0
        %2554 = vmatpush1.bf16.msra.mxu0 0
        %2555 = vmatprep.subr.bf16.mxu0 0
        %2556 = vmatpush1.bf16.msra.mxu0 0
        %2557 = vmatprep.mubr.bf16.mxu0 0
        %2558 = vmatmul.mubr.bf16.gmra.mrb[0].mxu0 %v2520
        %v2559 = vpop.f32.mrb[0].mxu0
        %v2560 = vadd.f32 0.0, %v2559
        %v2561 = vpop.f32.mrb[0].mxu0
        %v2562 = vpop.f32.mrb[0].mxu0
        %v2563 = vpop.f32.mrb[0].mxu0
        %2564 = vdwg.mxu0
        %2565 = vst.msk [vmem:[#allocation3 + $0x8] sm:$0xff] %vm734, %v2560
        %2566 = vrot.lane.b32.xlu0 %v2453, 120
        %v2567 = vpop.permute.xlu0 %2566
        %2568 = vrot.lane.b32.xlu0 %v2454, 120
        %v2569 = vpop.permute.xlu0 %2568
        %v2571 = vsel %vm734, %v2567, 0
        %v2574 = vsel %vm734, %v2569, 0
        %2576 = vmatprep.subr.bf16.mxu0 0
        %2577 = vmatpush1.bf16.xpose.msra.mxu0 %v2574
        %2578 = vmatprep.subr.bf16.mxu0 0
        %2579 = vmatpush1.bf16.xpose.msra.mxu0 0
        %2580 = vmatprep.subr.bf16.mxu0 0
        %2581 = vmatpush1.bf16.xpose.msra.mxu0 0
        %2582 = vmatprep.subr.bf16.mxu0 0
        %2583 = vmatpush1.bf16.xpose.msra.mxu0 0
        %2584 = vmatprep.subr.bf16.mxu0 0
        %2585 = vmatpush1.bf16.xpose.msra.mxu0 0
        %2586 = vmatprep.subr.bf16.mxu0 0
        %2587 = vmatpush1.bf16.xpose.msra.mxu0 0
        %2588 = vmatprep.subr.bf16.mxu0 0
        %2589 = vmatpush1.bf16.xpose.msra.mxu0 0
        %2590 = vmatprep.subr.bf16.mxu0 0
        %2591 = vmatpush1.bf16.xpose.msra.mxu0 0
        %2592 = vmatprep.subr.bf16.mxu0 0
        %2593 = vmatpush1.bf16.xpose.msra.mxu0 0
        %2594 = vmatprep.subr.bf16.mxu0 0
        %2595 = vmatpush1.bf16.xpose.msra.mxu0 0
        %2596 = vmatprep.subr.bf16.mxu0 0
        %2597 = vmatpush1.bf16.xpose.msra.mxu0 0
        %2598 = vmatprep.subr.bf16.mxu0 0
        %2599 = vmatpush1.bf16.xpose.msra.mxu0 0
        %2600 = vmatprep.subr.bf16.mxu0 0
        %2601 = vmatpush1.bf16.xpose.msra.mxu0 0
        %2602 = vmatprep.subr.bf16.mxu0 0
        %2603 = vmatpush1.bf16.xpose.msra.mxu0 0
        %2604 = vmatprep.subr.bf16.mxu0 0
        %2605 = vmatpush1.bf16.xpose.msra.mxu0 0
        %2606 = vmatprep.subr.bf16.mxu0 0
        %2607 = vmatpush1.bf16.xpose.msra.mxu0 0
        %2608 = vmatprep.mubr.bf16.mxu0 0
        %2609 = vmatmul.mubr.bf16.gmra.mrb[0].mxu0 %v2571
        %v2610 = vpop.f32.mrb[0].mxu0
        %v2611 = vadd.f32 0.0, %v2610
        %v2612 = vpop.f32.mrb[0].mxu0
        %v2613 = vpop.f32.mrb[0].mxu0
        %v2614 = vpop.f32.mrb[0].mxu0
        %2615 = vdwg.mxu0
        %v2616 = vmul.f32 %v2611, 0.35355338
        %v2617 = vsel %vm2504, -1e+09, %v2616
        %v2618 = vsel %vm734, %v2617, -inf
        %2619 = vmax.xlane.f32.xlu0 %v2618
        %v2620 = vpop.xlane.xlu0 %2619
        %v2621 = vsub.f32 %v2617, %v2620
        %v2622 = vmul.f32 %v2621, 1.442695
        %v2623 = vpow.pop %v2622
        %v2624 = vsel %vm734, %v2623, 0.0
        %2625 = vadd.xlane.f32.xlu0 %v2624
        %v2626 = vpop.xlane.xlu0 %2625
        %v2627 = vrcp.pop %v2626
        %v2628 = vmul.f32 %v2623, %v2627
        %v2629 = vpack.c.bf16 %v2628, %v2628
        %2630 = vrot.lane.b32.xlu0 %v2518, 120
        %v2631 = vpop.permute.xlu0 %2630
        %v2633 = vsel %vm734, %v2629, 0
        %v2636 = vsel %vm801, %v2631, 0
        %2638 = vmatprep.subr.bf16.mxu0 0
        %2639 = vmatpush1.bf16.msra.mxu0 %v2636
        %2640 = vmatprep.subr.bf16.mxu0 0
        %2641 = vmatpush1.bf16.msra.mxu0 0
        %2642 = vmatprep.subr.bf16.mxu0 0
        %2643 = vmatpush1.bf16.msra.mxu0 0
        %2644 = vmatprep.subr.bf16.mxu0 0
        %2645 = vmatpush1.bf16.msra.mxu0 0
        %2646 = vmatprep.subr.bf16.mxu0 0
        %2647 = vmatpush1.bf16.msra.mxu0 0
        %2648 = vmatprep.subr.bf16.mxu0 0
        %2649 = vmatpush1.bf16.msra.mxu0 0
        %2650 = vmatprep.subr.bf16.mxu0 0
        %2651 = vmatpush1.bf16.msra.mxu0 0
        %2652 = vmatprep.subr.bf16.mxu0 0
        %2653 = vmatpush1.bf16.msra.mxu0 0
        %2654 = vmatprep.subr.bf16.mxu0 0
        %2655 = vmatpush1.bf16.msra.mxu0 0
        %2656 = vmatprep.subr.bf16.mxu0 0
        %2657 = vmatpush1.bf16.msra.mxu0 0
        %2658 = vmatprep.subr.bf16.mxu0 0
        %2659 = vmatpush1.bf16.msra.mxu0 0
        %2660 = vmatprep.subr.bf16.mxu0 0
        %2661 = vmatpush1.bf16.msra.mxu0 0
        %2662 = vmatprep.subr.bf16.mxu0 0
        %2663 = vmatpush1.bf16.msra.mxu0 0
        %2664 = vmatprep.subr.bf16.mxu0 0
        %2665 = vmatpush1.bf16.msra.mxu0 0
        %2666 = vmatprep.subr.bf16.mxu0 0
        %2667 = vmatpush1.bf16.msra.mxu0 0
        %2668 = vmatprep.subr.bf16.mxu0 0
        %2669 = vmatpush1.bf16.msra.mxu0 0
        %2670 = vmatprep.mubr.bf16.mxu0 0
        %2671 = vmatmul.mubr.bf16.gmra.mrb[0].mxu0 %v2633
        %v2672 = vpop.f32.mrb[0].mxu0
        %v2673 = vadd.f32 0.0, %v2672
        %v2674 = vpop.f32.mrb[0].mxu0
        %v2675 = vpop.f32.mrb[0].mxu0
        %v2676 = vpop.f32.mrb[0].mxu0
        %2677 = vdwg.mxu0
        %2679 = vrot.lane.b32.xlu0 %v2673, 8
        %v2680 = vpop.permute.xlu0 %2679
        %2682 = vst.msk [vmem:[#allocation3 + $0x8] sm:$0xff] %vm965, %v2680
        %2683 = vrot.lane.b32.xlu0 %v2453, 112
        %v2684 = vpop.permute.xlu0 %2683
        %2685 = vrot.lane.b32.xlu0 %v2454, 112
        %v2686 = vpop.permute.xlu0 %2685
        %v2688 = vsel %vm734, %v2684, 0
        %v2691 = vsel %vm734, %v2686, 0
        %2693 = vmatprep.subr.bf16.mxu0 0
        %2694 = vmatpush1.bf16.xpose.msra.mxu0 %v2691
        %2695 = vmatprep.subr.bf16.mxu0 0
        %2696 = vmatpush1.bf16.xpose.msra.mxu0 0
        %2697 = vmatprep.subr.bf16.mxu0 0
        %2698 = vmatpush1.bf16.xpose.msra.mxu0 0
        %2699 = vmatprep.subr.bf16.mxu0 0
        %2700 = vmatpush1.bf16.xpose.msra.mxu0 0
        %2701 = vmatprep.subr.bf16.mxu0 0
        %2702 = vmatpush1.bf16.xpose.msra.mxu0 0
        %2703 = vmatprep.subr.bf16.mxu0 0
        %2704 = vmatpush1.bf16.xpose.msra.mxu0 0
        %2705 = vmatprep.subr.bf16.mxu0 0
        %2706 = vmatpush1.bf16.xpose.msra.mxu0 0
        %2707 = vmatprep.subr.bf16.mxu0 0
        %2708 = vmatpush1.bf16.xpose.msra.mxu0 0
        %2709 = vmatprep.subr.bf16.mxu0 0
        %2710 = vmatpush1.bf16.xpose.msra.mxu0 0
        %2711 = vmatprep.subr.bf16.mxu0 0
        %2712 = vmatpush1.bf16.xpose.msra.mxu0 0
        %2713 = vmatprep.subr.bf16.mxu0 0
        %2714 = vmatpush1.bf16.xpose.msra.mxu0 0
        %2715 = vmatprep.subr.bf16.mxu0 0
        %2716 = vmatpush1.bf16.xpose.msra.mxu0 0
        %2717 = vmatprep.subr.bf16.mxu0 0
        %2718 = vmatpush1.bf16.xpose.msra.mxu0 0
        %2719 = vmatprep.subr.bf16.mxu0 0
        %2720 = vmatpush1.bf16.xpose.msra.mxu0 0
        %2721 = vmatprep.subr.bf16.mxu0 0
        %2722 = vmatpush1.bf16.xpose.msra.mxu0 0
        %2723 = vmatprep.subr.bf16.mxu0 0
        %2724 = vmatpush1.bf16.xpose.msra.mxu0 0
        %2725 = vmatprep.mubr.bf16.mxu0 0
        %2726 = vmatmul.mubr.bf16.gmra.mrb[0].mxu0 %v2688
        %v2727 = vpop.f32.mrb[0].mxu0
        %v2728 = vadd.f32 0.0, %v2727
        %v2729 = vpop.f32.mrb[0].mxu0
        %v2730 = vpop.f32.mrb[0].mxu0
        %v2731 = vpop.f32.mrb[0].mxu0
        %2732 = vdwg.mxu0
        %v2733 = vmul.f32 %v2728, 0.35355338
        %v2734 = vsel %vm2504, -1e+09, %v2733
        %v2735 = vsel %vm734, %v2734, -inf
        %2736 = vmax.xlane.f32.xlu0 %v2735
        %v2737 = vpop.xlane.xlu0 %2736
        %v2738 = vsub.f32 %v2734, %v2737
        %v2739 = vmul.f32 %v2738, 1.442695
        %v2740 = vpow.pop %v2739
        %v2741 = vsel %vm734, %v2740, 0.0
        %2742 = vadd.xlane.f32.xlu0 %v2741
        %v2743 = vpop.xlane.xlu0 %2742
        %v2744 = vrcp.pop %v2743
        %v2745 = vmul.f32 %v2740, %v2744
        %v2746 = vpack.c.bf16 %v2745, %v2745
        %2747 = vrot.lane.b32.xlu0 %v2518, 112
        %v2748 = vpop.permute.xlu0 %2747
        %v2750 = vsel %vm734, %v2746, 0
        %v2753 = vsel %vm801, %v2748, 0
        %2755 = vmatprep.subr.bf16.mxu0 0
        %2756 = vmatpush1.bf16.msra.mxu0 %v2753
        %2757 = vmatprep.subr.bf16.mxu0 0
        %2758 = vmatpush1.bf16.msra.mxu0 0
        %2759 = vmatprep.subr.bf16.mxu0 0
        %2760 = vmatpush1.bf16.msra.mxu0 0
        %2761 = vmatprep.subr.bf16.mxu0 0
        %2762 = vmatpush1.bf16.msra.mxu0 0
        %2763 = vmatprep.subr.bf16.mxu0 0
        %2764 = vmatpush1.bf16.msra.mxu0 0
        %2765 = vmatprep.subr.bf16.mxu0 0
        %2766 = vmatpush1.bf16.msra.mxu0 0
        %2767 = vmatprep.subr.bf16.mxu0 0
        %2768 = vmatpush1.bf16.msra.mxu0 0
        %2769 = vmatprep.subr.bf16.mxu0 0
        %2770 = vmatpush1.bf16.msra.mxu0 0
        %2771 = vmatprep.subr.bf16.mxu0 0
        %2772 = vmatpush1.bf16.msra.mxu0 0
        %2773 = vmatprep.subr.bf16.mxu0 0
        %2774 = vmatpush1.bf16.msra.mxu0 0
        %2775 = vmatprep.subr.bf16.mxu0 0
        %2776 = vmatpush1.bf16.msra.mxu0 0
        %2777 = vmatprep.subr.bf16.mxu0 0
        %2778 = vmatpush1.bf16.msra.mxu0 0
        %2779 = vmatprep.subr.bf16.mxu0 0
        %2780 = vmatpush1.bf16.msra.mxu0 0
        %2781 = vmatprep.subr.bf16.mxu0 0
        %2782 = vmatpush1.bf16.msra.mxu0 0
        %2783 = vmatprep.subr.bf16.mxu0 0
        %2784 = vmatpush1.bf16.msra.mxu0 0
        %2785 = vmatprep.subr.bf16.mxu0 0
        %2786 = vmatpush1.bf16.msra.mxu0 0
        %2787 = vmatprep.mubr.bf16.mxu0 0
        %2788 = vmatmul.mubr.bf16.gmra.mrb[0].mxu0 %v2750
        %v2789 = vpop.f32.mrb[0].mxu0
        %v2790 = vadd.f32 0.0, %v2789
        %v2791 = vpop.f32.mrb[0].mxu0
        %v2792 = vpop.f32.mrb[0].mxu0
        %v2793 = vpop.f32.mrb[0].mxu0
        %2794 = vdwg.mxu0
        %2796 = vrot.lane.b32.xlu0 %v2790, 16
        %v2797 = vpop.permute.xlu0 %2796
        %2799 = vst.msk [vmem:[#allocation3 + $0x8] sm:$0xff] %vm1083, %v2797
        %2800 = vrot.lane.b32.xlu0 %v2453, 104
        %v2801 = vpop.permute.xlu0 %2800
        %2802 = vrot.lane.b32.xlu0 %v2454, 104
        %v2803 = vpop.permute.xlu0 %2802
        %v2805 = vsel %vm734, %v2801, 0
        %v2808 = vsel %vm734, %v2803, 0
        %2810 = vmatprep.subr.bf16.mxu0 0
        %2811 = vmatpush1.bf16.xpose.msra.mxu0 %v2808
        %2812 = vmatprep.subr.bf16.mxu0 0
        %2813 = vmatpush1.bf16.xpose.msra.mxu0 0
        %2814 = vmatprep.subr.bf16.mxu0 0
        %2815 = vmatpush1.bf16.xpose.msra.mxu0 0
        %2816 = vmatprep.subr.bf16.mxu0 0
        %2817 = vmatpush1.bf16.xpose.msra.mxu0 0
        %2818 = vmatprep.subr.bf16.mxu0 0
        %2819 = vmatpush1.bf16.xpose.msra.mxu0 0
        %2820 = vmatprep.subr.bf16.mxu0 0
        %2821 = vmatpush1.bf16.xpose.msra.mxu0 0
        %2822 = vmatprep.subr.bf16.mxu0 0
        %2823 = vmatpush1.bf16.xpose.msra.mxu0 0
        %2824 = vmatprep.subr.bf16.mxu0 0
        %2825 = vmatpush1.bf16.xpose.msra.mxu0 0
        %2826 = vmatprep.subr.bf16.mxu0 0
        %2827 = vmatpush1.bf16.xpose.msra.mxu0 0
        %2828 = vmatprep.subr.bf16.mxu0 0
        %2829 = vmatpush1.bf16.xpose.msra.mxu0 0
        %2830 = vmatprep.subr.bf16.mxu0 0
        %2831 = vmatpush1.bf16.xpose.msra.mxu0 0
        %2832 = vmatprep.subr.bf16.mxu0 0
        %2833 = vmatpush1.bf16.xpose.msra.mxu0 0
        %2834 = vmatprep.subr.bf16.mxu0 0
        %2835 = vmatpush1.bf16.xpose.msra.mxu0 0
        %2836 = vmatprep.subr.bf16.mxu0 0
        %2837 = vmatpush1.bf16.xpose.msra.mxu0 0
        %2838 = vmatprep.subr.bf16.mxu0 0
        %2839 = vmatpush1.bf16.xpose.msra.mxu0 0
        %2840 = vmatprep.subr.bf16.mxu0 0
        %2841 = vmatpush1.bf16.xpose.msra.mxu0 0
        %2842 = vmatprep.mubr.bf16.mxu0 0
        %2843 = vmatmul.mubr.bf16.gmra.mrb[0].mxu0 %v2805
        %v2844 = vpop.f32.mrb[0].mxu0
        %v2845 = vadd.f32 0.0, %v2844
        %v2846 = vpop.f32.mrb[0].mxu0
        %v2847 = vpop.f32.mrb[0].mxu0
        %v2848 = vpop.f32.mrb[0].mxu0
        %2849 = vdwg.mxu0
        %v2850 = vmul.f32 %v2845, 0.35355338
        %v2851 = vsel %vm2504, -1e+09, %v2850
        %v2852 = vsel %vm734, %v2851, -inf
        %2853 = vmax.xlane.f32.xlu0 %v2852
        %v2854 = vpop.xlane.xlu0 %2853
        %v2855 = vsub.f32 %v2851, %v2854
        %v2856 = vmul.f32 %v2855, 1.442695
        %v2857 = vpow.pop %v2856
        %v2858 = vsel %vm734, %v2857, 0.0
        %2859 = vadd.xlane.f32.xlu0 %v2858
        %v2860 = vpop.xlane.xlu0 %2859
        %v2861 = vrcp.pop %v2860
        %v2862 = vmul.f32 %v2857, %v2861
        %v2863 = vpack.c.bf16 %v2862, %v2862
        %2864 = vrot.lane.b32.xlu0 %v2518, 104
        %v2865 = vpop.permute.xlu0 %2864
        %v2867 = vsel %vm734, %v2863, 0
        %v2870 = vsel %vm801, %v2865, 0
        %2872 = vmatprep.subr.bf16.mxu0 0
        %2873 = vmatpush1.bf16.msra.mxu0 %v2870
        %2874 = vmatprep.subr.bf16.mxu0 0
        %2875 = vmatpush1.bf16.msra.mxu0 0
        %2876 = vmatprep.subr.bf16.mxu0 0
        %2877 = vmatpush1.bf16.msra.mxu0 0
        %2878 = vmatprep.subr.bf16.mxu0 0
        %2879 = vmatpush1.bf16.msra.mxu0 0
        %2880 = vmatprep.subr.bf16.mxu0 0
        %2881 = vmatpush1.bf16.msra.mxu0 0
        %2882 = vmatprep.subr.bf16.mxu0 0
        %2883 = vmatpush1.bf16.msra.mxu0 0
        %2884 = vmatprep.subr.bf16.mxu0 0
        %2885 = vmatpush1.bf16.msra.mxu0 0
        %2886 = vmatprep.subr.bf16.mxu0 0
        %2887 = vmatpush1.bf16.msra.mxu0 0
        %2888 = vmatprep.subr.bf16.mxu0 0
        %2889 = vmatpush1.bf16.msra.mxu0 0
        %2890 = vmatprep.subr.bf16.mxu0 0
        %2891 = vmatpush1.bf16.msra.mxu0 0
        %2892 = vmatprep.subr.bf16.mxu0 0
        %2893 = vmatpush1.bf16.msra.mxu0 0
        %2894 = vmatprep.subr.bf16.mxu0 0
        %2895 = vmatpush1.bf16.msra.mxu0 0
        %2896 = vmatprep.subr.bf16.mxu0 0
        %2897 = vmatpush1.bf16.msra.mxu0 0
        %2898 = vmatprep.subr.bf16.mxu0 0
        %2899 = vmatpush1.bf16.msra.mxu0 0
        %2900 = vmatprep.subr.bf16.mxu0 0
        %2901 = vmatpush1.bf16.msra.mxu0 0
        %2902 = vmatprep.subr.bf16.mxu0 0
        %2903 = vmatpush1.bf16.msra.mxu0 0
        %2904 = vmatprep.mubr.bf16.mxu0 0
        %2905 = vmatmul.mubr.bf16.gmra.mrb[0].mxu0 %v2867
        %v2906 = vpop.f32.mrb[0].mxu0
        %v2907 = vadd.f32 0.0, %v2906
        %v2908 = vpop.f32.mrb[0].mxu0
        %v2909 = vpop.f32.mrb[0].mxu0
        %v2910 = vpop.f32.mrb[0].mxu0
        %2911 = vdwg.mxu0
        %2913 = vrot.lane.b32.xlu0 %v2907, 24
        %v2914 = vpop.permute.xlu0 %2913
        %2916 = vst.msk [vmem:[#allocation3 + $0x8] sm:$0xff] %vm1201, %v2914
        %v2917 = vld [vmem:[#allocation3] sm:$0xff]
        %v2918 = vld [vmem:[#allocation3 + $0x8] sm:$0xff]
        %v2919 = vpack.c.bf16 %v2918, %v2917
        %v2920 = vlaneseq
        %v2921 = vshrl.u32 %v2920, 7
        %v2922 = vsub.s32 7, %v2921
        %v2923 = vrot.slane %v480, %v2922
        %v2928 = vunpack.c.l.b16 %v1801
        %v2929 = vunpack.c.l.b16 %v1802
        %v2930 = vunpack.c.l.b16 %v1803
        %v2931 = vunpack.c.l.b16 %v1804
        %v2932 = vpack.c.b16 %v2929, %v2928
        %v2933 = vpack.c.b16 %v2931, %v2930
        %v2937 = vsel %vm482, %v2919, 0
        %2939 = vmatprep.subr.bf16.mxu0 0
        %2940 = vmatpush1.bf16.msra.mxu0 %v2932
        %2941 = vmatprep.subr.bf16.mxu0 0
        %2942 = vmatpush1.bf16.msra.mxu0 %v2933
        %2943 = vmatprep.subr.bf16.mxu0 0
        %2944 = vmatpush1.bf16.msra.mxu0 0
        %2945 = vmatprep.subr.bf16.mxu0 0
        %2946 = vmatpush1.bf16.msra.mxu0 0
        %2947 = vmatprep.subr.bf16.mxu0 0
        %2948 = vmatpush1.bf16.msra.mxu0 0
        %2949 = vmatprep.subr.bf16.mxu0 0
        %2950 = vmatpush1.bf16.msra.mxu0 0
        %2951 = vmatprep.subr.bf16.mxu0 0
        %2952 = vmatpush1.bf16.msra.mxu0 0
        %2953 = vmatprep.subr.bf16.mxu0 0
        %2954 = vmatpush1.bf16.msra.mxu0 0
        %2955 = vmatprep.subr.bf16.mxu0 0
        %2956 = vmatpush1.bf16.msra.mxu0 0
        %2957 = vmatprep.subr.bf16.mxu0 0
        %2958 = vmatpush1.bf16.msra.mxu0 0
        %2959 = vmatprep.subr.bf16.mxu0 0
        %2960 = vmatpush1.bf16.msra.mxu0 0
        %2961 = vmatprep.subr.bf16.mxu0 0
        %2962 = vmatpush1.bf16.msra.mxu0 0
        %2963 = vmatprep.subr.bf16.mxu0 0
        %2964 = vmatpush1.bf16.msra.mxu0 0
        %2965 = vmatprep.subr.bf16.mxu0 0
        %2966 = vmatpush1.bf16.msra.mxu0 0
        %2967 = vmatprep.subr.bf16.mxu0 0
        %2968 = vmatpush1.bf16.msra.mxu0 0
        %2969 = vmatprep.subr.bf16.mxu0 0
        %2970 = vmatpush1.bf16.msra.mxu0 0
        %2971 = vmatprep.mubr.bf16.mxu0 0
        %2972 = vmatmul.mubr.bf16.gmra.mrb[0].mxu0 %v2937
        %v2973 = vpop.f32.mrb[0].mxu0
        %v2974 = vadd.f32 %v2923, %v2973
        %v2975 = vpop.f32.mrb[0].mxu0
        %v2976 = vpop.f32.mrb[0].mxu0
        %v2977 = vadd.f32 %v2923, %v2976
        %v2978 = vpop.f32.mrb[0].mxu0
        %2979 = vdwg.mxu0
        %v2980 = vadd.f32 %v1731, %v2974
        %v2981 = vadd.f32 %v1732, %v2977
        %v2982 = vsel %vm482, %v2980, 0.0
        %2983 = vadd.xlane.f32.xlu0 %v2982
        %v2984 = vpop.xlane.xlu0 %2983
        %v2985 = vsel %vm482, %v2981, 0.0
        %2986 = vadd.xlane.f32.xlu0 %v2985
        %v2987 = vpop.xlane.xlu0 %2986
        %v2988 = vmul.f32 %v2984, %v489
        %v2989 = vmul.f32 %v2987, %v489
        %v2990 = vsub.f32 %v2980, %v2988
        %v2991 = vsub.f32 %v2981, %v2989
        %v2992 = vmul.f32 %v2990, %v2990
        %v2993 = vmul.f32 %v2991, %v2991
        %v2994 = vsel %vm482, %v2992, 0.0
        %2995 = vadd.xlane.f32.xlu0 %v2994
        %v2996 = vpop.xlane.xlu0 %2995
        %v2997 = vsel %vm482, %v2993, 0.0
        %2998 = vadd.xlane.f32.xlu0 %v2997
        %v2999 = vpop.xlane.xlu0 %2998
        %v3000 = vmul.f32 %v2996, 0.032258064
        %v3001 = vmul.f32 %v2999, 0.032258064
        %v3002 = vrsqrt.pop %v3000
        %v3003 = vmul.f32 %v3000, %v3002
        %vm3004 = vcmp.eq.f32.partialorder %v3000, inf
        %v3005 = vsel %vm3004, %v3000, %v3003
        %vm3006 = vcmp.eq.f32.partialorder %v3000, 0.0
        %v3007 = vand.u32 %v3000, 2147483648
        %v3008 = vsel %vm3006, %v3007, %v3005
        %v3009 = vrsqrt.pop %v3001
        %v3010 = vmul.f32 %v3001, %v3009
        %vm3011 = vcmp.eq.f32.partialorder %v3001, inf
        %v3012 = vsel %vm3011, %v3001, %v3010
        %vm3013 = vcmp.eq.f32.partialorder %v3001, 0.0
        %v3014 = vand.u32 %v3001, 2147483648
        %v3015 = vsel %vm3013, %v3014, %v3012
        %v3016 = vlaneseq
        %v3017 = vshrl.u32 %v3016, 7
        %v3018 = vsub.s32 6, %v3017
        %v3019 = vrot.slane %v481, %v3018
        %v3020 = vmul.f32 %v3019, %v2990
        %v3021 = vmul.f32 %v3019, %v2991
        %v3022 = vadd.f32 %v3008, 1e-06
        %v3023 = vadd.f32 %v3015, 1e-06
        %v3024 = vrcp.pop %v3022
        %v3025 = vmul.f32 %v3020, %v3024
        %v3026 = vrcp.pop %v3023
        %v3027 = vmul.f32 %v3021, %v3026
        %v3028 = vlaneseq
        %v3029 = vshrl.u32 %v3028, 7
        %v3030 = vsub.s32 7, %v3029
        %v3031 = vrot.slane %v481, %v3030
        %v3032 = vadd.f32 %v3025, %v3031
        %v3033 = vadd.f32 %v3027, %v3031
        %v3034 = vpack.c.bf16 %v3033, %v3032
        %v3035 = vld [vmem:[%s454] sm:$0xf]
        %v3036 = vld [vmem:[%s454 + $0x4] sm:$0xf]
        %v3037 = vld [vmem:[%s454 + $0x8] sm:$0xf]
        %v3038 = vld [vmem:[%s454 + $0xc] sm:$0xf]
        %v3039 = vlaneseq
        %v3040 = vshrl.u32 %v3039, 7
        %v3041 = vsub.s32 0, %v3040
        %v3042 = vrot.slane %v481, %v3041
        %v3047 = vunpack.c.l.b16 %v3035
        %v3048 = vunpack.c.l.b16 %v3036
        %v3049 = vunpack.c.l.b16 %v3037
        %v3050 = vunpack.c.l.b16 %v3038
        %v3051 = vpack.c.b16 %v3048, %v3047
        %v3052 = vpack.c.b16 %v3050, %v3049
        %v3056 = vsel %vm482, %v3034, 0
        %3058 = vmatprep.subr.bf16.mxu0 0
        %3059 = vmatpush1.bf16.msra.mxu0 %v3051
        %3060 = vmatprep.subr.bf16.mxu0 0
        %3061 = vmatpush1.bf16.msra.mxu0 %v3052
        %3062 = vmatprep.subr.bf16.mxu0 0
        %3063 = vmatpush1.bf16.msra.mxu0 0
        %3064 = vmatprep.subr.bf16.mxu0 0
        %3065 = vmatpush1.bf16.msra.mxu0 0
        %3066 = vmatprep.subr.bf16.mxu0 0
        %3067 = vmatpush1.bf16.msra.mxu0 0
        %3068 = vmatprep.subr.bf16.mxu0 0
        %3069 = vmatpush1.bf16.msra.mxu0 0
        %3070 = vmatprep.subr.bf16.mxu0 0
        %3071 = vmatpush1.bf16.msra.mxu0 0
        %3072 = vmatprep.subr.bf16.mxu0 0
        %3073 = vmatpush1.bf16.msra.mxu0 0
        %3074 = vmatprep.subr.bf16.mxu0 0
        %3075 = vmatpush1.bf16.msra.mxu0 0
        %3076 = vmatprep.subr.bf16.mxu0 0
        %3077 = vmatpush1.bf16.msra.mxu0 0
        %3078 = vmatprep.subr.bf16.mxu0 0
        %3079 = vmatpush1.bf16.msra.mxu0 0
        %3080 = vmatprep.subr.bf16.mxu0 0
        %3081 = vmatpush1.bf16.msra.mxu0 0
        %3082 = vmatprep.subr.bf16.mxu0 0
        %3083 = vmatpush1.bf16.msra.mxu0 0
        %3084 = vmatprep.subr.bf16.mxu0 0
        %3085 = vmatpush1.bf16.msra.mxu0 0
        %3086 = vmatprep.subr.bf16.mxu0 0
        %3087 = vmatpush1.bf16.msra.mxu0 0
        %3088 = vmatprep.subr.bf16.mxu0 0
        %3089 = vmatpush1.bf16.msra.mxu0 0
        %3090 = vmatprep.mubr.bf16.mxu0 0
        %3091 = vmatmul.mubr.bf16.gmra.mrb[0].mxu0 %v3056
        %v3092 = vpop.f32.mrb[0].mxu0
        %v3093 = vadd.f32 %v3042, %v3092
        %v3094 = vpop.f32.mrb[0].mxu0
        %v3095 = vpop.f32.mrb[0].mxu0
        %v3096 = vadd.f32 %v3042, %v3095
        %v3097 = vpop.f32.mrb[0].mxu0
        %3098 = vdwg.mxu0
        %v3099 = vmax.f32 %v3093, 0.0
        %v3100 = vmax.f32 %v3096, 0.0
        %v3101 = vpack.c.bf16 %v3100, %v3099
        %v3102 = vld [vmem:[%s405] sm:$0xf]
        %v3103 = vld [vmem:[%s405 + $0x4] sm:$0xf]
        %v3104 = vlaneseq
        %v3105 = vshrl.u32 %v3104, 7
        %v3106 = vsub.s32 1, %v3105
        %v3107 = vrot.slane %v481, %v3106
        %v3110 = vunpack.c.l.b16 %v3102
        %v3111 = vunpack.c.l.b16 %v3103
        %v3112 = vpack.c.b16 %v3111, %v3110
        %vm3114 = vcmask 130048
        %v3116 = vsel %vm3114, %v3101, 0
        %3118 = vmatprep.subr.bf16.mxu0 0
        %3119 = vmatpush1.bf16.msra.mxu0 %v3112
        %3120 = vmatprep.subr.bf16.mxu0 0
        %3121 = vmatpush1.bf16.msra.mxu0 0
        %3122 = vmatprep.subr.bf16.mxu0 0
        %3123 = vmatpush1.bf16.msra.mxu0 0
        %3124 = vmatprep.subr.bf16.mxu0 0
        %3125 = vmatpush1.bf16.msra.mxu0 0
        %3126 = vmatprep.subr.bf16.mxu0 0
        %3127 = vmatpush1.bf16.msra.mxu0 0
        %3128 = vmatprep.subr.bf16.mxu0 0
        %3129 = vmatpush1.bf16.msra.mxu0 0
        %3130 = vmatprep.subr.bf16.mxu0 0
        %3131 = vmatpush1.bf16.msra.mxu0 0
        %3132 = vmatprep.subr.bf16.mxu0 0
        %3133 = vmatpush1.bf16.msra.mxu0 0
        %3134 = vmatprep.subr.bf16.mxu0 0
        %3135 = vmatpush1.bf16.msra.mxu0 0
        %3136 = vmatprep.subr.bf16.mxu0 0
        %3137 = vmatpush1.bf16.msra.mxu0 0
        %3138 = vmatprep.subr.bf16.mxu0 0
        %3139 = vmatpush1.bf16.msra.mxu0 0
        %3140 = vmatprep.subr.bf16.mxu0 0
        %3141 = vmatpush1.bf16.msra.mxu0 0
        %3142 = vmatprep.subr.bf16.mxu0 0
        %3143 = vmatpush1.bf16.msra.mxu0 0
        %3144 = vmatprep.subr.bf16.mxu0 0
        %3145 = vmatpush1.bf16.msra.mxu0 0
        %3146 = vmatprep.subr.bf16.mxu0 0
        %3147 = vmatpush1.bf16.msra.mxu0 0
        %3148 = vmatprep.subr.bf16.mxu0 0
        %3149 = vmatpush1.bf16.msra.mxu0 0
        %3150 = vmatprep.mubr.bf16.mxu0 0
        %3151 = vmatmul.mubr.bf16.gmra.mrb[0].mxu0 %v3116
        %v3152 = vpop.f32.mrb[0].mxu0
        %v3153 = vadd.f32 %v3107, %v3152
        %v3154 = vpop.f32.mrb[0].mxu0
        %v3155 = vpop.f32.mrb[0].mxu0
        %v3156 = vadd.f32 %v3107, %v3155
        %v3157 = vpop.f32.mrb[0].mxu0
        %3158 = vdwg.mxu0
        %v3159 = vadd.f32 %v2980, %v3153
        %v3160 = vadd.f32 %v2981, %v3156
        %3161 = vst.msk [vmem:[#allocation2] sm:$0xff] %vm482, %v3159
        %3162 = vst.msk [vmem:[#allocation2 + $0x8] sm:$0xff] %vm482, %v3160
        %p3163 = scmp.eq.s32.totalorder %s26, 1
        // Predicated region
        $region81: #{tpu_custom_call.1} parent=55 // pred_check
          %p3164 = pneg %p3163
        $region82: #{tpu_custom_call.1} parent=55 // pred_check_branch
          %3166 = sbr.rel (%p3164) target = $region84
        $region83: #{tpu_custom_call.1} parent=55 // pred_region
          %v3167 = vld [vmem:[%s8] sm:$0x1]
          %v3168 = vld [vmem:[%s8 + $0x1] sm:$0x1]
          %v3169 = vsel %vm482, %v3159, 0.0
          %3170 = vadd.xlane.f32.xlu0 %v3169
          %v3171 = vpop.xlane.xlu0 %3170
          %v3172 = vsel %vm482, %v3160, 0.0
          %3173 = vadd.xlane.f32.xlu0 %v3172
          %v3174 = vpop.xlane.xlu0 %3173
          %v3175 = vmul.f32 %v3171, %v489
          %v3176 = vmul.f32 %v3174, %v489
          %v3177 = vsub.f32 %v3159, %v3175
          %v3178 = vsub.f32 %v3160, %v3176
          %v3179 = vmul.f32 %v3177, %v3177
          %v3180 = vmul.f32 %v3178, %v3178
          %v3181 = vsel %vm482, %v3179, 0.0
          %3182 = vadd.xlane.f32.xlu0 %v3181
          %v3183 = vpop.xlane.xlu0 %3182
          %v3184 = vsel %vm482, %v3180, 0.0
          %3185 = vadd.xlane.f32.xlu0 %v3184
          %v3186 = vpop.xlane.xlu0 %3185
          %v3187 = vmul.f32 %v3183, 0.032258064
          %v3188 = vmul.f32 %v3186, 0.032258064
          %v3189 = vrsqrt.pop %v3187
          %v3190 = vmul.f32 %v3187, %v3189
          %vm3191 = vcmp.eq.f32.partialorder %v3187, inf
          %v3192 = vsel %vm3191, %v3187, %v3190
          %vm3193 = vcmp.eq.f32.partialorder %v3187, 0.0
          %v3194 = vand.u32 %v3187, 2147483648
          %v3195 = vsel %vm3193, %v3194, %v3192
          %v3196 = vrsqrt.pop %v3188
          %v3197 = vmul.f32 %v3188, %v3196
          %vm3198 = vcmp.eq.f32.partialorder %v3188, inf
          %v3199 = vsel %vm3198, %v3188, %v3197
          %vm3200 = vcmp.eq.f32.partialorder %v3188, 0.0
          %v3201 = vand.u32 %v3188, 2147483648
          %v3202 = vsel %vm3200, %v3201, %v3199
          %v3203 = vlaneseq
          %v3204 = vshrl.u32 %v3203, 7
          %v3205 = vsub.s32 0, %v3204
          %v3206 = vrot.slane %v3167, %v3205
          %v3207 = vmul.f32 %v3206, %v3177
          %v3208 = vmul.f32 %v3206, %v3178
          %v3209 = vadd.f32 %v3195, 1e-06
          %v3210 = vadd.f32 %v3202, 1e-06
          %v3211 = vrcp.pop %v3209
          %v3212 = vmul.f32 %v3207, %v3211
          %v3213 = vrcp.pop %v3210
          %v3214 = vmul.f32 %v3208, %v3213
          %v3215 = vlaneseq
          %v3216 = vshrl.u32 %v3215, 7
          %v3217 = vsub.s32 0, %v3216
          %v3218 = vrot.slane %v3168, %v3217
          %v3219 = vadd.f32 %v3212, %v3218
          %v3220 = vadd.f32 %v3214, %v3218
          %3221 = vst.msk [vmem:[#allocation13] sm:$0xff] %vm482, %v3219
          %3222 = vst.msk [vmem:[#allocation13 + $0x8] sm:$0xff] %vm482, %v3220
        $region84: #{tpu_custom_call.1} parent=55 // pred_fallthru
          _
        // Predicated region
        $region85: #{tpu_custom_call.1} parent=55 // pred_check
          %p3223 = pneg %p248
        $region86: #{tpu_custom_call.1} parent=55 // pred_check_branch
          %3225 = sbr.rel (%p3223) target = $region88
        $region87: #{tpu_custom_call.1} parent=55 // pred_region
          %s3227 = ssub.s32 256, 256
          %3228 = vsyncadd [#allocation6], %s3227
          %s3229 = sshll.u32 [#allocation13], 4
          %s3230 = int_to_ptr.vmem [resolvable:$true] %s3229
          %3235 = dma.vmem_to_hbm [thread:$0]  %s3230, 256, %s9, [#allocation6], 128, 128, 8
        $region88: #{tpu_custom_call.1} parent=55 // pred_fallthru
          _
        // Predicated region
        $region89: #{tpu_custom_call.1} parent=55 // pred_check
          %p3236 = pneg %p248
        $region90: #{tpu_custom_call.1} parent=55 // pred_check_branch
          %3238 = sbr.rel (%p3236) target = $region92
        $region91: #{tpu_custom_call.1} parent=55 // pred_region
          %3239 = dma.done [#allocation6], 256
        $region92: #{tpu_custom_call.1} parent=55 // pred_fallthru
          _
      $region56: #{tpu_custom_call.1} parent=5 // pred_fallthru
        _
      %p3240 = scmp.le.s32.totalorder 2, %s21
      // Predicated region
      $region93: #{tpu_custom_call.1} parent=5 // pred_check
        %p3241 = pneg %p3240
      $region94: #{tpu_custom_call.1} parent=5 // pred_check_branch
        %3243 = sbr.rel (%p3241) target = $region96
      $region95: #{tpu_custom_call.1} parent=5 // pred_region
        %s3244 = ssub.s32 %s21, 2
      $region96: #{tpu_custom_call.1} parent=5 // pred_fallthru
        _
    $region6: #{tpu_custom_call.1} parent=1 // loop_footer
      %s25 = sadd.s32 1, %s21
    $region7: #{tpu_custom_call.1} parent=1 // loop_footer_branch
      %20 = sbr.rel target = $region3
    $region8: #{tpu_custom_call.1} parent=1 // loop_exit
      _
    %3245 = vsyncpa [#allocation5], 1
    %s3246 = scalar_lea.sflag [#allocation5], 1
    %3247 = vsyncpa %s3246, 1
    %3248 = vsyncpa [#allocation8], 1
    %3249 = vsyncpa [#allocation11], 1
    %s3250 = scalar_lea.sflag [#allocation11], 1
    %3251 = vsyncpa %s3250, 1
    %3252 = vsyncpa [#allocation6], 1
    %s3253 = scalar_lea.sflag [#allocation6], 1
    %3254 = vsyncpa %s3253, 1

</llo_original>
